<compile_context>
chip_gen: v7x
topology: tpu7x:2x2x1
jax: 0.10.0
libtpu: 0.0.40
codegen_flags: <defaults>
</compile_context>

<pallas_src>
import functools

import numpy as np

import jax
import jax.numpy as jnp
from jax.experimental import pallas as pl
from jax.experimental.pallas import tpu as pltpu


# ----------------------------------------------------------------------------
# BlockSpec helpers
# ----------------------------------------------------------------------------
def _const_index_map(nd):
    zeros = (0,) * nd

    def idx(b):
        return zeros

    return idx


def _wspec(a):
    """Full-array (weight) BlockSpec, constant block index across the 1-D grid."""
    return pl.BlockSpec(a.shape, _const_index_map(a.ndim))


_PARALLEL = pltpu.CompilerParams(dimension_semantics=("parallel",))


# ----------------------------------------------------------------------------
# Pallas kernel 1: DeformableAlign offset head.
#   (depthwise 3x3 + 1x1 folded into banded matmuls) -> ReLU -> block-diag 1x1
#   with the "mean over 4 anchors x 0.1" reduction folded in.
# ----------------------------------------------------------------------------
def _offset_kernel(H, W, C, hid):
    Whid = W * hid
    W4 = W * 4

    def kernel(rgbp_ref, tirp_ref, ob_ref, obd_ref, obias_ref, off_ref):
        rp16 = rgbp_ref[0].astype(jnp.bfloat16)          # (H+2, (W+2)*C) lane-folded
        tp16 = tirp_ref[0].astype(jnp.bfloat16)
        acc = None
        for ky in range(3):                              # 3 banded matmuls, K=(W+2)*C
            a = jnp.dot(rp16[ky:ky + H], ob_ref[2 * ky],
                        preferred_element_type=jnp.float32)
            b = jnp.dot(tp16[ky:ky + H], ob_ref[2 * ky + 1],
                        preferred_element_type=jnp.float32)
            acc = a + b if acc is None else acc + a + b
        h = jnp.maximum(acc + obias_ref[0:1, 0:Whid], 0.0)          # (H, W*hid)
        off = jnp.dot(h.astype(jnp.bfloat16), obd_ref[...],
                      preferred_element_type=jnp.float32) + obias_ref[1:2, 0:W4]
        off_ref[0] = off                                            # (H, W*4) lane-dense
    return kernel


def offset_head(rgbp_f, tirp_f, p, H, W, C, hid):
    B = rgbp_f.shape[0]
    HP, WPC = H + 2, (W + 2) * C
    return pl.pallas_call(
        _offset_kernel(H, W, C, hid),
        out_shape=jax.ShapeDtypeStruct((B, H, W * 4), jnp.float32),
        grid=(B,),
        in_specs=[pl.BlockSpec((1, HP, WPC), lambda b: (b, 0, 0)),
                  pl.BlockSpec((1, HP, WPC), lambda b: (b, 0, 0)),
                  _wspec(p["oband"]), _wspec(p["obd"]), _wspec(p["obias"])],
        out_specs=pl.BlockSpec((1, H, W * 4), lambda b: (b, 0, 0)),
        compiler_params=_PARALLEL,
    )(rgbp_f, tirp_f, p["oband"], p["obd"], p["obias"])


# ----------------------------------------------------------------------------
# Pallas kernel 2: fused tail.
#   feature enhancer (rgb, tir) + grouped boundary detector (shared banded matmul,
#   N-merged), boundary map (+channel broadcast) in one block-diag matmul, boundary
#   enhancement, complementary fusion, learnable blend, output_adjust + confidence
#   (adjust folded into conf layer 1), alignment quality via a pooling matmul.
# ----------------------------------------------------------------------------
def _combine_kernel(H, W, C, hb, hid, fw):
    WC, Whb, Whid = W * C, W * hb, W * hid

    def kernel(rgbp_ref, tirp_ref, att_ref, wsm_ref,
               band_ref, bd_ref, small_ref, bias_ref,
               enh_ref, maps_ref):
        rp = rgbp_ref[0]                  # (H+2, (W+2)*C) modulated aligned rgb, 0-halo
        tp = tirp_ref[0]
        rp16 = rp.astype(jnp.bfloat16)
        tp16 = tp.astype(jnp.bfloat16)

        # Banded 3x3 convs; columns [0:WC]=feature enhancer, [WC:WC+Whb]=detector.
        acc_r = None
        acc_t = None
        for ky in range(3):
            wk = band_ref[ky]
            a = jnp.dot(rp16[ky:ky + H], wk, preferred_element_type=jnp.float32)
            b = jnp.dot(tp16[ky:ky + H], wk, preferred_element_type=jnp.float32)
            acc_r = a if acc_r is None else acc_r + a
            acc_t = b if acc_t is None else acc_t + b
        enh_b = bias_ref[0:1, 0:WC]
        rgb_enh = jnp.maximum(acc_r[:, 0:WC] + enh_b, 0.0)          # (H, WC)
        tir_enh = jnp.maximum(acc_t[:, 0:WC] + enh_b, 0.0)
        # detector input is fused_temp = 0.5*(rgb+tir); conv is linear -> average here
        det_h = jnp.maximum(0.5 * (acc_r[:, WC:WC + Whb] + acc_t[:, WC:WC + Whb])
                            + bias_ref[1:2, 0:Whb], 0.0)            # (H, Whb)

        # Boundary map: one matmul gives channel-broadcast [0:WC] + per-pixel [WC:WC+W].
        d2 = jax.nn.sigmoid(
            jnp.dot(det_h.astype(jnp.bfloat16), bd_ref[1][0:Whb, 0:WC + W],
                    preferred_element_type=jnp.float32) + bias_ref[3:4, 0:WC + W])
        bmap_bcast = d2[:, 0:WC]
        bmap_w = d2[:, WC:WC + W]

        # Boundary enhancement + complementary fusion + learnable blend.
        rv = rp[1:H + 1, C:(W + 1) * C]   # valid (unpadded) window
        tv = tp[1:H + 1, C:(W + 1) * C]
        ft = 0.5 * (rv + tv)
        wsm = wsm_ref[0]                  # (1, 2) softmax fusion weights
        be = ft * (1.0 + att_ref[0] * bmap_bcast)
        comp = rgb_enh * wsm[0:1, 0:1] + tir_enh * wsm[0:1, 1:2]
        pre = fw * be + (1.0 - fw) * comp                           # (H, WC)

        # output_adjust + (adjust-folded) confidence layer 1 in one matmul.
        m1 = jnp.dot(pre.astype(jnp.bfloat16), bd_ref[0][0:WC, 0:WC + Whid],
                     preferred_element_type=jnp.float32) + bias_ref[2:3, 0:WC + Whid]
        enh_ref[0] = m1[:, 0:WC]                                    # lane-dense store
        cmid = jnp.maximum(m1[:, WC:WC + Whid], 0.0)
        conf_w = jax.nn.sigmoid(
            jnp.dot(cmid.astype(jnp.bfloat16), small_ref[0:Whid, W:2 * W],
                    preferred_element_type=jnp.float32) + bias_ref[4:5, 0:W])

        # Alignment quality: sigmoid(1 - mean_c |rgb - tir|) via channel-pool matmul.
        aq_w = jax.nn.sigmoid(
            1.0 - jnp.dot(jnp.abs(rv - tv).astype(jnp.bfloat16), small_ref[:, 0:W],
                          preferred_element_type=jnp.float32))

        # Packed small maps: [boundary | alignment quality | confidence].
        maps_ref[0] = jnp.concatenate([bmap_w, aq_w, conf_w], axis=-1)
    return kernel


def fused_combine(rgbp_f, tirp_f, att_f, wsm, p, H, W, C, hb, hid, fw):
    B = rgbp_f.shape[0]
    HP, WPC = H + 2, (W + 2) * C
    return pl.pallas_call(
        _combine_kernel(H, W, C, hb, hid, fw),
        out_shape=(jax.ShapeDtypeStruct((B, H, W * C), jnp.float32),
                   jax.ShapeDtypeStruct((B, H, 3 * W), jnp.float32)),
        grid=(B,),
        in_specs=[pl.BlockSpec((1, HP, WPC), lambda b: (b, 0, 0)),
                  pl.BlockSpec((1, HP, WPC), lambda b: (b, 0, 0)),
                  pl.BlockSpec((1, H, W * C), lambda b: (b, 0, 0)),
                  pl.BlockSpec((1, 1, 2), lambda b: (b, 0, 0)),
                  _wspec(p["band"]), _wspec(p["bd"]),
                  _wspec(p["small"]), _wspec(p["biases"])],
        out_specs=(pl.BlockSpec((1, H, W * C), lambda b: (b, 0, 0)),
                   pl.BlockSpec((1, H, 3 * W), lambda b: (b, 0, 0))),
        compiler_params=_PARALLEL,
    )(rgbp_f, tirp_f, att_f, wsm, p["band"], p["bd"], p["small"], p["biases"])


# ----------------------------------------------------------------------------
# JAX glue (gather-free resampling / pooling; tiny pooled MLPs stay in XLA)
# ----------------------------------------------------------------------------
def adaptive_avg_pool(x, out):
    """PyTorch AdaptiveAvgPool2d(out) for H, W divisible by out.  x: NHWC."""
    B, H, W, C = x.shape
    kh, kw = H // out, W // out
    return x.reshape(B, out, kh, out, kw, C).mean(axis=(2, 4))


def bilinear_resize(x, H_out, W_out):
    """F.interpolate(mode='bilinear', align_corners=False).  x: NHWC."""
    B, H_in, W_in, C = x.shape

    def idx_lam(out_size, in_size):
        scale = in_size / out_size
        src = jnp.maximum((jnp.arange(out_size, dtype=jnp.float32) + 0.5) * scale - 0.5, 0.0)
        i0 = jnp.minimum(jnp.floor(src).astype(jnp.int32), in_size - 1)
        i1 = jnp.minimum(i0 + 1, in_size - 1)
        return i0, i1, src - i0.astype(jnp.float32)

    y0, y1, ly = idx_lam(H_out, H_in)
    x0, x1, lx = idx_lam(W_out, W_in)
    rows = x[:, y0] * (1.0 - ly)[None, :, None, None] + x[:, y1] * ly[None, :, None, None]
    return (rows[:, :, x0] * (1.0 - lx)[None, None, :, None]
            + rows[:, :, x1] * lx[None, None, :, None])


def grid_sample_border(feat, grid):
    """F.grid_sample(bilinear, padding_mode='border', align_corners=True) expressed
    as one-hot bilinear matmuls (no XLA gather; runs on the MXU).
    feat: (B,H,W,C) NHWC, grid: (B,H,W,2) with [...,0]=x, [...,1]=y."""
    # TODO(synk): for large H*W replace with a Pallas DMA-gather kernel (scalar-prefetched rows).
    B, H, W, C = feat.shape
    HW = H * W
    x = jnp.clip((grid[..., 0] + 1.0) * 0.5 * (W - 1), 0.0, W - 1.0)
    y = jnp.clip((grid[..., 1] + 1.0) * 0.5 * (H - 1), 0.0, H - 1.0)
    x0 = jnp.floor(x); y0 = jnp.floor(y)
    x1 = jnp.minimum(x0 + 1.0, W - 1.0)
    y1 = jnp.minimum(y0 + 1.0, H - 1.0)
    wx1 = x - x0; wx0 = 1.0 - wx1
    wy1 = y - y0; wy0 = 1.0 - wy1

    def oh(yy, xx):
        return jax.nn.one_hot((yy * W + xx).astype(jnp.int32), HW, dtype=feat.dtype)

    M = (oh(y0, x0) * (wy0 * wx0)[..., None] + oh(y0, x1) * (wy0 * wx1)[..., None]
         + oh(y1, x0) * (wy1 * wx0)[..., None] + oh(y1, x1) * (wy1 * wx1)[..., None])
    M = M.reshape(B, HW, HW)
    out = jnp.einsum("bij,bjc->bic", M, feat.reshape(B, HW, C))
    return out.reshape(B, H, W, C)


# ----------------------------------------------------------------------------
# Parameter construction: deterministic synthetic weights; eval-mode BN folded;
# all convs folded into banded / block-diagonal lane-folded matmul weights (bf16).
# ----------------------------------------------------------------------------
def _banded_from_conv3x3(e, W, C_in, C_out):
    """e: (3,3,Cin,Cout) 3x3 conv weight -> (3, (W+2)*Cin, W*Cout) banded matrices."""
    out = np.zeros((3, (W + 2) * C_in, W * C_out), np.float32)
    for ky in range(3):
        for kx in range(3):
            for w in range(W):
                out[ky, (w + kx) * C_in:(w + kx + 1) * C_in,
                    w * C_out:(w + 1) * C_out] = e[ky, kx]
    return out


def _blockdiag(w, W):
    """w: (Cin, Cout) -> (W*Cin, W*Cout) block-diagonal (1x1 conv in folded layout)."""
    Cin, Cout = w.shape
    out = np.zeros((W * Cin, W * Cout), np.float32)
    for i in range(W):
        out[i * Cin:(i + 1) * Cin, i * Cout:(i + 1) * Cout] = w
    return out


def init_params(C, H, W, reduction=4, num_anchors=9, seed=42):
    rng = np.random.default_rng(seed)
    hid = C // reduction                        # DeformableAlign / fusion hidden
    hb = max(C // (reduction * 2), 16)          # EfficientBoundaryAttention hidden
    g_bd = min(C, 8)
    WC, Whb, Whid, W4 = W * C, W * hb, W * hid, W * 4
    bn_s = (1.0 + 1e-5) ** -0.5                 # eval BN: gamma=1, beta=0, mu=0, var=1

    def rnd(*shape, scale=0.1):
        return rng.standard_normal(shape).astype(np.float32) * scale

    p = {}

    # --- DeformableAlign: offset head (Pallas) ---
    off_dw, off_dw_b = rnd(9, 2 * C), rnd(2 * C)        # depthwise 3x3 over 2C channels
    off_w1, off_b1 = rnd(2 * C, hid), rnd(hid)          # 1x1: 2C -> hid
    off_w2, off_b2 = rnd(hid, 18), rnd(18)              # 1x1: hid -> 18 (9 anchors x 2)
    # fold "mean over 4 anchors x 0.1" into the last 1x1 (cols: rgb_x, rgb_y, tir_x, tir_y)
    R = np.zeros((18, 4), np.float32)
    for i in range(4):
        R[2 * i, 0] = 0.025
        R[2 * i + 1, 1] = 0.025
        R[8 + 2 * i, 2] = 0.025
        R[8 + 2 * i + 1, 3] = 0.025
    w2e, b2e = off_w2 @ R, off_b2 @ R
    e_r = np.zeros((3, 3, C, hid), np.float32)
    e_t = np.zeros((3, 3, C, hid), np.float32)
    for ky in range(3):
        for kx in range(3):
            k = ky * 3 + kx
            e_r[ky, kx] = off_dw[k, :C, None] * off_w1[:C]
            e_t[ky, kx] = off_dw[k, C:, None] * off_w1[C:]
    oband = np.zeros((6, (W + 2) * C, Whid), np.float32)
    oband[0::2] = _banded_from_conv3x3(e_r, W, C, hid)
    oband[1::2] = _banded_from_conv3x3(e_t, W, C, hid)
    p["oband"] = jnp.asarray(oband, jnp.bfloat16)
    p["obd"] = jnp.asarray(_blockdiag(w2e, W), jnp.bfloat16)
    obias = np.zeros((2, max(Whid, W4)), np.float32)
    obias[0, :Whid] = np.tile(off_dw_b @ off_w1 + off_b1, W)
    obias[1, :W4] = np.tile(b2e, W)
    p["obias"] = jnp.asarray(obias)

    # --- DeformableAlign: modulation MLP (XLA, pooled) ---
    mod_w1 = rnd(2 * C, hid)
    p["mod_w1r"], p["mod_w1t"] = jnp.asarray(mod_w1[:C]), jnp.asarray(mod_w1[C:])
    p["mod_b1"] = jnp.asarray(rnd(hid))
    p["mod_w2"], p["mod_b2"] = jnp.asarray(rnd(hid, C)), jnp.asarray(rnd(C))

    # --- EfficientBoundaryAttention ---
    det_w, det_b = rnd(hb, C // g_bd, 3, 3), rnd(hb)    # grouped 3x3 (BN folded below)
    det3 = np.zeros((3, 3, C, hb), np.float32)
    cin_g, cout_g = C // g_bd, hb // g_bd
    for co in range(hb):
        gi = co // cout_g
        det3[:, :, gi * cin_g:(gi + 1) * cin_g, co] = np.transpose(det_w[co], (1, 2, 0))
    dband = _banded_from_conv3x3(det3 * bn_s, W, C, hb)
    det_w2, det_b2 = rnd(hb, 1), rnd(1)
    p["att_w1"], p["att_b1"] = jnp.asarray(rnd(C, hb)), jnp.asarray(rnd(hb))
    p["att_w2"], p["att_b2"] = jnp.asarray(rnd(hb, C)), jnp.asarray(rnd(C))

    # --- ComplementaryFusion ---
    an_w1 = rnd(2 * C, hid)
    p["an_w1r"], p["an_w1t"] = jnp.asarray(an_w1[:C]), jnp.asarray(an_w1[C:])
    p["an_b1"] = jnp.asarray(rnd(hid))
    p["an_w2"], p["an_b2"] = jnp.asarray(rnd(hid, 2)), jnp.asarray(rnd(2))
    enh_dw, enh_dw_b = rnd(9, C), rnd(C)                # depthwise 3x3
    enh_pw, enh_pw_b = rnd(C, C), rnd(C)                # 1x1 (BN folded below)
    e_enh = np.zeros((3, 3, C, C), np.float32)
    for ky in range(3):
        for kx in range(3):
            e_enh[ky, kx] = enh_dw[ky * 3 + kx, :, None] * (enh_pw * bn_s)
    eband = _banded_from_conv3x3(e_enh, W, C, C)
    enh_b_eff = (enh_dw_b @ enh_pw + enh_pw_b) * bn_s
    # merged banded weight: [feature enhancer | boundary detector]
    p["band"] = jnp.asarray(np.concatenate([eband, dband], axis=2), jnp.bfloat16)

    # --- ABAM head: output_adjust, confidence (adjust folded into layer 1) ---
    adj_w, adj_b = rnd(C, C), rnd(C)
    cf_w1, cf_b1 = rnd(C, hid), rnd(hid)
    cf_w2, cf_b2 = rnd(hid, 1), rnd(1)
    cf1_eff = adj_w @ cf_w1
    cf1_b_eff = adj_b @ cf_w1 + cf_b1
    kbd = max(WC, Whb)
    bd = np.zeros((2, kbd, WC + Whid), np.float32)
    bd[0, :WC, :WC] = _blockdiag(adj_w, W)
    bd[0, :WC, WC:WC + Whid] = _blockdiag(cf1_eff, W)
    det2C = np.zeros((Whb, WC), np.float32)             # channel-broadcast boundary map
    det2 = np.zeros((Whb, W), np.float32)               # per-pixel boundary map
    for w in range(W):
        det2C[w * hb:(w + 1) * hb, w * C:(w + 1) * C] = det_w2 @ np.ones((1, C), np.float32)
        det2[w * hb:(w + 1) * hb, w] = det_w2[:, 0]
    bd[1, :Whb, :WC] = det2C
    bd[1, :Whb, WC:WC + W] = det2
    p["bd"] = jnp.asarray(bd, jnp.bfloat16)

    small = np.zeros((WC, 2 * W), np.float32)           # [P_aq | cf2 block-diag]
    for w in range(W):
        small[w * C:(w + 1) * C, w] = 1.0 / C
    small[:Whid, W:2 * W] = _blockdiag(cf_w2, W)
    p["small"] = jnp.asarray(small, jnp.bfloat16)

    bw = max(WC + Whid, Whb, WC + W)
    biases = np.zeros((5, bw), np.float32)
    biases[0, :WC] = np.tile(enh_b_eff, W)
    biases[1, :Whb] = np.tile(det_b * bn_s, W)
    biases[2, :WC] = np.tile(adj_b, W)
    biases[2, WC:WC + Whid] = np.tile(cf1_b_eff, W)
    biases[3, :WC + W] = det_b2[0]
    biases[4, :W] = cf_b2[0]
    p["biases"] = jnp.asarray(biases)

    # --- anchor regressor (XLA, pooled) ---
    p["ar_w1"], p["ar_b1"] = jnp.asarray(rnd(C, hid)), jnp.asarray(rnd(hid))
    p["ar_w2"], p["ar_b2"] = (jnp.asarray(rnd(hid, num_anchors * 2)),
                              jnp.asarray(rnd(num_anchors * 2)))
    return p


# ----------------------------------------------------------------------------
# ABAM forward (NCHW in / NCHW out; lane-folded NHWC inside the kernels)
# ----------------------------------------------------------------------------
def abam_forward(params, rgb, tir, *, num_anchors=9, align_thres=0.6, fw=0.5,
                 reduction=4):
    B, C, H, W = rgb.shape
    hid = C // reduction
    hb = max(C // (reduction * 2), 16)
    p = params
    rgb_n = jnp.transpose(rgb, (0, 2, 3, 1))
    tir_n = jnp.transpose(tir, (0, 2, 3, 1))

    def pad_fold(x):                         # (B,H,W,C) -> (B, H+2, (W+2)*C), zero halo
        xp = jnp.pad(x, ((0, 0), (1, 1), (1, 1), (0, 0)))
        return xp.reshape(B, H + 2, (W + 2) * C)

    # ---------------- DeformableAlign ----------------
    off4 = offset_head(pad_fold(rgb_n), pad_fold(tir_n),
                       p, H, W, C, hid).reshape(B, H, W, 4)
    # modulation (global-avg-pool MLP, XLA)
    mr = jnp.mean(rgb_n, axis=(1, 2))
    mt = jnp.mean(tir_n, axis=(1, 2))
    mod = jax.nn.sigmoid(
        jax.nn.relu(mr @ p["mod_w1r"] + mt @ p["mod_w1t"] + p["mod_b1"])
        @ p["mod_w2"] + p["mod_b2"])                                  # (B, C)

    gy = jnp.linspace(-1.0, 1.0, H)
    gx = jnp.linspace(-1.0, 1.0, W)
    gh, gw = jnp.meshgrid(gy, gx, indexing="ij")
    base = jnp.stack([gw, gh], axis=-1)[None]                         # (1,H,W,2) [x,y]
    mod_b = mod[:, None, None, :]
    rgb_al = grid_sample_border(rgb_n, base + off4[..., 0:2]) * mod_b
    tir_al = grid_sample_border(tir_n, base + off4[..., 2:4]) * mod_b
    fused_temp = 0.5 * (rgb_al + tir_al)

    # ---------------- boundary attention: 8x8 pooled MLP (XLA) + upsample ----------------
    att_in = adaptive_avg_pool(fused_temp, 8).reshape(B * 64, C)
    att = jax.nn.sigmoid(
        jax.nn.relu(att_in @ p["att_w1"] + p["att_b1"]) @ p["att_w2"] + p["att_b2"])
    att_up = bilinear_resize(att.reshape(B, 8, 8, C), H, W)

    # ---------------- complementary analyzer: GAP MLP + softmax (XLA) ----------------
    pr = jnp.mean(rgb_al, axis=(1, 2))
    pt = jnp.mean(tir_al, axis=(1, 2))
    fusion_w = jax.nn.softmax(
        jax.nn.relu(pr @ p["an_w1r"] + pt @ p["an_w1t"] + p["an_b1"])
        @ p["an_w2"] + p["an_b2"], axis=-1)                           # (B, 2)

    # ---------------- fused tail kernel ----------------
    enh_f, maps_f = fused_combine(pad_fold(rgb_al), pad_fold(tir_al),
                                  att_up.reshape(B, H, W * C),
                                  fusion_w.reshape(B, 1, 2),
                                  p, H, W, C, hb, hid, fw)
    enhanced = enh_f.reshape(B, H, W, C)
    bmap = maps_f[:, :, 0:W]
    aq = maps_f[:, :, W:2 * W]
    conf = maps_f[:, :, 2 * W:3 * W]

    # ---------------- anchor regressor: 4x4 pooled MLP (XLA) + upsample ----------------
    ar_in = adaptive_avg_pool(enhanced, 4).reshape(B * 16, C)
    anchor = jax.nn.relu(ar_in @ p["ar_w1"] + p["ar_b1"]) @ p["ar_w2"] + p["ar_b2"]
    anchor_up = bilinear_resize(anchor.reshape(B, 4, 4, num_anchors * 2), H, W)
    anchor_off = jnp.transpose(anchor_up, (0, 3, 1, 2)).reshape(B, num_anchors, 2, H, W)

    # ---------------- NCHW outputs + info dict ----------------
    enhanced_nchw = jnp.transpose(enhanced, (0, 3, 1, 2))
    conf_nchw = conf[:, None]
    aq_nchw = aq[:, None]
    bmap_nchw = bmap[:, None]
    weights_exp = jnp.broadcast_to(fusion_w[:, :, None, None], (B, 2, H, W))
    mask = (conf_nchw > align_thres).astype(jnp.float32)

    info = {
        "rgb_weight": weights_exp[:, 0:1],
        "tir_weight": weights_exp[:, 1:2],
        "alignment_quality": aq_nchw,
        "boundary_map": bmap_nchw,
        "confidence": conf_nchw,
        "offsets": anchor_off,
        "confidences": jnp.broadcast_to(conf_nchw[:, :, None], (B, num_anchors, 2, H, W)),
        "alignment_mask": mask,
        "alignment_ratio": jnp.mean(mask),
        "overall_alignment_score": jnp.mean(aq_nchw),
        "fusion_balance": jnp.std(weights_exp, ddof=1),
    }
    return enhanced_nchw, info


if __name__ == "__main__":
    B, C, H, W = 2, 16, 16, 16
    key = jax.random.PRNGKey(0)
    k1, k2 = jax.random.split(key)
    rgb = jax.random.normal(k1, (B, C, H, W), jnp.float32)
    tir = jax.random.normal(k2, (B, C, H, W), jnp.float32)

    params = init_params(C, H, W, reduction=4, num_anchors=9, seed=42)

    fwd = jax.jit(functools.partial(abam_forward, num_anchors=9,
                                    align_thres=0.6, fw=0.5, reduction=4))
    enhanced, info = fwd(params, rgb, tir)
    enhanced = jax.block_until_ready(enhanced)
    jax.tree_util.tree_map(jax.block_until_ready, info)

    assert enhanced.shape == (B, C, H, W)
    assert info["offsets"].shape == (B, 9, 2, H, W)
    assert info["confidences"].shape == (B, 9, 2, H, W)
    assert info["alignment_quality"].shape == (B, 1, H, W)
    assert info["boundary_map"].shape == (B, 1, H, W)
    assert info["confidence"].shape == (B, 1, H, W)
    print("KERNEL_OK")
</pallas_src>

<mosaic_0001>
module attributes {stable_mosaic.version = 11 : i64} {
  func.func @kernel(%arg0: i32, %arg1: memref<1x18x288xf32, #tpu.memory_space<vmem>>, %arg2: memref<1x18x288xf32, #tpu.memory_space<vmem>>, %arg3: memref<6x288x64xbf16, #tpu.memory_space<vmem>>, %arg4: memref<64x64xbf16, #tpu.memory_space<vmem>>, %arg5: memref<2x64xf32, #tpu.memory_space<vmem>>, %arg6: memref<1x16x64xf32, #tpu.memory_space<vmem>>) attributes {dimension_semantics = [#tpu.dimension_semantics<parallel>], iteration_bounds = array<i64: 2>, scalar_prefetch = 0 : i64, scratch_operands = 0 : i64, tpu.core_type = #tpu.core_type<tc>, window_params = [{transform_indices = @transform_0, window_bounds = array<i64: 1, 18, 288>}, {transform_indices = @transform_1, window_bounds = array<i64: 1, 18, 288>}, {pipeline_mode = #tpu.pipeline_mode<synchronous>, transform_indices = @transform_2, window_bounds = array<i64: 6, 288, 64>}, {pipeline_mode = #tpu.pipeline_mode<synchronous>, transform_indices = @transform_3, window_bounds = array<i64: 64, 64>}, {pipeline_mode = #tpu.pipeline_mode<synchronous>, transform_indices = @transform_4, window_bounds = array<i64: 2, 64>}, {transform_indices = @transform_5, window_bounds = array<i64: 1, 16, 64>}]} {
    %c0 = arith.constant 0 : index
    %c0_0 = arith.constant 0 : index
    %c0_1 = arith.constant 0 : index
    %0 = vector.load %arg1[%c0, %c0_0, %c0_1] : memref<1x18x288xf32, #tpu.memory_space<vmem>>, vector<1x18x288xf32>
    %1 = vector.shape_cast %0 : vector<1x18x288xf32> to vector<18x288xf32>
    %2 = arith.truncf %1 : vector<18x288xf32> to vector<18x288xbf16>
    %c0_2 = arith.constant 0 : index
    %c0_3 = arith.constant 0 : index
    %c0_4 = arith.constant 0 : index
    %3 = vector.load %arg2[%c0_2, %c0_3, %c0_4] : memref<1x18x288xf32, #tpu.memory_space<vmem>>, vector<1x18x288xf32>
    %4 = vector.shape_cast %3 : vector<1x18x288xf32> to vector<18x288xf32>
    %5 = arith.truncf %4 : vector<18x288xf32> to vector<18x288xbf16>
    %6 = vector.extract_strided_slice %2 {offsets = [0, 0], sizes = [16, 288], strides = [1, 1]} : vector<18x288xbf16> to vector<16x288xbf16>
    %c0_5 = arith.constant 0 : index
    %c0_6 = arith.constant 0 : index
    %c0_7 = arith.constant 0 : index
    %7 = vector.load %arg3[%c0_5, %c0_6, %c0_7] : memref<6x288x64xbf16, #tpu.memory_space<vmem>>, vector<1x288x64xbf16>
    %8 = vector.shape_cast %7 : vector<1x288x64xbf16> to vector<288x64xbf16>
    %cst = arith.constant dense<0.000000e+00> : vector<16x64xf32>
    %9 = tpu.matmul %6, %8, %cst {dimension_numbers = #tpu.dot_dimension_numbers<[1], [0], [0], [1], [0, 0, 1, 1], [], []>} : vector<16x288xbf16>, vector<288x64xbf16>, vector<16x64xf32> -> vector<16x64xf32>
    %10 = vector.extract_strided_slice %5 {offsets = [0, 0], sizes = [16, 288], strides = [1, 1]} : vector<18x288xbf16> to vector<16x288xbf16>
    %c1 = arith.constant 1 : index
    %c0_8 = arith.constant 0 : index
    %c0_9 = arith.constant 0 : index
    %11 = vector.load %arg3[%c1, %c0_8, %c0_9] : memref<6x288x64xbf16, #tpu.memory_space<vmem>>, vector<1x288x64xbf16>
    %12 = vector.shape_cast %11 : vector<1x288x64xbf16> to vector<288x64xbf16>
    %cst_10 = arith.constant dense<0.000000e+00> : vector<16x64xf32>
    %13 = tpu.matmul %10, %12, %cst_10 {dimension_numbers = #tpu.dot_dimension_numbers<[1], [0], [0], [1], [0, 0, 1, 1], [], []>} : vector<16x288xbf16>, vector<288x64xbf16>, vector<16x64xf32> -> vector<16x64xf32>
    %14 = arith.addf %9, %13 : vector<16x64xf32>
    %15 = vector.extract_strided_slice %2 {offsets = [1, 0], sizes = [16, 288], strides = [1, 1]} : vector<18x288xbf16> to vector<16x288xbf16>
    %c2 = arith.constant 2 : index
    %c0_11 = arith.constant 0 : index
    %c0_12 = arith.constant 0 : index
    %16 = vector.load %arg3[%c2, %c0_11, %c0_12] : memref<6x288x64xbf16, #tpu.memory_space<vmem>>, vector<1x288x64xbf16>
    %17 = vector.shape_cast %16 : vector<1x288x64xbf16> to vector<288x64xbf16>
    %cst_13 = arith.constant dense<0.000000e+00> : vector<16x64xf32>
    %18 = tpu.matmul %15, %17, %cst_13 {dimension_numbers = #tpu.dot_dimension_numbers<[1], [0], [0], [1], [0, 0, 1, 1], [], []>} : vector<16x288xbf16>, vector<288x64xbf16>, vector<16x64xf32> -> vector<16x64xf32>
    %19 = vector.extract_strided_slice %5 {offsets = [1, 0], sizes = [16, 288], strides = [1, 1]} : vector<18x288xbf16> to vector<16x288xbf16>
    %c3 = arith.constant 3 : index
    %c0_14 = arith.constant 0 : index
    %c0_15 = arith.constant 0 : index
    %20 = vector.load %arg3[%c3, %c0_14, %c0_15] : memref<6x288x64xbf16, #tpu.memory_space<vmem>>, vector<1x288x64xbf16>
    %21 = vector.shape_cast %20 : vector<1x288x64xbf16> to vector<288x64xbf16>
    %cst_16 = arith.constant dense<0.000000e+00> : vector<16x64xf32>
    %22 = tpu.matmul %19, %21, %cst_16 {dimension_numbers = #tpu.dot_dimension_numbers<[1], [0], [0], [1], [0, 0, 1, 1], [], []>} : vector<16x288xbf16>, vector<288x64xbf16>, vector<16x64xf32> -> vector<16x64xf32>
    %23 = arith.addf %14, %18 : vector<16x64xf32>
    %24 = arith.addf %23, %22 : vector<16x64xf32>
    %25 = vector.extract_strided_slice %2 {offsets = [2, 0], sizes = [16, 288], strides = [1, 1]} : vector<18x288xbf16> to vector<16x288xbf16>
    %c4 = arith.constant 4 : index
    %c0_17 = arith.constant 0 : index
    %c0_18 = arith.constant 0 : index
    %26 = vector.load %arg3[%c4, %c0_17, %c0_18] : memref<6x288x64xbf16, #tpu.memory_space<vmem>>, vector<1x288x64xbf16>
    %27 = vector.shape_cast %26 : vector<1x288x64xbf16> to vector<288x64xbf16>
    %cst_19 = arith.constant dense<0.000000e+00> : vector<16x64xf32>
    %28 = tpu.matmul %25, %27, %cst_19 {dimension_numbers = #tpu.dot_dimension_numbers<[1], [0], [0], [1], [0, 0, 1, 1], [], []>} : vector<16x288xbf16>, vector<288x64xbf16>, vector<16x64xf32> -> vector<16x64xf32>
    %29 = vector.extract_strided_slice %5 {offsets = [2, 0], sizes = [16, 288], strides = [1, 1]} : vector<18x288xbf16> to vector<16x288xbf16>
    %c5 = arith.constant 5 : index
    %c0_20 = arith.constant 0 : index
    %c0_21 = arith.constant 0 : index
    %30 = vector.load %arg3[%c5, %c0_20, %c0_21] : memref<6x288x64xbf16, #tpu.memory_space<vmem>>, vector<1x288x64xbf16>
    %31 = vector.shape_cast %30 : vector<1x288x64xbf16> to vector<288x64xbf16>
    %cst_22 = arith.constant dense<0.000000e+00> : vector<16x64xf32>
    %32 = tpu.matmul %29, %31, %cst_22 {dimension_numbers = #tpu.dot_dimension_numbers<[1], [0], [0], [1], [0, 0, 1, 1], [], []>} : vector<16x288xbf16>, vector<288x64xbf16>, vector<16x64xf32> -> vector<16x64xf32>
    %33 = arith.addf %24, %28 : vector<16x64xf32>
    %34 = arith.addf %33, %32 : vector<16x64xf32>
    %c0_23 = arith.constant 0 : index
    %c0_24 = arith.constant 0 : index
    %35 = vector.load %arg5[%c0_23, %c0_24] : memref<2x64xf32, #tpu.memory_space<vmem>>, vector<1x64xf32>
    %36 = vector.broadcast %35 : vector<1x64xf32> to vector<16x64xf32>
    %37 = arith.addf %34, %36 : vector<16x64xf32>
    %cst_25 = arith.constant 0.000000e+00 : f32
    %38 = vector.broadcast %cst_25 : f32 to vector<16x64xf32>
    %39 = arith.maximumf %37, %38 : vector<16x64xf32>
    %40 = arith.truncf %39 : vector<16x64xf32> to vector<16x64xbf16>
    %c0_26 = arith.constant 0 : index
    %c0_27 = arith.constant 0 : index
    %41 = vector.load %arg4[%c0_26, %c0_27] : memref<64x64xbf16, #tpu.memory_space<vmem>>, vector<64x64xbf16>
    %cst_28 = arith.constant dense<0.000000e+00> : vector<16x64xf32>
    %42 = tpu.matmul %40, %41, %cst_28 {dimension_numbers = #tpu.dot_dimension_numbers<[1], [0], [0], [1], [0, 0, 1, 1], [], []>} : vector<16x64xbf16>, vector<64x64xbf16>, vector<16x64xf32> -> vector<16x64xf32>
    %c1_29 = arith.constant 1 : index
    %c0_30 = arith.constant 0 : index
    %43 = vector.load %arg5[%c1_29, %c0_30] : memref<2x64xf32, #tpu.memory_space<vmem>>, vector<1x64xf32>
    %44 = vector.broadcast %43 : vector<1x64xf32> to vector<16x64xf32>
    %45 = arith.addf %42, %44 : vector<16x64xf32>
    %c0_31 = arith.constant 0 : index
    %c0_32 = arith.constant 0 : index
    %c0_33 = arith.constant 0 : index
    %46 = vector.load %arg6[%c0_31, %c0_32, %c0_33] : memref<1x16x64xf32, #tpu.memory_space<vmem>>, vector<1x16x64xf32>
    %47 = vector.shape_cast %46 : vector<1x16x64xf32> to vector<16x64xf32>
    %48 = vector.shape_cast %45 : vector<16x64xf32> to vector<1x16x64xf32>
    tpu.vector_store %arg6[%c0_31, %c0_32, %c0_33], %48 {strides = array<i32>} : memref<1x16x64xf32, #tpu.memory_space<vmem>>, vector<1x16x64xf32>,
    return
  }
  func.func @transform_0(%arg0: i32) -> (i32, i32, i32) {
    %c0_i32 = arith.constant 0 : i32
    %c0_i32_0 = arith.constant 0 : i32
    %c0_i32_1 = arith.constant 0 : i32
    return %arg0, %c0_i32, %c0_i32_0 : i32, i32, i32
  }
  func.func @transform_1(%arg0: i32) -> (i32, i32, i32) {
    %c0_i32 = arith.constant 0 : i32
    %c0_i32_0 = arith.constant 0 : i32
    %c0_i32_1 = arith.constant 0 : i32
    return %arg0, %c0_i32, %c0_i32_0 : i32, i32, i32
  }
  func.func @transform_2(%arg0: i32) -> (i32, i32, i32) {
    %c0_i32 = arith.constant 0 : i32
    %c0_i32_0 = arith.constant 0 : i32
    %c0_i32_1 = arith.constant 0 : i32
    %c0_i32_2 = arith.constant 0 : i32
    return %c0_i32, %c0_i32_0, %c0_i32_1 : i32, i32, i32
  }
  func.func @transform_3(%arg0: i32) -> (i32, i32) {
    %c0_i32 = arith.constant 0 : i32
    %c0_i32_0 = arith.constant 0 : i32
    %c0_i32_1 = arith.constant 0 : i32
    return %c0_i32, %c0_i32_0 : i32, i32
  }
  func.func @transform_4(%arg0: i32) -> (i32, i32) {
    %c0_i32 = arith.constant 0 : i32
    %c0_i32_0 = arith.constant 0 : i32
    %c0_i32_1 = arith.constant 0 : i32
    return %c0_i32, %c0_i32_0 : i32, i32
  }
  func.func @transform_5(%arg0: i32) -> (i32, i32, i32) {
    %c0_i32 = arith.constant 0 : i32
    %c0_i32_0 = arith.constant 0 : i32
    %c0_i32_1 = arith.constant 0 : i32
    return %arg0, %c0_i32, %c0_i32_0 : i32, i32, i32
  }
}

module attributes {stable_mosaic.version = 11 : i64} {
  func.func @kernel(%arg0: i32, %arg1: memref<1x18x288xf32, #tpu.memory_space<vmem>>, %arg2: memref<1x18x288xf32, #tpu.memory_space<vmem>>, %arg3: memref<1x16x256xf32, #tpu.memory_space<vmem>>, %arg4: memref<1x1x2xf32, #tpu.memory_space<vmem>>, %arg5: memref<3x288x512xbf16, #tpu.memory_space<vmem>>, %arg6: memref<2x256x320xbf16, #tpu.memory_space<vmem>>, %arg7: memref<256x32xbf16, #tpu.memory_space<vmem>>, %arg8: memref<5x320xf32, #tpu.memory_space<vmem>>, %arg9: memref<1x16x256xf32, #tpu.memory_space<vmem>>, %arg10: memref<1x16x48xf32, #tpu.memory_space<vmem>>) attributes {dimension_semantics = [#tpu.dimension_semantics<parallel>], iteration_bounds = array<i64: 2>, scalar_prefetch = 0 : i64, scratch_operands = 0 : i64, tpu.core_type = #tpu.core_type<tc>, window_params = [{transform_indices = @transform_0, window_bounds = array<i64: 1, 18, 288>}, {transform_indices = @transform_1, window_bounds = array<i64: 1, 18, 288>}, {transform_indices = @transform_2, window_bounds = array<i64: 1, 16, 256>}, {transform_indices = @transform_3, window_bounds = array<i64: 1, 1, 2>}, {pipeline_mode = #tpu.pipeline_mode<synchronous>, transform_indices = @transform_4, window_bounds = array<i64: 3, 288, 512>}, {pipeline_mode = #tpu.pipeline_mode<synchronous>, transform_indices = @transform_5, window_bounds = array<i64: 2, 256, 320>}, {pipeline_mode = #tpu.pipeline_mode<synchronous>, transform_indices = @transform_6, window_bounds = array<i64: 256, 32>}, {pipeline_mode = #tpu.pipeline_mode<synchronous>, transform_indices = @transform_7, window_bounds = array<i64: 5, 320>}, {transform_indices = @transform_8, window_bounds = array<i64: 1, 16, 256>}, {transform_indices = @transform_9, window_bounds = array<i64: 1, 16, 48>}]} {
    %c0 = arith.constant 0 : index
    %c0_0 = arith.constant 0 : index
    %c0_1 = arith.constant 0 : index
    %0 = vector.load %arg1[%c0, %c0_0, %c0_1] : memref<1x18x288xf32, #tpu.memory_space<vmem>>, vector<1x18x288xf32>
    %1 = vector.shape_cast %0 : vector<1x18x288xf32> to vector<18x288xf32>
    %c0_2 = arith.constant 0 : index
    %c0_3 = arith.constant 0 : index
    %c0_4 = arith.constant 0 : index
    %2 = vector.load %arg2[%c0_2, %c0_3, %c0_4] : memref<1x18x288xf32, #tpu.memory_space<vmem>>, vector<1x18x288xf32>
    %3 = vector.shape_cast %2 : vector<1x18x288xf32> to vector<18x288xf32>
    %4 = arith.truncf %1 : vector<18x288xf32> to vector<18x288xbf16>
    %5 = arith.truncf %3 : vector<18x288xf32> to vector<18x288xbf16>
    %c0_5 = arith.constant 0 : index
    %c0_6 = arith.constant 0 : index
    %c0_7 = arith.constant 0 : index
    %6 = vector.load %arg5[%c0_5, %c0_6, %c0_7] : memref<3x288x512xbf16, #tpu.memory_space<vmem>>, vector<1x288x512xbf16>
    %7 = vector.shape_cast %6 : vector<1x288x512xbf16> to vector<288x512xbf16>
    %8 = vector.extract_strided_slice %4 {offsets = [0, 0], sizes = [16, 288], strides = [1, 1]} : vector<18x288xbf16> to vector<16x288xbf16>
    %cst = arith.constant dense<0.000000e+00> : vector<16x512xf32>
    %9 = tpu.matmul %8, %7, %cst {dimension_numbers = #tpu.dot_dimension_numbers<[1], [0], [0], [1], [0, 0, 1, 1], [], []>} : vector<16x288xbf16>, vector<288x512xbf16>, vector<16x512xf32> -> vector<16x512xf32>
    %10 = vector.extract_strided_slice %5 {offsets = [0, 0], sizes = [16, 288], strides = [1, 1]} : vector<18x288xbf16> to vector<16x288xbf16>
    %cst_8 = arith.constant dense<0.000000e+00> : vector<16x512xf32>
    %11 = tpu.matmul %10, %7, %cst_8 {dimension_numbers = #tpu.dot_dimension_numbers<[1], [0], [0], [1], [0, 0, 1, 1], [], []>} : vector<16x288xbf16>, vector<288x512xbf16>, vector<16x512xf32> -> vector<16x512xf32>
    %c1 = arith.constant 1 : index
    %c0_9 = arith.constant 0 : index
    %c0_10 = arith.constant 0 : index
    %12 = vector.load %arg5[%c1, %c0_9, %c0_10] : memref<3x288x512xbf16, #tpu.memory_space<vmem>>, vector<1x288x512xbf16>
    %13 = vector.shape_cast %12 : vector<1x288x512xbf16> to vector<288x512xbf16>
    %14 = vector.extract_strided_slice %4 {offsets = [1, 0], sizes = [16, 288], strides = [1, 1]} : vector<18x288xbf16> to vector<16x288xbf16>
    %cst_11 = arith.constant dense<0.000000e+00> : vector<16x512xf32>
    %15 = tpu.matmul %14, %13, %cst_11 {dimension_numbers = #tpu.dot_dimension_numbers<[1], [0], [0], [1], [0, 0, 1, 1], [], []>} : vector<16x288xbf16>, vector<288x512xbf16>, vector<16x512xf32> -> vector<16x512xf32>
    %16 = vector.extract_strided_slice %5 {offsets = [1, 0], sizes = [16, 288], strides = [1, 1]} : vector<18x288xbf16> to vector<16x288xbf16>
    %cst_12 = arith.constant dense<0.000000e+00> : vector<16x512xf32>
    %17 = tpu.matmul %16, %13, %cst_12 {dimension_numbers = #tpu.dot_dimension_numbers<[1], [0], [0], [1], [0, 0, 1, 1], [], []>} : vector<16x288xbf16>, vector<288x512xbf16>, vector<16x512xf32> -> vector<16x512xf32>
    %18 = arith.addf %9, %15 : vector<16x512xf32>
    %19 = arith.addf %11, %17 : vector<16x512xf32>
    %c2 = arith.constant 2 : index
    %c0_13 = arith.constant 0 : index
    %c0_14 = arith.constant 0 : index
    %20 = vector.load %arg5[%c2, %c0_13, %c0_14] : memref<3x288x512xbf16, #tpu.memory_space<vmem>>, vector<1x288x512xbf16>
    %21 = vector.shape_cast %20 : vector<1x288x512xbf16> to vector<288x512xbf16>
    %22 = vector.extract_strided_slice %4 {offsets = [2, 0], sizes = [16, 288], strides = [1, 1]} : vector<18x288xbf16> to vector<16x288xbf16>
    %cst_15 = arith.constant dense<0.000000e+00> : vector<16x512xf32>
    %23 = tpu.matmul %22, %21, %cst_15 {dimension_numbers = #tpu.dot_dimension_numbers<[1], [0], [0], [1], [0, 0, 1, 1], [], []>} : vector<16x288xbf16>, vector<288x512xbf16>, vector<16x512xf32> -> vector<16x512xf32>
    %24 = vector.extract_strided_slice %5 {offsets = [2, 0], sizes = [16, 288], strides = [1, 1]} : vector<18x288xbf16> to vector<16x288xbf16>
    %cst_16 = arith.constant dense<0.000000e+00> : vector<16x512xf32>
    %25 = tpu.matmul %24, %21, %cst_16 {dimension_numbers = #tpu.dot_dimension_numbers<[1], [0], [0], [1], [0, 0, 1, 1], [], []>} : vector<16x288xbf16>, vector<288x512xbf16>, vector<16x512xf32> -> vector<16x512xf32>
    %26 = arith.addf %18, %23 : vector<16x512xf32>
    %27 = arith.addf %19, %25 : vector<16x512xf32>
    %c0_17 = arith.constant 0 : index
    %c0_18 = arith.constant 0 : index
    %28 = vector.load %arg8[%c0_17, %c0_18] : memref<5x320xf32, #tpu.memory_space<vmem>>, vector<1x256xf32>
    %29 = vector.extract_strided_slice %26 {offsets = [0, 0], sizes = [16, 256], strides = [1, 1]} : vector<16x512xf32> to vector<16x256xf32>
    %30 = vector.broadcast %28 : vector<1x256xf32> to vector<16x256xf32>
    %31 = arith.addf %29, %30 : vector<16x256xf32>
    %cst_19 = arith.constant 0.000000e+00 : f32
    %32 = vector.broadcast %cst_19 : f32 to vector<16x256xf32>
    %33 = arith.maximumf %31, %32 : vector<16x256xf32>
    %34 = vector.extract_strided_slice %27 {offsets = [0, 0], sizes = [16, 256], strides = [1, 1]} : vector<16x512xf32> to vector<16x256xf32>
    %35 = vector.broadcast %28 : vector<1x256xf32> to vector<16x256xf32>
    %36 = arith.addf %34, %35 : vector<16x256xf32>
    %cst_20 = arith.constant 0.000000e+00 : f32
    %37 = vector.broadcast %cst_20 : f32 to vector<16x256xf32>
    %38 = arith.maximumf %36, %37 : vector<16x256xf32>
    %39 = vector.extract_strided_slice %26 {offsets = [0, 256], sizes = [16, 256], strides = [1, 1]} : vector<16x512xf32> to vector<16x256xf32>
    %40 = vector.extract_strided_slice %27 {offsets = [0, 256], sizes = [16, 256], strides = [1, 1]} : vector<16x512xf32> to vector<16x256xf32>
    %41 = arith.addf %39, %40 : vector<16x256xf32>
    %cst_21 = arith.constant 5.000000e-01 : f32
    %42 = vector.broadcast %cst_21 : f32 to vector<16x256xf32>
    %43 = arith.mulf %42, %41 : vector<16x256xf32>
    %c1_22 = arith.constant 1 : index
    %c0_23 = arith.constant 0 : index
    %44 = vector.load %arg8[%c1_22, %c0_23] : memref<5x320xf32, #tpu.memory_space<vmem>>, vector<1x256xf32>
    %45 = vector.broadcast %44 : vector<1x256xf32> to vector<16x256xf32>
    %46 = arith.addf %43, %45 : vector<16x256xf32>
    %cst_24 = arith.constant 0.000000e+00 : f32
    %47 = vector.broadcast %cst_24 : f32 to vector<16x256xf32>
    %48 = arith.maximumf %46, %47 : vector<16x256xf32>
    %49 = arith.truncf %48 : vector<16x256xf32> to vector<16x256xbf16>
    %c1_25 = arith.constant 1 : index
    %c0_26 = arith.constant 0 : index
    %c0_27 = arith.constant 0 : index
    %50 = vector.load %arg6[%c1_25, %c0_26, %c0_27] : memref<2x256x320xbf16, #tpu.memory_space<vmem>>, vector<1x256x320xbf16>
    %51 = vector.shape_cast %50 : vector<1x256x320xbf16> to vector<256x320xbf16>
    %52 = vector.extract_strided_slice %51 {offsets = [0, 0], sizes = [256, 272], strides = [1, 1]} : vector<256x320xbf16> to vector<256x272xbf16>
    %cst_28 = arith.constant dense<0.000000e+00> : vector<16x272xf32>
    %53 = tpu.matmul %49, %52, %cst_28 {dimension_numbers = #tpu.dot_dimension_numbers<[1], [0], [0], [1], [0, 0, 1, 1], [], []>} : vector<16x256xbf16>, vector<256x272xbf16>, vector<16x272xf32> -> vector<16x272xf32>
    %c3 = arith.constant 3 : index
    %c0_29 = arith.constant 0 : index
    %54 = vector.load %arg8[%c3, %c0_29] : memref<5x320xf32, #tpu.memory_space<vmem>>, vector<1x272xf32>
    %55 = vector.broadcast %54 : vector<1x272xf32> to vector<16x272xf32>
    %56 = arith.addf %53, %55 : vector<16x272xf32>
    %57 = arith.negf %56 : vector<16x272xf32>
    %58 = math.exp %57 : vector<16x272xf32>
    %cst_30 = arith.constant 1.000000e+00 : f32
    %59 = vector.broadcast %cst_30 : f32 to vector<16x272xf32>
    %60 = arith.addf %59, %58 : vector<16x272xf32>
    %61 = arith.divf %59, %60 : vector<16x272xf32>
    %62 = vector.extract_strided_slice %61 {offsets = [0, 0], sizes = [16, 256], strides = [1, 1]} : vector<16x272xf32> to vector<16x256xf32>
    %63 = vector.extract_strided_slice %61 {offsets = [0, 256], sizes = [16, 16], strides = [1, 1]} : vector<16x272xf32> to vector<16x16xf32>
    %64 = vector.extract_strided_slice %1 {offsets = [1, 16], sizes = [16, 256], strides = [1, 1]} : vector<18x288xf32> to vector<16x256xf32>
    %65 = vector.extract_strided_slice %3 {offsets = [1, 16], sizes = [16, 256], strides = [1, 1]} : vector<18x288xf32> to vector<16x256xf32>
    %66 = arith.addf %64, %65 : vector<16x256xf32>
    %cst_31 = arith.constant 5.000000e-01 : f32
    %67 = vector.broadcast %cst_31 : f32 to vector<16x256xf32>
    %68 = arith.mulf %67, %66 : vector<16x256xf32>
    %c0_32 = arith.constant 0 : index
    %c0_33 = arith.constant 0 : index
    %c0_34 = arith.constant 0 : index
    %69 = vector.load %arg4[%c0_32, %c0_33, %c0_34] : memref<1x1x2xf32, #tpu.memory_space<vmem>>, vector<1x1x2xf32>
    %70 = vector.shape_cast %69 : vector<1x1x2xf32> to vector<1x2xf32>
    %c0_35 = arith.constant 0 : index
    %c0_36 = arith.constant 0 : index
    %c0_37 = arith.constant 0 : index
    %71 = vector.load %arg3[%c0_35, %c0_36, %c0_37] : memref<1x16x256xf32, #tpu.memory_space<vmem>>, vector<1x16x256xf32>
    %72 = vector.shape_cast %71 : vector<1x16x256xf32> to vector<16x256xf32>
    %73 = arith.mulf %72, %62 : vector<16x256xf32>
    %cst_38 = arith.constant 1.000000e+00 : f32
    %74 = vector.broadcast %cst_38 : f32 to vector<16x256xf32>
    %75 = arith.addf %74, %73 : vector<16x256xf32>
    %76 = arith.mulf %68, %75 : vector<16x256xf32>
    %77 = vector.extract_strided_slice %70 {offsets = [0, 0], sizes = [1, 1], strides = [1, 1]} : vector<1x2xf32> to vector<1x1xf32>
    %78 = vector.broadcast %77 : vector<1x1xf32> to vector<16x256xf32>
    %79 = arith.mulf %33, %78 : vector<16x256xf32>
    %80 = vector.extract_strided_slice %70 {offsets = [0, 1], sizes = [1, 1], strides = [1, 1]} : vector<1x2xf32> to vector<1x1xf32>
    %81 = vector.broadcast %80 : vector<1x1xf32> to vector<16x256xf32>
    %82 = arith.mulf %38, %81 : vector<16x256xf32>
    %83 = arith.addf %79, %82 : vector<16x256xf32>
    %cst_39 = arith.constant 5.000000e-01 : f32
    %84 = vector.broadcast %cst_39 : f32 to vector<16x256xf32>
    %85 = arith.mulf %84, %76 : vector<16x256xf32>
    %cst_40 = arith.constant 5.000000e-01 : f32
    %86 = vector.broadcast %cst_40 : f32 to vector<16x256xf32>
    %87 = arith.mulf %86, %83 : vector<16x256xf32>
    %88 = arith.addf %85, %87 : vector<16x256xf32>
    %89 = arith.truncf %88 : vector<16x256xf32> to vector<16x256xbf16>
    %c0_41 = arith.constant 0 : index
    %c0_42 = arith.constant 0 : index
    %c0_43 = arith.constant 0 : index
    %90 = vector.load %arg6[%c0_41, %c0_42, %c0_43] : memref<2x256x320xbf16, #tpu.memory_space<vmem>>, vector<1x256x320xbf16>
    %91 = vector.shape_cast %90 : vector<1x256x320xbf16> to vector<256x320xbf16>
    %cst_44 = arith.constant dense<0.000000e+00> : vector<16x320xf32>
    %92 = tpu.matmul %89, %91, %cst_44 {dimension_numbers = #tpu.dot_dimension_numbers<[1], [0], [0], [1], [0, 0, 1, 1], [], []>} : vector<16x256xbf16>, vector<256x320xbf16>, vector<16x320xf32> -> vector<16x320xf32>
    %c2_45 = arith.constant 2 : index
    %c0_46 = arith.constant 0 : index
    %93 = vector.load %arg8[%c2_45, %c0_46] : memref<5x320xf32, #tpu.memory_space<vmem>>, vector<1x320xf32>
    %94 = vector.broadcast %93 : vector<1x320xf32> to vector<16x320xf32>
    %95 = arith.addf %92, %94 : vector<16x320xf32>
    %96 = vector.extract_strided_slice %95 {offsets = [0, 0], sizes = [16, 256], strides = [1, 1]} : vector<16x320xf32> to vector<16x256xf32>
    %c0_47 = arith.constant 0 : index
    %c0_48 = arith.constant 0 : index
    %c0_49 = arith.constant 0 : index
    %97 = vector.load %arg9[%c0_47, %c0_48, %c0_49] : memref<1x16x256xf32, #tpu.memory_space<vmem>>, vector<1x16x256xf32>
    %98 = vector.shape_cast %97 : vector<1x16x256xf32> to vector<16x256xf32>
    %99 = vector.shape_cast %96 : vector<16x256xf32> to vector<1x16x256xf32>
    tpu.vector_store %arg9[%c0_47, %c0_48, %c0_49], %99 {strides = array<i32>} : memref<1x16x256xf32, #tpu.memory_space<vmem>>, vector<1x16x256xf32>,
    %100 = vector.extract_strided_slice %95 {offsets = [0, 256], sizes = [16, 64], strides = [1, 1]} : vector<16x320xf32> to vector<16x64xf32>
    %cst_50 = arith.constant 0.000000e+00 : f32
    %101 = vector.broadcast %cst_50 : f32 to vector<16x64xf32>
    %102 = arith.maximumf %100, %101 : vector<16x64xf32>
    %103 = arith.truncf %102 : vector<16x64xf32> to vector<16x64xbf16>
    %c0_51 = arith.constant 0 : index
    %c16 = arith.constant 16 : index
    %104 = vector.load %arg7[%c0_51, %c16] : memref<256x32xbf16, #tpu.memory_space<vmem>>, vector<64x16xbf16>
    %cst_52 = arith.constant dense<0.000000e+00> : vector<16x16xf32>
    %105 = tpu.matmul %103, %104, %cst_52 {dimension_numbers = #tpu.dot_dimension_numbers<[1], [0], [0], [1], [0, 0, 1, 1], [], []>} : vector<16x64xbf16>, vector<64x16xbf16>, vector<16x16xf32> -> vector<16x16xf32>
    %c4 = arith.constant 4 : index
    %c0_53 = arith.constant 0 : index
    %106 = vector.load %arg8[%c4, %c0_53] : memref<5x320xf32, #tpu.memory_space<vmem>>, vector<1x16xf32>
    %107 = vector.broadcast %106 : vector<1x16xf32> to vector<16x16xf32>
    %108 = arith.addf %105, %107 : vector<16x16xf32>
    %109 = arith.negf %108 : vector<16x16xf32>
    %110 = math.exp %109 : vector<16x16xf32>
    %cst_54 = arith.constant 1.000000e+00 : f32
    %111 = vector.broadcast %cst_54 : f32 to vector<16x16xf32>
    %112 = arith.addf %111, %110 : vector<16x16xf32>
    %113 = arith.divf %111, %112 : vector<16x16xf32>
    %114 = arith.subf %64, %65 : vector<16x256xf32>
    %115 = math.absf %114 : vector<16x256xf32>
    %116 = arith.truncf %115 : vector<16x256xf32> to vector<16x256xbf16>
    %c0_55 = arith.constant 0 : index
    %c0_56 = arith.constant 0 : index
    %117 = vector.load %arg7[%c0_55, %c0_56] : memref<256x32xbf16, #tpu.memory_space<vmem>>, vector<256x16xbf16>
    %cst_57 = arith.constant dense<0.000000e+00> : vector<16x16xf32>
    %118 = tpu.matmul %116, %117, %cst_57 {dimension_numbers = #tpu.dot_dimension_numbers<[1], [0], [0], [1], [0, 0, 1, 1], [], []>} : vector<16x256xbf16>, vector<256x16xbf16>, vector<16x16xf32> -> vector<16x16xf32>
    %cst_58 = arith.constant 1.000000e+00 : f32
    %119 = vector.broadcast %cst_58 : f32 to vector<16x16xf32>
    %120 = arith.subf %119, %118 : vector<16x16xf32>
    %121 = arith.negf %120 : vector<16x16xf32>
    %122 = math.exp %121 : vector<16x16xf32>
    %cst_59 = arith.constant 1.000000e+00 : f32
    %123 = vector.broadcast %cst_59 : f32 to vector<16x16xf32>
    %124 = arith.addf %123, %122 : vector<16x16xf32>
    %125 = arith.divf %123, %124 : vector<16x16xf32>
    %126 = tpu.concatenate %63, %125, %113 in 1 : vector<16x16xf32>, vector<16x16xf32>, vector<16x16xf32> -> vector<16x48xf32>
    %c0_60 = arith.constant 0 : index
    %c0_61 = arith.constant 0 : index
    %c0_62 = arith.constant 0 : index
    %127 = vector.load %arg10[%c0_60, %c0_61, %c0_62] : memref<1x16x48xf32, #tpu.memory_space<vmem>>, vector<1x16x48xf32>
    %128 = vector.shape_cast %127 : vector<1x16x48xf32> to vector<16x48xf32>
    %129 = vector.shape_cast %126 : vector<16x48xf32> to vector<1x16x48xf32>
    tpu.vector_store %arg10[%c0_60, %c0_61, %c0_62], %129 {strides = array<i32>} : memref<1x16x48xf32, #tpu.memory_space<vmem>>, vector<1x16x48xf32>,
    return
  }
  func.func @transform_0(%arg0: i32) -> (i32, i32, i32) {
    %c0_i32 = arith.constant 0 : i32
    %c0_i32_0 = arith.constant 0 : i32
    %c0_i32_1 = arith.constant 0 : i32
    return %arg0, %c0_i32, %c0_i32_0 : i32, i32, i32
  }
  func.func @transform_1(%arg0: i32) -> (i32, i32, i32) {
    %c0_i32 = arith.constant 0 : i32
    %c0_i32_0 = arith.constant 0 : i32
    %c0_i32_1 = arith.constant 0 : i32
    return %arg0, %c0_i32, %c0_i32_0 : i32, i32, i32
  }
  func.func @transform_2(%arg0: i32) -> (i32, i32, i32) {
    %c0_i32 = arith.constant 0 : i32
    %c0_i32_0 = arith.constant 0 : i32
    %c0_i32_1 = arith.constant 0 : i32
    return %arg0, %c0_i32, %c0_i32_0 : i32, i32, i32
  }
  func.func @transform_3(%arg0: i32) -> (i32, i32, i32) {
    %c0_i32 = arith.constant 0 : i32
    %c0_i32_0 = arith.constant 0 : i32
    %c0_i32_1 = arith.constant 0 : i32
    return %arg0, %c0_i32, %c0_i32_0 : i32, i32, i32
  }
  func.func @transform_4(%arg0: i32) -> (i32, i32, i32) {
    %c0_i32 = arith.constant 0 : i32
    %c0_i32_0 = arith.constant 0 : i32
    %c0_i32_1 = arith.constant 0 : i32
    %c0_i32_2 = arith.constant 0 : i32
    return %c0_i32, %c0_i32_0, %c0_i32_1 : i32, i32, i32
  }
  func.func @transform_5(%arg0: i32) -> (i32, i32, i32) {
    %c0_i32 = arith.constant 0 : i32
    %c0_i32_0 = arith.constant 0 : i32
    %c0_i32_1 = arith.constant 0 : i32
    %c0_i32_2 = arith.constant 0 : i32
    return %c0_i32, %c0_i32_0, %c0_i32_1 : i32, i32, i32
  }
  func.func @transform_6(%arg0: i32) -> (i32, i32) {
    %c0_i32 = arith.constant 0 : i32
    %c0_i32_0 = arith.constant 0 : i32
    %c0_i32_1 = arith.constant 0 : i32
    return %c0_i32, %c0_i32_0 : i32, i32
  }
  func.func @transform_7(%arg0: i32) -> (i32, i32) {
    %c0_i32 = arith.constant 0 : i32
    %c0_i32_0 = arith.constant 0 : i32
    %c0_i32_1 = arith.constant 0 : i32
    return %c0_i32, %c0_i32_0 : i32, i32
  }
  func.func @transform_8(%arg0: i32) -> (i32, i32, i32) {
    %c0_i32 = arith.constant 0 : i32
    %c0_i32_0 = arith.constant 0 : i32
    %c0_i32_1 = arith.constant 0 : i32
    return %arg0, %c0_i32, %c0_i32_0 : i32, i32, i32
  }
  func.func @transform_9(%arg0: i32) -> (i32, i32, i32) {
    %c0_i32 = arith.constant 0 : i32
    %c0_i32_0 = arith.constant 0 : i32
    %c0_i32_1 = arith.constant 0 : i32
    return %arg0, %c0_i32, %c0_i32_0 : i32, i32, i32
  }
}

</mosaic_0001>

<llo_original>
// kernel: abam_forward.2
$region0: #{abam_forward.2}
  #allocation0 [shape = 'u32[]', space=smem, size = 0x4, offset = 0x4, fixed_abs, tag = 'smem constant byte address 0x4 - core index']
  #allocation1 [shape = 'u32[144,128]{1,0:T(1,128)}', space=vmem, size = 0x12000, scoped, tag = 'internal scratch']
  %s0 = inlined_call_operand.vmem [shape: f32[2,18,288], index: 0, kind: input, shape index: {}]
  %s1 = inlined_call_operand.vmem [shape: f32[2,18,288], index: 1, kind: input, shape index: {}]
  %s2 = inlined_call_operand.vmem [shape: bf16[6,288,64], index: 2, kind: input, shape index: {}]
  %s3 = inlined_call_operand.vmem [shape: bf16[64,64], index: 3, kind: input, shape index: {}]
  %s4 = inlined_call_operand.vmem [shape: f32[2,64], index: 4, kind: input, shape index: {}]
  %s5 = inlined_call_operand.vmem [shape: f32[2,16,64], index: 5, kind: output, shape index: {}]
  %s6 = sld [smem:[#allocation0]]
  $region53: #{abam_forward.2} parent=0
    _
  %s8 = ssub.s32 1, %s6
  %s9 = scalar_select 0, %s8, %s6
  loop: start=0, step=1, limit=4
  $region2: #{abam_forward.2} parent=0 // loop_pre_header
    _
  $region3: #{abam_forward.2} parent=0 // loop_header
    %s11 = sphi 0, %s15
    %p12 = scmp.ge.s32.totalorder %s11, 4
    %s21 = sphi 0, %s23
    %s24 = sphi 0, %s21
    %s25 = sphi 0, %s24
    %s41 = sphi 0, %s25
    %s47 = sphi 0, %s49
    %s50 = sphi 0, %s47
    %s51 = sphi 0, %s50
    %s67 = sphi 0, %s51
    %s71 = sphi 0, %s71
    %s73 = sphi 0, %s71
    %s74 = sphi 0, %s73
    %s88 = sphi 0, %s74
    %s92 = sphi 0, %s92
    %s94 = sphi 0, %s92
    %s95 = sphi 0, %s94
    %s109 = sphi 0, %s95
    %s113 = sphi 0, %s113
    %s115 = sphi 0, %s113
    %s116 = sphi 0, %s115
    %s130 = sphi 0, %s116
    %s136 = sphi 0, %s138
    %s139 = sphi 0, %s136
    %s140 = sphi 0, %s139
    %s156 = sphi 0, %s140
  $region4: #{abam_forward.2} parent=0 // loop_header_branch
    %14 = sbr.rel (%p12) target = $region8
  $region5: #{abam_forward.2} parent=0 // loop_body
    %s16 = ssub.s32 %s11, 1
    %s17 = ssub.s32 %s11, 2
    %s18 = sadd.s32 %s11, 1
    %s19 = ssub.s32 %s11, %s18
    %p20 = scmp.eq.s32.totalorder %s19, 0
    %s22 = sadd.s32 %s21, 1
    %s23 = scalar_select %p20, %s21, %s22
    %p26 = pneg %p20
    %p27 = scmp.eq.s32.totalorder %s11, 1
    %p28 = por %p26, %p27
    %p29 = scmp.ne.s32.totalorder %s21, %s24
    %p30 = scmp.eq.s32.totalorder %s11, 0
    %p31 = por %p29, %p30
    %p32 = scmp.ne.s32.totalorder %s21, %s24
    %p33 = scmp.eq.s32.totalorder %s16, 1
    %p34 = por %p32, %p33
    %p35 = scmp.ne.s32.totalorder %s24, %s25
    %p36 = scmp.eq.s32.totalorder %s16, 0
    %p37 = por %p35, %p36
    %p38 = scmp.ne.s32.totalorder %s24, %s25
    %p39 = scmp.eq.s32.totalorder %s17, 1
    %p40 = por %p38, %p39
    %p42 = scmp.ne.s32.totalorder %s25, %s41
    %p43 = scmp.eq.s32.totalorder %s17, 0
    %p44 = por %p42, %p43
    %s45 = ssub.s32 %s11, %s18
    %p46 = scmp.eq.s32.totalorder %s45, 0
    %s48 = sadd.s32 %s47, 1
    %s49 = scalar_select %p46, %s47, %s48
    %p52 = pneg %p46
    %p53 = scmp.eq.s32.totalorder %s11, 1
    %p54 = por %p52, %p53
    %p55 = scmp.ne.s32.totalorder %s47, %s50
    %p56 = scmp.eq.s32.totalorder %s11, 0
    %p57 = por %p55, %p56
    %p58 = scmp.ne.s32.totalorder %s47, %s50
    %p59 = scmp.eq.s32.totalorder %s16, 1
    %p60 = por %p58, %p59
    %p61 = scmp.ne.s32.totalorder %s50, %s51
    %p62 = scmp.eq.s32.totalorder %s16, 0
    %p63 = por %p61, %p62
    %p64 = scmp.ne.s32.totalorder %s50, %s51
    %p65 = scmp.eq.s32.totalorder %s17, 1
    %p66 = por %p64, %p65
    %p68 = scmp.ne.s32.totalorder %s51, %s67
    %p69 = scmp.eq.s32.totalorder %s17, 0
    %p70 = por %p68, %p69
    %s72 = sadd.s32 %s71, 1
    %p75 = scmp.eq.s32.totalorder %s11, 1
    %p76 = scmp.ne.s32.totalorder %s71, %s73
    %p77 = scmp.eq.s32.totalorder %s11, 0
    %p78 = por %p76, %p77
    %p79 = scmp.ne.s32.totalorder %s71, %s73
    %p80 = scmp.eq.s32.totalorder %s16, 1
    %p81 = por %p79, %p80
    %p82 = scmp.ne.s32.totalorder %s73, %s74
    %p83 = scmp.eq.s32.totalorder %s16, 0
    %p84 = por %p82, %p83
    %p85 = scmp.ne.s32.totalorder %s73, %s74
    %p86 = scmp.eq.s32.totalorder %s17, 1
    %p87 = por %p85, %p86
    %p89 = scmp.ne.s32.totalorder %s74, %s88
    %p90 = scmp.eq.s32.totalorder %s17, 0
    %p91 = por %p89, %p90
    %s93 = sadd.s32 %s92, 1
    %p96 = scmp.eq.s32.totalorder %s11, 1
    %p97 = scmp.ne.s32.totalorder %s92, %s94
    %p98 = scmp.eq.s32.totalorder %s11, 0
    %p99 = por %p97, %p98
    %p100 = scmp.ne.s32.totalorder %s92, %s94
    %p101 = scmp.eq.s32.totalorder %s16, 1
    %p102 = por %p100, %p101
    %p103 = scmp.ne.s32.totalorder %s94, %s95
    %p104 = scmp.eq.s32.totalorder %s16, 0
    %p105 = por %p103, %p104
    %p106 = scmp.ne.s32.totalorder %s94, %s95
    %p107 = scmp.eq.s32.totalorder %s17, 1
    %p108 = por %p106, %p107
    %p110 = scmp.ne.s32.totalorder %s95, %s109
    %p111 = scmp.eq.s32.totalorder %s17, 0
    %p112 = por %p110, %p111
    %s114 = sadd.s32 %s113, 1
    %p117 = scmp.eq.s32.totalorder %s11, 1
    %p118 = scmp.ne.s32.totalorder %s113, %s115
    %p119 = scmp.eq.s32.totalorder %s11, 0
    %p120 = por %p118, %p119
    %p121 = scmp.ne.s32.totalorder %s113, %s115
    %p122 = scmp.eq.s32.totalorder %s16, 1
    %p123 = por %p121, %p122
    %p124 = scmp.ne.s32.totalorder %s115, %s116
    %p125 = scmp.eq.s32.totalorder %s16, 0
    %p126 = por %p124, %p125
    %p127 = scmp.ne.s32.totalorder %s115, %s116
    %p128 = scmp.eq.s32.totalorder %s17, 1
    %p129 = por %p127, %p128
    %p131 = scmp.ne.s32.totalorder %s116, %s130
    %p132 = scmp.eq.s32.totalorder %s17, 0
    %p133 = por %p131, %p132
    %s134 = ssub.s32 %s11, %s18
    %p135 = scmp.eq.s32.totalorder %s134, 0
    %s137 = sadd.s32 %s136, 1
    %s138 = scalar_select %p135, %s136, %s137
    %p141 = pneg %p135
    %p142 = scmp.eq.s32.totalorder %s11, 1
    %p143 = por %p141, %p142
    %p144 = scmp.ne.s32.totalorder %s136, %s139
    %p145 = scmp.eq.s32.totalorder %s11, 0
    %p146 = por %p144, %p145
    %p147 = scmp.ne.s32.totalorder %s136, %s139
    %p148 = scmp.eq.s32.totalorder %s16, 1
    %p149 = por %p147, %p148
    %p150 = scmp.ne.s32.totalorder %s139, %s140
    %p151 = scmp.eq.s32.totalorder %s16, 0
    %p152 = por %p150, %p151
    %p153 = scmp.ne.s32.totalorder %s139, %s140
    %p154 = scmp.eq.s32.totalorder %s17, 1
    %p155 = por %p153, %p154
    %p157 = scmp.ne.s32.totalorder %s140, %s156
    %p158 = scmp.eq.s32.totalorder %s17, 0
    %p159 = por %p157, %p158
    %p160 = scmp.le.s32.totalorder 1, %s11
    %p161 = scmp.lt.s32.totalorder %s11, 3
    %p162 = pnand %p160, %p161
    %p163 = pneg %p162
    // Predicated region
    $region9: #{abam_forward.2} parent=5 // pred_check
      _
    $region10: #{abam_forward.2} parent=5 // pred_check_branch
      %165 = sbr.rel (%p162) target = $region12
    $region11: #{abam_forward.2} parent=5 // pred_region
      %s166 = ssub.s32 %s11, 1
      // Predicated region
      $region13: #{abam_forward.2} parent=11 // pred_check
        %p167 = pneg %p84
      $region14: #{abam_forward.2} parent=11 // pred_check_branch
        %169 = sbr.rel (%p167) target = $region16
      $region15: #{abam_forward.2} parent=11 // pred_region
        _
      $region16: #{abam_forward.2} parent=11 // pred_fallthru
        _
      // Predicated region
      $region17: #{abam_forward.2} parent=11 // pred_check
        %p170 = pneg %p105
      $region18: #{abam_forward.2} parent=11 // pred_check_branch
        %172 = sbr.rel (%p170) target = $region20
      $region19: #{abam_forward.2} parent=11 // pred_region
        _
      $region20: #{abam_forward.2} parent=11 // pred_fallthru
        _
      // Predicated region
      $region21: #{abam_forward.2} parent=11 // pred_check
        %p173 = pneg %p126
      $region22: #{abam_forward.2} parent=11 // pred_check_branch
        %175 = sbr.rel (%p173) target = $region24
      $region23: #{abam_forward.2} parent=11 // pred_region
        _
      $region24: #{abam_forward.2} parent=11 // pred_fallthru
        _
    $region12: #{abam_forward.2} parent=5 // pred_fallthru
      _
    %p176 = scmp.lt.s32.totalorder %s11, 2
    // Predicated region
    $region25: #{abam_forward.2} parent=5 // pred_check
      %p177 = pneg %p176
    $region26: #{abam_forward.2} parent=5 // pred_check_branch
      %179 = sbr.rel (%p177) target = $region28
    $region27: #{abam_forward.2} parent=5 // pred_region
      // Predicated region
      $region29: #{abam_forward.2} parent=27 // pred_check
        %p180 = pneg %p31
      $region30: #{abam_forward.2} parent=27 // pred_check_branch
        %182 = sbr.rel (%p180) target = $region32
      $region31: #{abam_forward.2} parent=27 // pred_region
        %p183 = scmp.lt.s32.totalorder %s11, 1
        %s184 = scalar_select %p183, %s11, 1
        %s185 = smul.addr %s184, 9
        %s186 = smul.addr %s185, 8
        %s187 = scalar_lea.vmem %s0, %s186
      $region32: #{abam_forward.2} parent=27 // pred_fallthru
        _
      // Predicated region
      $region33: #{abam_forward.2} parent=27 // pred_check
        %p188 = pneg %p57
      $region34: #{abam_forward.2} parent=27 // pred_check_branch
        %190 = sbr.rel (%p188) target = $region36
      $region35: #{abam_forward.2} parent=27 // pred_region
        %p191 = scmp.lt.s32.totalorder %s11, 1
        %s192 = scalar_select %p191, %s11, 1
        %s193 = smul.addr %s192, 9
        %s194 = smul.addr %s193, 8
        %s195 = scalar_lea.vmem %s1, %s194
      $region36: #{abam_forward.2} parent=27 // pred_fallthru
        _
    $region28: #{abam_forward.2} parent=5 // pred_fallthru
      _
    %p196 = scmp.le.s32.totalorder 1, %s11
    %p197 = scmp.lt.s32.totalorder %s11, 3
    %p198 = pnand %p196, %p197
    %p199 = pneg %p198
    // Predicated region
    $region37: #{abam_forward.2} parent=5 // pred_check
      _
    $region38: #{abam_forward.2} parent=5 // pred_check_branch
      %201 = sbr.rel (%p198) target = $region40
    $region39: #{abam_forward.2} parent=5 // pred_region
      %s202 = ssub.s32 %s11, 1
      %p203 = scmp.lt.s32.totalorder %s16, 1
      %s204 = scalar_select %p203, %s16, 1
      %s205 = smul.addr %s204, 9
      %s206 = smul.addr %s205, 8
      %s207 = scalar_lea.vmem %s0, %s206
      %p208 = pneg %p37
      %p209 = pneg %p34
      %p210 = scmp.lt.s32.totalorder %s16, 1
      %s211 = scalar_select %p210, %s16, 1
      %s212 = smul.addr %s211, 9
      %s213 = smul.addr %s212, 8
      %s214 = scalar_lea.vmem %s1, %s213
      %p215 = pneg %p63
      %p216 = pneg %p60
      %p217 = pneg %p84
      %p218 = pneg %p81
      %p219 = pneg %p105
      %p220 = pneg %p102
      %p221 = pneg %p126
      %p222 = pneg %p123
      %p223 = pneg %p152
      %p224 = pneg %p149
      %p225 = scmp.lt.s32.totalorder %s16, 1
      %s226 = scalar_select %p225, %s16, 1
      %s227 = smul.addr %s226, 2
      %s228 = smul.addr %s227, 8
      %s229 = scalar_lea.vmem %s5, %s228
      %p230 = scmp.lt.s32.totalorder %s16, 1
      %s231 = scalar_select %p230, %s16, 1
      %s232 = smul.addr %s231, 9
      %s233 = smul.addr %s232, 8
      %s234 = scalar_lea.vmem %s0, %s233
      %p235 = scmp.lt.s32.totalorder %s16, 1
      %s236 = scalar_select %p235, %s16, 1
      %s237 = smul.addr %s236, 9
      %s238 = smul.addr %s237, 8
      %s239 = scalar_lea.vmem %s1, %s238
      %p240 = scmp.lt.s32.totalorder %s16, 1
      %s241 = scalar_select %p240, %s16, 1
      %s242 = smul.addr %s241, 2
      %s243 = smul.addr %s242, 8
      %s244 = scalar_lea.vmem %s5, %s243
      %v246 = vld [vmem:[%s234] sm:$0xff]
      %v247 = vld [vmem:[%s234 + $0x8] sm:$0xff]
      %v248 = vld [vmem:[%s234 + $0x10] sm:$0xff]
      %v249 = vld [vmem:[%s234 + $0x18] sm:$0xff]
      %v250 = vld [vmem:[%s234 + $0x20] sm:$0xff]
      %v251 = vld [vmem:[%s234 + $0x28] sm:$0xff]
      %v252 = vld [vmem:[%s234 + $0x30] sm:$0x3]
      %v253 = vld [vmem:[%s234 + $0x38] sm:$0x3]
      %v254 = vld [vmem:[%s234 + $0x40] sm:$0x3]
      %v255 = vpack.c.bf16 %v249, %v246
      %v256 = vpack.c.bf16 %v250, %v247
      %v257 = vpack.c.bf16 %v251, %v248
      %v258 = vpack.c.bf16 %v252, %v252
      %v259 = vpack.c.bf16 %v253, %v253
      %v260 = vpack.c.bf16 %v254, %v254
      %v261 = vld [vmem:[%s239] sm:$0xff]
      %v262 = vld [vmem:[%s239 + $0x8] sm:$0xff]
      %v263 = vld [vmem:[%s239 + $0x10] sm:$0xff]
      %v264 = vld [vmem:[%s239 + $0x18] sm:$0xff]
      %v265 = vld [vmem:[%s239 + $0x20] sm:$0xff]
      %v266 = vld [vmem:[%s239 + $0x28] sm:$0xff]
      %v267 = vld [vmem:[%s239 + $0x30] sm:$0x3]
      %v268 = vld [vmem:[%s239 + $0x38] sm:$0x3]
      %v269 = vld [vmem:[%s239 + $0x40] sm:$0x3]
      %v270 = vpack.c.bf16 %v264, %v261
      %v271 = vpack.c.bf16 %v265, %v262
      %v272 = vpack.c.bf16 %v266, %v263
      %v273 = vpack.c.bf16 %v267, %v267
      %v274 = vpack.c.bf16 %v268, %v268
      %v275 = vpack.c.bf16 %v269, %v269
      %v276 = vld [vmem:[%s2] sm:$0xf]
      %v277 = vld [vmem:[%s2 + $0x4] sm:$0xf]
      %v278 = vld [vmem:[%s2 + $0x8] sm:$0xf]
      %v279 = vld [vmem:[%s2 + $0xc] sm:$0xf]
      %v280 = vld [vmem:[%s2 + $0x10] sm:$0xf]
      %v281 = vld [vmem:[%s2 + $0x14] sm:$0xf]
      %v282 = vld [vmem:[%s2 + $0x18] sm:$0xf]
      %v283 = vld [vmem:[%s2 + $0x1c] sm:$0xf]
      %v284 = vld [vmem:[%s2 + $0x20] sm:$0xf]
      %v285 = vld [vmem:[%s2 + $0x24] sm:$0xf]
      %v286 = vld [vmem:[%s2 + $0x28] sm:$0xf]
      %v287 = vld [vmem:[%s2 + $0x2c] sm:$0xf]
      %v288 = vld [vmem:[%s2 + $0x30] sm:$0xf]
      %v289 = vld [vmem:[%s2 + $0x34] sm:$0xf]
      %v290 = vld [vmem:[%s2 + $0x38] sm:$0xf]
      %v291 = vld [vmem:[%s2 + $0x3c] sm:$0xf]
      %v292 = vld [vmem:[%s2 + $0x40] sm:$0xf]
      %v293 = vld [vmem:[%s2 + $0x44] sm:$0xf]
      %v294 = vld [vmem:[%s2 + $0x48] sm:$0xf]
      %v295 = vld [vmem:[%s2 + $0x4c] sm:$0xf]
      %v296 = vld [vmem:[%s2 + $0x50] sm:$0xf]
      %v297 = vld [vmem:[%s2 + $0x54] sm:$0xf]
      %v298 = vld [vmem:[%s2 + $0x58] sm:$0xf]
      %v299 = vld [vmem:[%s2 + $0x5c] sm:$0xf]
      %v300 = vld [vmem:[%s2 + $0x60] sm:$0xf]
      %v301 = vld [vmem:[%s2 + $0x64] sm:$0xf]
      %v302 = vld [vmem:[%s2 + $0x68] sm:$0xf]
      %v303 = vld [vmem:[%s2 + $0x6c] sm:$0xf]
      %v304 = vld [vmem:[%s2 + $0x70] sm:$0xf]
      %v305 = vld [vmem:[%s2 + $0x74] sm:$0xf]
      %v306 = vld [vmem:[%s2 + $0x78] sm:$0xf]
      %v307 = vld [vmem:[%s2 + $0x7c] sm:$0xf]
      %v308 = vld [vmem:[%s2 + $0x80] sm:$0xf]
      %v309 = vld [vmem:[%s2 + $0x84] sm:$0xf]
      %v310 = vld [vmem:[%s2 + $0x88] sm:$0xf]
      %v311 = vld [vmem:[%s2 + $0x8c] sm:$0xf]
      %s312 = scalar_lea.vmem %s2, 144
      %v313 = vld [vmem:[%s312] sm:$0xf]
      %v314 = vld [vmem:[%s312 + $0x4] sm:$0xf]
      %v315 = vld [vmem:[%s312 + $0x8] sm:$0xf]
      %v316 = vld [vmem:[%s312 + $0xc] sm:$0xf]
      %v317 = vld [vmem:[%s312 + $0x10] sm:$0xf]
      %v318 = vld [vmem:[%s312 + $0x14] sm:$0xf]
      %v319 = vld [vmem:[%s312 + $0x18] sm:$0xf]
      %v320 = vld [vmem:[%s312 + $0x1c] sm:$0xf]
      %v321 = vld [vmem:[%s312 + $0x20] sm:$0xf]
      %v322 = vld [vmem:[%s312 + $0x24] sm:$0xf]
      %v323 = vld [vmem:[%s312 + $0x28] sm:$0xf]
      %v324 = vld [vmem:[%s312 + $0x2c] sm:$0xf]
      %v325 = vld [vmem:[%s312 + $0x30] sm:$0xf]
      %v326 = vld [vmem:[%s312 + $0x34] sm:$0xf]
      %v327 = vld [vmem:[%s312 + $0x38] sm:$0xf]
      %v328 = vld [vmem:[%s312 + $0x3c] sm:$0xf]
      %v329 = vld [vmem:[%s312 + $0x40] sm:$0xf]
      %v330 = vld [vmem:[%s312 + $0x44] sm:$0xf]
      %v331 = vld [vmem:[%s312 + $0x48] sm:$0xf]
      %v332 = vld [vmem:[%s312 + $0x4c] sm:$0xf]
      %v333 = vld [vmem:[%s312 + $0x50] sm:$0xf]
      %v334 = vld [vmem:[%s312 + $0x54] sm:$0xf]
      %v335 = vld [vmem:[%s312 + $0x58] sm:$0xf]
      %v336 = vld [vmem:[%s312 + $0x5c] sm:$0xf]
      %v337 = vld [vmem:[%s312 + $0x60] sm:$0xf]
      %v338 = vld [vmem:[%s312 + $0x64] sm:$0xf]
      %v339 = vld [vmem:[%s312 + $0x68] sm:$0xf]
      %v340 = vld [vmem:[%s312 + $0x6c] sm:$0xf]
      %v341 = vld [vmem:[%s312 + $0x70] sm:$0xf]
      %v342 = vld [vmem:[%s312 + $0x74] sm:$0xf]
      %v343 = vld [vmem:[%s312 + $0x78] sm:$0xf]
      %v344 = vld [vmem:[%s312 + $0x7c] sm:$0xf]
      %v345 = vld [vmem:[%s312 + $0x80] sm:$0xf]
      %v346 = vld [vmem:[%s312 + $0x84] sm:$0xf]
      %v347 = vld [vmem:[%s312 + $0x88] sm:$0xf]
      %v348 = vld [vmem:[%s312 + $0x8c] sm:$0xf]
      %v385 = vunpack.c.l.b16 %v313
      %v386 = vunpack.c.l.b16 %v314
      %v387 = vunpack.c.l.b16 %v315
      %v388 = vunpack.c.l.b16 %v316
      %v389 = vunpack.c.l.b16 %v317
      %v390 = vunpack.c.l.b16 %v318
      %v391 = vunpack.c.l.b16 %v319
      %v392 = vunpack.c.l.b16 %v320
      %v393 = vunpack.c.l.b16 %v321
      %v394 = vunpack.c.l.b16 %v322
      %v395 = vunpack.c.l.b16 %v323
      %v396 = vunpack.c.l.b16 %v324
      %v397 = vunpack.c.l.b16 %v325
      %v398 = vunpack.c.l.b16 %v326
      %v399 = vunpack.c.l.b16 %v327
      %v400 = vunpack.c.l.b16 %v328
      %v401 = vunpack.c.l.b16 %v329
      %v402 = vunpack.c.l.b16 %v330
      %v403 = vunpack.c.l.b16 %v331
      %v404 = vunpack.c.l.b16 %v332
      %v405 = vunpack.c.l.b16 %v333
      %v406 = vunpack.c.l.b16 %v334
      %v407 = vunpack.c.l.b16 %v335
      %v408 = vunpack.c.l.b16 %v336
      %v409 = vunpack.c.l.b16 %v337
      %v410 = vunpack.c.l.b16 %v338
      %v411 = vunpack.c.l.b16 %v339
      %v412 = vunpack.c.l.b16 %v340
      %v413 = vunpack.c.l.b16 %v341
      %v414 = vunpack.c.l.b16 %v342
      %v415 = vunpack.c.l.b16 %v343
      %v416 = vunpack.c.l.b16 %v344
      %v417 = vunpack.c.l.b16 %v345
      %v418 = vunpack.c.l.b16 %v346
      %v419 = vunpack.c.l.b16 %v347
      %v420 = vunpack.c.l.b16 %v348
      %v421 = vpack.c.b16 %v386, %v385
      %v422 = vpack.c.b16 %v388, %v387
      %v423 = vpack.c.b16 %v390, %v389
      %v424 = vpack.c.b16 %v392, %v391
      %v425 = vpack.c.b16 %v394, %v393
      %v426 = vpack.c.b16 %v396, %v395
      %v427 = vpack.c.b16 %v398, %v397
      %v428 = vpack.c.b16 %v400, %v399
      %v429 = vpack.c.b16 %v402, %v401
      %v430 = vpack.c.b16 %v404, %v403
      %v431 = vpack.c.b16 %v406, %v405
      %v432 = vpack.c.b16 %v408, %v407
      %v433 = vpack.c.b16 %v410, %v409
      %v434 = vpack.c.b16 %v412, %v411
      %v435 = vpack.c.b16 %v414, %v413
      %v436 = vpack.c.b16 %v416, %v415
      %v437 = vpack.c.b16 %v418, %v417
      %v438 = vpack.c.b16 %v420, %v419
      %vm457 = vcmask 261120
      %v459 = vsel %vm457, %v272, 0
      %461 = vmatprep.subr.bf16.mxu0 0
      %462 = vmatpush1.bf16.msra.mxu0 %v421
      %463 = vmatprep.subr.bf16.mxu0 0
      %464 = vmatpush1.bf16.msra.mxu0 %v422
      %465 = vmatprep.subr.bf16.mxu0 0
      %466 = vmatpush1.bf16.msra.mxu0 %v423
      %467 = vmatprep.subr.bf16.mxu0 0
      %468 = vmatpush1.bf16.msra.mxu0 %v424
      %469 = vmatprep.subr.bf16.mxu0 0
      %470 = vmatpush1.bf16.msra.mxu0 %v425
      %471 = vmatprep.subr.bf16.mxu0 0
      %472 = vmatpush1.bf16.msra.mxu0 %v426
      %473 = vmatprep.subr.bf16.mxu0 0
      %474 = vmatpush1.bf16.msra.mxu0 %v427
      %475 = vmatprep.subr.bf16.mxu0 0
      %476 = vmatpush1.bf16.msra.mxu0 %v428
      %477 = vmatprep.subr.bf16.mxu0 0
      %478 = vmatpush1.bf16.msra.mxu0 %v429
      %479 = vmatprep.subr.bf16.mxu0 0
      %480 = vmatpush1.bf16.msra.mxu0 %v430
      %481 = vmatprep.subr.bf16.mxu0 0
      %482 = vmatpush1.bf16.msra.mxu0 %v431
      %483 = vmatprep.subr.bf16.mxu0 0
      %484 = vmatpush1.bf16.msra.mxu0 %v432
      %485 = vmatprep.subr.bf16.mxu0 0
      %486 = vmatpush1.bf16.msra.mxu0 %v433
      %487 = vmatprep.subr.bf16.mxu0 0
      %488 = vmatpush1.bf16.msra.mxu0 %v434
      %489 = vmatprep.subr.bf16.mxu0 0
      %490 = vmatpush1.bf16.msra.mxu0 %v435
      %491 = vmatprep.subr.bf16.mxu0 0
      %492 = vmatpush1.bf16.msra.mxu0 %v436
      %493 = vmatprep.mubr.bf16.mxu0 %v271
      %494 = vmatmul.mubr.bf16.gmra.mrb[0].mxu0 %v270
      %v495 = vpop.f32.mrb[0].mxu0
      %v496 = vadd.f32 0.0, %v495
      %v497 = vpop.f32.mrb[0].mxu0
      %v498 = vpop.f32.mrb[0].mxu0
      %v499 = vadd.f32 0.0, %v498
      %v500 = vpop.f32.mrb[0].mxu0
      %501 = vdwg.mxu0
      %502 = vmatprep.subr.bf16.mxu0 0
      %503 = vmatpush1.bf16.msra.mxu0 %v437
      %504 = vmatprep.subr.bf16.mxu0 0
      %505 = vmatpush1.bf16.msra.mxu0 %v438
      %506 = vmatprep.subr.bf16.mxu0 0
      %507 = vmatpush1.bf16.msra.mxu0 0
      %508 = vmatprep.subr.bf16.mxu0 0
      %509 = vmatpush1.bf16.msra.mxu0 0
      %510 = vmatprep.subr.bf16.mxu0 0
      %511 = vmatpush1.bf16.msra.mxu0 0
      %512 = vmatprep.subr.bf16.mxu0 0
      %513 = vmatpush1.bf16.msra.mxu0 0
      %514 = vmatprep.subr.bf16.mxu0 0
      %515 = vmatpush1.bf16.msra.mxu0 0
      %516 = vmatprep.subr.bf16.mxu0 0
      %517 = vmatpush1.bf16.msra.mxu0 0
      %518 = vmatprep.subr.bf16.mxu0 0
      %519 = vmatpush1.bf16.msra.mxu0 0
      %520 = vmatprep.subr.bf16.mxu0 0
      %521 = vmatpush1.bf16.msra.mxu0 0
      %522 = vmatprep.subr.bf16.mxu0 0
      %523 = vmatpush1.bf16.msra.mxu0 0
      %524 = vmatprep.subr.bf16.mxu0 0
      %525 = vmatpush1.bf16.msra.mxu0 0
      %526 = vmatprep.subr.bf16.mxu0 0
      %527 = vmatpush1.bf16.msra.mxu0 0
      %528 = vmatprep.subr.bf16.mxu0 0
      %529 = vmatpush1.bf16.msra.mxu0 0
      %530 = vmatprep.subr.bf16.mxu0 0
      %531 = vmatpush1.bf16.msra.mxu0 0
      %532 = vmatprep.subr.bf16.mxu0 0
      %533 = vmatpush1.bf16.msra.mxu0 0
      %534 = vmatprep.mubr.bf16.mxu0 0
      %535 = vmatmul.mubr.bf16.gmra.mrb[0].mxu0 %v459
      %v536 = vpop.f32.mrb[0].mxu0
      %v537 = vadd.f32 %v496, %v536
      %v538 = vpop.f32.mrb[0].mxu0
      %v539 = vpop.f32.mrb[0].mxu0
      %v540 = vadd.f32 %v499, %v539
      %v541 = vpop.f32.mrb[0].mxu0
      %542 = vdwg.mxu0
      %v579 = vunpack.c.l.b16 %v276
      %v580 = vunpack.c.l.b16 %v277
      %v581 = vunpack.c.l.b16 %v278
      %v582 = vunpack.c.l.b16 %v279
      %v583 = vunpack.c.l.b16 %v280
      %v584 = vunpack.c.l.b16 %v281
      %v585 = vunpack.c.l.b16 %v282
      %v586 = vunpack.c.l.b16 %v283
      %v587 = vunpack.c.l.b16 %v284
      %v588 = vunpack.c.l.b16 %v285
      %v589 = vunpack.c.l.b16 %v286
      %v590 = vunpack.c.l.b16 %v287
      %v591 = vunpack.c.l.b16 %v288
      %v592 = vunpack.c.l.b16 %v289
      %v593 = vunpack.c.l.b16 %v290
      %v594 = vunpack.c.l.b16 %v291
      %v595 = vunpack.c.l.b16 %v292
      %v596 = vunpack.c.l.b16 %v293
      %v597 = vunpack.c.l.b16 %v294
      %v598 = vunpack.c.l.b16 %v295
      %v599 = vunpack.c.l.b16 %v296
      %v600 = vunpack.c.l.b16 %v297
      %v601 = vunpack.c.l.b16 %v298
      %v602 = vunpack.c.l.b16 %v299
      %v603 = vunpack.c.l.b16 %v300
      %v604 = vunpack.c.l.b16 %v301
      %v605 = vunpack.c.l.b16 %v302
      %v606 = vunpack.c.l.b16 %v303
      %v607 = vunpack.c.l.b16 %v304
      %v608 = vunpack.c.l.b16 %v305
      %v609 = vunpack.c.l.b16 %v306
      %v610 = vunpack.c.l.b16 %v307
      %v611 = vunpack.c.l.b16 %v308
      %v612 = vunpack.c.l.b16 %v309
      %v613 = vunpack.c.l.b16 %v310
      %v614 = vunpack.c.l.b16 %v311
      %v615 = vpack.c.b16 %v580, %v579
      %v616 = vpack.c.b16 %v582, %v581
      %v617 = vpack.c.b16 %v584, %v583
      %v618 = vpack.c.b16 %v586, %v585
      %v619 = vpack.c.b16 %v588, %v587
      %v620 = vpack.c.b16 %v590, %v589
      %v621 = vpack.c.b16 %v592, %v591
      %v622 = vpack.c.b16 %v594, %v593
      %v623 = vpack.c.b16 %v596, %v595
      %v624 = vpack.c.b16 %v598, %v597
      %v625 = vpack.c.b16 %v600, %v599
      %v626 = vpack.c.b16 %v602, %v601
      %v627 = vpack.c.b16 %v604, %v603
      %v628 = vpack.c.b16 %v606, %v605
      %v629 = vpack.c.b16 %v608, %v607
      %v630 = vpack.c.b16 %v610, %v609
      %v631 = vpack.c.b16 %v612, %v611
      %v632 = vpack.c.b16 %v614, %v613
      %v652 = vsel %vm457, %v257, 0
      %654 = vmatprep.subr.bf16.mxu0 0
      %655 = vmatpush1.bf16.msra.mxu0 %v615
      %656 = vmatprep.subr.bf16.mxu0 0
      %657 = vmatpush1.bf16.msra.mxu0 %v616
      %658 = vmatprep.subr.bf16.mxu0 0
      %659 = vmatpush1.bf16.msra.mxu0 %v617
      %660 = vmatprep.subr.bf16.mxu0 0
      %661 = vmatpush1.bf16.msra.mxu0 %v618
      %662 = vmatprep.subr.bf16.mxu0 0
      %663 = vmatpush1.bf16.msra.mxu0 %v619
      %664 = vmatprep.subr.bf16.mxu0 0
      %665 = vmatpush1.bf16.msra.mxu0 %v620
      %666 = vmatprep.subr.bf16.mxu0 0
      %667 = vmatpush1.bf16.msra.mxu0 %v621
      %668 = vmatprep.subr.bf16.mxu0 0
      %669 = vmatpush1.bf16.msra.mxu0 %v622
      %670 = vmatprep.subr.bf16.mxu0 0
      %671 = vmatpush1.bf16.msra.mxu0 %v623
      %672 = vmatprep.subr.bf16.mxu0 0
      %673 = vmatpush1.bf16.msra.mxu0 %v624
      %674 = vmatprep.subr.bf16.mxu0 0
      %675 = vmatpush1.bf16.msra.mxu0 %v625
      %676 = vmatprep.subr.bf16.mxu0 0
      %677 = vmatpush1.bf16.msra.mxu0 %v626
      %678 = vmatprep.subr.bf16.mxu0 0
      %679 = vmatpush1.bf16.msra.mxu0 %v627
      %680 = vmatprep.subr.bf16.mxu0 0
      %681 = vmatpush1.bf16.msra.mxu0 %v628
      %682 = vmatprep.subr.bf16.mxu0 0
      %683 = vmatpush1.bf16.msra.mxu0 %v629
      %684 = vmatprep.subr.bf16.mxu0 0
      %685 = vmatpush1.bf16.msra.mxu0 %v630
      %686 = vmatprep.mubr.bf16.mxu0 %v256
      %687 = vmatmul.mubr.bf16.gmra.mrb[0].mxu0 %v255
      %v688 = vpop.f32.mrb[0].mxu0
      %v689 = vadd.f32 %v537, %v688
      %v690 = vpop.f32.mrb[0].mxu0
      %v691 = vpop.f32.mrb[0].mxu0
      %v692 = vadd.f32 %v540, %v691
      %v693 = vpop.f32.mrb[0].mxu0
      %694 = vdwg.mxu0
      %695 = vmatprep.subr.bf16.mxu0 0
      %696 = vmatpush1.bf16.msra.mxu0 %v631
      %697 = vmatprep.subr.bf16.mxu0 0
      %698 = vmatpush1.bf16.msra.mxu0 %v632
      %699 = vmatprep.subr.bf16.mxu0 0
      %700 = vmatpush1.bf16.msra.mxu0 0
      %701 = vmatprep.subr.bf16.mxu0 0
      %702 = vmatpush1.bf16.msra.mxu0 0
      %703 = vmatprep.subr.bf16.mxu0 0
      %704 = vmatpush1.bf16.msra.mxu0 0
      %705 = vmatprep.subr.bf16.mxu0 0
      %706 = vmatpush1.bf16.msra.mxu0 0
      %707 = vmatprep.subr.bf16.mxu0 0
      %708 = vmatpush1.bf16.msra.mxu0 0
      %709 = vmatprep.subr.bf16.mxu0 0
      %710 = vmatpush1.bf16.msra.mxu0 0
      %711 = vmatprep.subr.bf16.mxu0 0
      %712 = vmatpush1.bf16.msra.mxu0 0
      %713 = vmatprep.subr.bf16.mxu0 0
      %714 = vmatpush1.bf16.msra.mxu0 0
      %715 = vmatprep.subr.bf16.mxu0 0
      %716 = vmatpush1.bf16.msra.mxu0 0
      %717 = vmatprep.subr.bf16.mxu0 0
      %718 = vmatpush1.bf16.msra.mxu0 0
      %719 = vmatprep.subr.bf16.mxu0 0
      %720 = vmatpush1.bf16.msra.mxu0 0
      %721 = vmatprep.subr.bf16.mxu0 0
      %722 = vmatpush1.bf16.msra.mxu0 0
      %723 = vmatprep.subr.bf16.mxu0 0
      %724 = vmatpush1.bf16.msra.mxu0 0
      %725 = vmatprep.subr.bf16.mxu0 0
      %726 = vmatpush1.bf16.msra.mxu0 0
      %727 = vmatprep.mubr.bf16.mxu0 0
      %728 = vmatmul.mubr.bf16.gmra.mrb[0].mxu0 %v652
      %v729 = vpop.f32.mrb[0].mxu0
      %v730 = vadd.f32 %v689, %v729
      %v731 = vpop.f32.mrb[0].mxu0
      %v732 = vpop.f32.mrb[0].mxu0
      %v733 = vadd.f32 %v692, %v732
      %v734 = vpop.f32.mrb[0].mxu0
      %735 = vdwg.mxu0
      %s736 = scalar_lea.vmem %s2, 288
      %v737 = vld [vmem:[%s736] sm:$0xf]
      %v738 = vld [vmem:[%s736 + $0x4] sm:$0xf]
      %v739 = vld [vmem:[%s736 + $0x8] sm:$0xf]
      %v740 = vld [vmem:[%s736 + $0xc] sm:$0xf]
      %v741 = vld [vmem:[%s736 + $0x10] sm:$0xf]
      %v742 = vld [vmem:[%s736 + $0x14] sm:$0xf]
      %v743 = vld [vmem:[%s736 + $0x18] sm:$0xf]
      %v744 = vld [vmem:[%s736 + $0x1c] sm:$0xf]
      %v745 = vld [vmem:[%s736 + $0x20] sm:$0xf]
      %v746 = vld [vmem:[%s736 + $0x24] sm:$0xf]
      %v747 = vld [vmem:[%s736 + $0x28] sm:$0xf]
      %v748 = vld [vmem:[%s736 + $0x2c] sm:$0xf]
      %v749 = vld [vmem:[%s736 + $0x30] sm:$0xf]
      %v750 = vld [vmem:[%s736 + $0x34] sm:$0xf]
      %v751 = vld [vmem:[%s736 + $0x38] sm:$0xf]
      %v752 = vld [vmem:[%s736 + $0x3c] sm:$0xf]
      %v753 = vld [vmem:[%s736 + $0x40] sm:$0xf]
      %v754 = vld [vmem:[%s736 + $0x44] sm:$0xf]
      %v755 = vld [vmem:[%s736 + $0x48] sm:$0xf]
      %v756 = vld [vmem:[%s736 + $0x4c] sm:$0xf]
      %v757 = vld [vmem:[%s736 + $0x50] sm:$0xf]
      %v758 = vld [vmem:[%s736 + $0x54] sm:$0xf]
      %v759 = vld [vmem:[%s736 + $0x58] sm:$0xf]
      %v760 = vld [vmem:[%s736 + $0x5c] sm:$0xf]
      %v761 = vld [vmem:[%s736 + $0x60] sm:$0xf]
      %v762 = vld [vmem:[%s736 + $0x64] sm:$0xf]
      %v763 = vld [vmem:[%s736 + $0x68] sm:$0xf]
      %v764 = vld [vmem:[%s736 + $0x6c] sm:$0xf]
      %v765 = vld [vmem:[%s736 + $0x70] sm:$0xf]
      %v766 = vld [vmem:[%s736 + $0x74] sm:$0xf]
      %v767 = vld [vmem:[%s736 + $0x78] sm:$0xf]
      %v768 = vld [vmem:[%s736 + $0x7c] sm:$0xf]
      %v769 = vld [vmem:[%s736 + $0x80] sm:$0xf]
      %v770 = vld [vmem:[%s736 + $0x84] sm:$0xf]
      %v771 = vld [vmem:[%s736 + $0x88] sm:$0xf]
      %v772 = vld [vmem:[%s736 + $0x8c] sm:$0xf]
      %vm773 = vsmask.f32 7424
      %v775 = vshrl.u32 %v255, 16
      %v777 = vshll.u32 %v255, 16
      %v779 = vrot.slane %v777, 1
      %v780 = vor.u32 %v775, %v779
      %v782 = vshll.u32 %v258, 16
      %v784 = vrot.slane %v782, 1
      %v785 = vsel %vm773, %v780, %v784
      %v787 = vshrl.u32 %v256, 16
      %v789 = vshll.u32 %v256, 16
      %v791 = vrot.slane %v789, 1
      %v792 = vor.u32 %v787, %v791
      %v794 = vshll.u32 %v259, 16
      %v796 = vrot.slane %v794, 1
      %v797 = vsel %vm773, %v792, %v796
      %v798 = vshrl.u32 %v257, 16
      %v800 = vshll.u32 %v257, 16
      %v802 = vrot.slane %v800, 1
      %v803 = vor.u32 %v798, %v802
      %v805 = vshll.u32 %v260, 16
      %v807 = vrot.slane %v805, 1
      %v808 = vsel %vm773, %v803, %v807
      %v847 = vunpack.c.l.b16 %v737
      %v848 = vunpack.c.l.b16 %v738
      %v849 = vunpack.c.l.b16 %v739
      %v850 = vunpack.c.l.b16 %v740
      %v851 = vunpack.c.l.b16 %v741
      %v852 = vunpack.c.l.b16 %v742
      %v853 = vunpack.c.l.b16 %v743
      %v854 = vunpack.c.l.b16 %v744
      %v855 = vunpack.c.l.b16 %v745
      %v856 = vunpack.c.l.b16 %v746
      %v857 = vunpack.c.l.b16 %v747
      %v858 = vunpack.c.l.b16 %v748
      %v859 = vunpack.c.l.b16 %v749
      %v860 = vunpack.c.l.b16 %v750
      %v861 = vunpack.c.l.b16 %v751
      %v862 = vunpack.c.l.b16 %v752
      %v863 = vunpack.c.l.b16 %v753
      %v864 = vunpack.c.l.b16 %v754
      %v865 = vunpack.c.l.b16 %v755
      %v866 = vunpack.c.l.b16 %v756
      %v867 = vunpack.c.l.b16 %v757
      %v868 = vunpack.c.l.b16 %v758
      %v869 = vunpack.c.l.b16 %v759
      %v870 = vunpack.c.l.b16 %v760
      %v871 = vunpack.c.l.b16 %v761
      %v872 = vunpack.c.l.b16 %v762
      %v873 = vunpack.c.l.b16 %v763
      %v874 = vunpack.c.l.b16 %v764
      %v875 = vunpack.c.l.b16 %v765
      %v876 = vunpack.c.l.b16 %v766
      %v877 = vunpack.c.l.b16 %v767
      %v878 = vunpack.c.l.b16 %v768
      %v879 = vunpack.c.l.b16 %v769
      %v880 = vunpack.c.l.b16 %v770
      %v881 = vunpack.c.l.b16 %v771
      %v882 = vunpack.c.l.b16 %v772
      %v883 = vpack.c.b16 %v848, %v847
      %v884 = vpack.c.b16 %v850, %v849
      %v885 = vpack.c.b16 %v852, %v851
      %v886 = vpack.c.b16 %v854, %v853
      %v887 = vpack.c.b16 %v856, %v855
      %v888 = vpack.c.b16 %v858, %v857
      %v889 = vpack.c.b16 %v860, %v859
      %v890 = vpack.c.b16 %v862, %v861
      %v891 = vpack.c.b16 %v864, %v863
      %v892 = vpack.c.b16 %v866, %v865
      %v893 = vpack.c.b16 %v868, %v867
      %v894 = vpack.c.b16 %v870, %v869
      %v895 = vpack.c.b16 %v872, %v871
      %v896 = vpack.c.b16 %v874, %v873
      %v897 = vpack.c.b16 %v876, %v875
      %v898 = vpack.c.b16 %v878, %v877
      %v899 = vpack.c.b16 %v880, %v879
      %v900 = vpack.c.b16 %v882, %v881
      %v920 = vsel %vm457, %v808, 0
      %922 = vmatprep.subr.bf16.mxu0 0
      %923 = vmatpush1.bf16.msra.mxu0 %v883
      %924 = vmatprep.subr.bf16.mxu0 0
      %925 = vmatpush1.bf16.msra.mxu0 %v884
      %926 = vmatprep.subr.bf16.mxu0 0
      %927 = vmatpush1.bf16.msra.mxu0 %v885
      %928 = vmatprep.subr.bf16.mxu0 0
      %929 = vmatpush1.bf16.msra.mxu0 %v886
      %930 = vmatprep.subr.bf16.mxu0 0
      %931 = vmatpush1.bf16.msra.mxu0 %v887
      %932 = vmatprep.subr.bf16.mxu0 0
      %933 = vmatpush1.bf16.msra.mxu0 %v888
      %934 = vmatprep.subr.bf16.mxu0 0
      %935 = vmatpush1.bf16.msra.mxu0 %v889
      %936 = vmatprep.subr.bf16.mxu0 0
      %937 = vmatpush1.bf16.msra.mxu0 %v890
      %938 = vmatprep.subr.bf16.mxu0 0
      %939 = vmatpush1.bf16.msra.mxu0 %v891
      %940 = vmatprep.subr.bf16.mxu0 0
      %941 = vmatpush1.bf16.msra.mxu0 %v892
      %942 = vmatprep.subr.bf16.mxu0 0
      %943 = vmatpush1.bf16.msra.mxu0 %v893
      %944 = vmatprep.subr.bf16.mxu0 0
      %945 = vmatpush1.bf16.msra.mxu0 %v894
      %946 = vmatprep.subr.bf16.mxu0 0
      %947 = vmatpush1.bf16.msra.mxu0 %v895
      %948 = vmatprep.subr.bf16.mxu0 0
      %949 = vmatpush1.bf16.msra.mxu0 %v896
      %950 = vmatprep.subr.bf16.mxu0 0
      %951 = vmatpush1.bf16.msra.mxu0 %v897
      %952 = vmatprep.subr.bf16.mxu0 0
      %953 = vmatpush1.bf16.msra.mxu0 %v898
      %954 = vmatprep.mubr.bf16.mxu0 %v797
      %955 = vmatmul.mubr.bf16.gmra.mrb[0].mxu0 %v785
      %v956 = vpop.f32.mrb[0].mxu0
      %v957 = vadd.f32 0.0, %v956
      %v958 = vpop.f32.mrb[0].mxu0
      %v959 = vpop.f32.mrb[0].mxu0
      %v960 = vadd.f32 0.0, %v959
      %v961 = vpop.f32.mrb[0].mxu0
      %962 = vdwg.mxu0
      %963 = vmatprep.subr.bf16.mxu0 0
      %964 = vmatpush1.bf16.msra.mxu0 %v899
      %965 = vmatprep.subr.bf16.mxu0 0
      %966 = vmatpush1.bf16.msra.mxu0 %v900
      %967 = vmatprep.subr.bf16.mxu0 0
      %968 = vmatpush1.bf16.msra.mxu0 0
      %969 = vmatprep.subr.bf16.mxu0 0
      %970 = vmatpush1.bf16.msra.mxu0 0
      %971 = vmatprep.subr.bf16.mxu0 0
      %972 = vmatpush1.bf16.msra.mxu0 0
      %973 = vmatprep.subr.bf16.mxu0 0
      %974 = vmatpush1.bf16.msra.mxu0 0
      %975 = vmatprep.subr.bf16.mxu0 0
      %976 = vmatpush1.bf16.msra.mxu0 0
      %977 = vmatprep.subr.bf16.mxu0 0
      %978 = vmatpush1.bf16.msra.mxu0 0
      %979 = vmatprep.subr.bf16.mxu0 0
      %980 = vmatpush1.bf16.msra.mxu0 0
      %981 = vmatprep.subr.bf16.mxu0 0
      %982 = vmatpush1.bf16.msra.mxu0 0
      %983 = vmatprep.subr.bf16.mxu0 0
      %984 = vmatpush1.bf16.msra.mxu0 0
      %985 = vmatprep.subr.bf16.mxu0 0
      %986 = vmatpush1.bf16.msra.mxu0 0
      %987 = vmatprep.subr.bf16.mxu0 0
      %988 = vmatpush1.bf16.msra.mxu0 0
      %989 = vmatprep.subr.bf16.mxu0 0
      %990 = vmatpush1.bf16.msra.mxu0 0
      %991 = vmatprep.subr.bf16.mxu0 0
      %992 = vmatpush1.bf16.msra.mxu0 0
      %993 = vmatprep.subr.bf16.mxu0 0
      %994 = vmatpush1.bf16.msra.mxu0 0
      %995 = vmatprep.mubr.bf16.mxu0 0
      %996 = vmatmul.mubr.bf16.gmra.mrb[0].mxu0 %v920
      %v997 = vpop.f32.mrb[0].mxu0
      %v998 = vadd.f32 %v957, %v997
      %v999 = vpop.f32.mrb[0].mxu0
      %v1000 = vpop.f32.mrb[0].mxu0
      %v1001 = vadd.f32 %v960, %v1000
      %v1002 = vpop.f32.mrb[0].mxu0
      %1003 = vdwg.mxu0
      %s1004 = scalar_lea.vmem %s2, 432
      %v1005 = vld [vmem:[%s1004] sm:$0xf]
      %v1006 = vld [vmem:[%s1004 + $0x4] sm:$0xf]
      %v1007 = vld [vmem:[%s1004 + $0x8] sm:$0xf]
      %v1008 = vld [vmem:[%s1004 + $0xc] sm:$0xf]
      %v1009 = vld [vmem:[%s1004 + $0x10] sm:$0xf]
      %v1010 = vld [vmem:[%s1004 + $0x14] sm:$0xf]
      %v1011 = vld [vmem:[%s1004 + $0x18] sm:$0xf]
      %v1012 = vld [vmem:[%s1004 + $0x1c] sm:$0xf]
      %v1013 = vld [vmem:[%s1004 + $0x20] sm:$0xf]
      %v1014 = vld [vmem:[%s1004 + $0x24] sm:$0xf]
      %v1015 = vld [vmem:[%s1004 + $0x28] sm:$0xf]
      %v1016 = vld [vmem:[%s1004 + $0x2c] sm:$0xf]
      %v1017 = vld [vmem:[%s1004 + $0x30] sm:$0xf]
      %v1018 = vld [vmem:[%s1004 + $0x34] sm:$0xf]
      %v1019 = vld [vmem:[%s1004 + $0x38] sm:$0xf]
      %v1020 = vld [vmem:[%s1004 + $0x3c] sm:$0xf]
      %v1021 = vld [vmem:[%s1004 + $0x40] sm:$0xf]
      %v1022 = vld [vmem:[%s1004 + $0x44] sm:$0xf]
      %v1023 = vld [vmem:[%s1004 + $0x48] sm:$0xf]
      %v1024 = vld [vmem:[%s1004 + $0x4c] sm:$0xf]
      %v1025 = vld [vmem:[%s1004 + $0x50] sm:$0xf]
      %v1026 = vld [vmem:[%s1004 + $0x54] sm:$0xf]
      %v1027 = vld [vmem:[%s1004 + $0x58] sm:$0xf]
      %v1028 = vld [vmem:[%s1004 + $0x5c] sm:$0xf]
      %v1029 = vld [vmem:[%s1004 + $0x60] sm:$0xf]
      %v1030 = vld [vmem:[%s1004 + $0x64] sm:$0xf]
      %v1031 = vld [vmem:[%s1004 + $0x68] sm:$0xf]
      %v1032 = vld [vmem:[%s1004 + $0x6c] sm:$0xf]
      %v1033 = vld [vmem:[%s1004 + $0x70] sm:$0xf]
      %v1034 = vld [vmem:[%s1004 + $0x74] sm:$0xf]
      %v1035 = vld [vmem:[%s1004 + $0x78] sm:$0xf]
      %v1036 = vld [vmem:[%s1004 + $0x7c] sm:$0xf]
      %v1037 = vld [vmem:[%s1004 + $0x80] sm:$0xf]
      %v1038 = vld [vmem:[%s1004 + $0x84] sm:$0xf]
      %v1039 = vld [vmem:[%s1004 + $0x88] sm:$0xf]
      %v1040 = vld [vmem:[%s1004 + $0x8c] sm:$0xf]
      %v1042 = vshrl.u32 %v270, 16
      %v1044 = vshll.u32 %v270, 16
      %v1046 = vrot.slane %v1044, 1
      %v1047 = vor.u32 %v1042, %v1046
      %v1049 = vshll.u32 %v273, 16
      %v1051 = vrot.slane %v1049, 1
      %v1052 = vsel %vm773, %v1047, %v1051
      %v1054 = vshrl.u32 %v271, 16
      %v1056 = vshll.u32 %v271, 16
      %v1058 = vrot.slane %v1056, 1
      %v1059 = vor.u32 %v1054, %v1058
      %v1061 = vshll.u32 %v274, 16
      %v1063 = vrot.slane %v1061, 1
      %v1064 = vsel %vm773, %v1059, %v1063
      %v1065 = vshrl.u32 %v272, 16
      %v1067 = vshll.u32 %v272, 16
      %v1069 = vrot.slane %v1067, 1
      %v1070 = vor.u32 %v1065, %v1069
      %v1072 = vshll.u32 %v275, 16
      %v1074 = vrot.slane %v1072, 1
      %v1075 = vsel %vm773, %v1070, %v1074
      %v1114 = vunpack.c.l.b16 %v1005
      %v1115 = vunpack.c.l.b16 %v1006
      %v1116 = vunpack.c.l.b16 %v1007
      %v1117 = vunpack.c.l.b16 %v1008
      %v1118 = vunpack.c.l.b16 %v1009
      %v1119 = vunpack.c.l.b16 %v1010
      %v1120 = vunpack.c.l.b16 %v1011
      %v1121 = vunpack.c.l.b16 %v1012
      %v1122 = vunpack.c.l.b16 %v1013
      %v1123 = vunpack.c.l.b16 %v1014
      %v1124 = vunpack.c.l.b16 %v1015
      %v1125 = vunpack.c.l.b16 %v1016
      %v1126 = vunpack.c.l.b16 %v1017
      %v1127 = vunpack.c.l.b16 %v1018
      %v1128 = vunpack.c.l.b16 %v1019
      %v1129 = vunpack.c.l.b16 %v1020
      %v1130 = vunpack.c.l.b16 %v1021
      %v1131 = vunpack.c.l.b16 %v1022
      %v1132 = vunpack.c.l.b16 %v1023
      %v1133 = vunpack.c.l.b16 %v1024
      %v1134 = vunpack.c.l.b16 %v1025
      %v1135 = vunpack.c.l.b16 %v1026
      %v1136 = vunpack.c.l.b16 %v1027
      %v1137 = vunpack.c.l.b16 %v1028
      %v1138 = vunpack.c.l.b16 %v1029
      %v1139 = vunpack.c.l.b16 %v1030
      %v1140 = vunpack.c.l.b16 %v1031
      %v1141 = vunpack.c.l.b16 %v1032
      %v1142 = vunpack.c.l.b16 %v1033
      %v1143 = vunpack.c.l.b16 %v1034
      %v1144 = vunpack.c.l.b16 %v1035
      %v1145 = vunpack.c.l.b16 %v1036
      %v1146 = vunpack.c.l.b16 %v1037
      %v1147 = vunpack.c.l.b16 %v1038
      %v1148 = vunpack.c.l.b16 %v1039
      %v1149 = vunpack.c.l.b16 %v1040
      %v1150 = vpack.c.b16 %v1115, %v1114
      %v1151 = vpack.c.b16 %v1117, %v1116
      %v1152 = vpack.c.b16 %v1119, %v1118
      %v1153 = vpack.c.b16 %v1121, %v1120
      %v1154 = vpack.c.b16 %v1123, %v1122
      %v1155 = vpack.c.b16 %v1125, %v1124
      %v1156 = vpack.c.b16 %v1127, %v1126
      %v1157 = vpack.c.b16 %v1129, %v1128
      %v1158 = vpack.c.b16 %v1131, %v1130
      %v1159 = vpack.c.b16 %v1133, %v1132
      %v1160 = vpack.c.b16 %v1135, %v1134
      %v1161 = vpack.c.b16 %v1137, %v1136
      %v1162 = vpack.c.b16 %v1139, %v1138
      %v1163 = vpack.c.b16 %v1141, %v1140
      %v1164 = vpack.c.b16 %v1143, %v1142
      %v1165 = vpack.c.b16 %v1145, %v1144
      %v1166 = vpack.c.b16 %v1147, %v1146
      %v1167 = vpack.c.b16 %v1149, %v1148
      %v1187 = vsel %vm457, %v1075, 0
      %1189 = vmatprep.subr.bf16.mxu0 0
      %1190 = vmatpush1.bf16.msra.mxu0 %v1150
      %1191 = vmatprep.subr.bf16.mxu0 0
      %1192 = vmatpush1.bf16.msra.mxu0 %v1151
      %1193 = vmatprep.subr.bf16.mxu0 0
      %1194 = vmatpush1.bf16.msra.mxu0 %v1152
      %1195 = vmatprep.subr.bf16.mxu0 0
      %1196 = vmatpush1.bf16.msra.mxu0 %v1153
      %1197 = vmatprep.subr.bf16.mxu0 0
      %1198 = vmatpush1.bf16.msra.mxu0 %v1154
      %1199 = vmatprep.subr.bf16.mxu0 0
      %1200 = vmatpush1.bf16.msra.mxu0 %v1155
      %1201 = vmatprep.subr.bf16.mxu0 0
      %1202 = vmatpush1.bf16.msra.mxu0 %v1156
      %1203 = vmatprep.subr.bf16.mxu0 0
      %1204 = vmatpush1.bf16.msra.mxu0 %v1157
      %1205 = vmatprep.subr.bf16.mxu0 0
      %1206 = vmatpush1.bf16.msra.mxu0 %v1158
      %1207 = vmatprep.subr.bf16.mxu0 0
      %1208 = vmatpush1.bf16.msra.mxu0 %v1159
      %1209 = vmatprep.subr.bf16.mxu0 0
      %1210 = vmatpush1.bf16.msra.mxu0 %v1160
      %1211 = vmatprep.subr.bf16.mxu0 0
      %1212 = vmatpush1.bf16.msra.mxu0 %v1161
      %1213 = vmatprep.subr.bf16.mxu0 0
      %1214 = vmatpush1.bf16.msra.mxu0 %v1162
      %1215 = vmatprep.subr.bf16.mxu0 0
      %1216 = vmatpush1.bf16.msra.mxu0 %v1163
      %1217 = vmatprep.subr.bf16.mxu0 0
      %1218 = vmatpush1.bf16.msra.mxu0 %v1164
      %1219 = vmatprep.subr.bf16.mxu0 0
      %1220 = vmatpush1.bf16.msra.mxu0 %v1165
      %1221 = vmatprep.mubr.bf16.mxu0 %v1064
      %1222 = vmatmul.mubr.bf16.gmra.mrb[0].mxu0 %v1052
      %v1223 = vpop.f32.mrb[0].mxu0
      %v1224 = vadd.f32 0.0, %v1223
      %v1225 = vpop.f32.mrb[0].mxu0
      %v1226 = vpop.f32.mrb[0].mxu0
      %v1227 = vadd.f32 0.0, %v1226
      %v1228 = vpop.f32.mrb[0].mxu0
      %1229 = vdwg.mxu0
      %1230 = vmatprep.subr.bf16.mxu0 0
      %1231 = vmatpush1.bf16.msra.mxu0 %v1166
      %1232 = vmatprep.subr.bf16.mxu0 0
      %1233 = vmatpush1.bf16.msra.mxu0 %v1167
      %1234 = vmatprep.subr.bf16.mxu0 0
      %1235 = vmatpush1.bf16.msra.mxu0 0
      %1236 = vmatprep.subr.bf16.mxu0 0
      %1237 = vmatpush1.bf16.msra.mxu0 0
      %1238 = vmatprep.subr.bf16.mxu0 0
      %1239 = vmatpush1.bf16.msra.mxu0 0
      %1240 = vmatprep.subr.bf16.mxu0 0
      %1241 = vmatpush1.bf16.msra.mxu0 0
      %1242 = vmatprep.subr.bf16.mxu0 0
      %1243 = vmatpush1.bf16.msra.mxu0 0
      %1244 = vmatprep.subr.bf16.mxu0 0
      %1245 = vmatpush1.bf16.msra.mxu0 0
      %1246 = vmatprep.subr.bf16.mxu0 0
      %1247 = vmatpush1.bf16.msra.mxu0 0
      %1248 = vmatprep.subr.bf16.mxu0 0
      %1249 = vmatpush1.bf16.msra.mxu0 0
      %1250 = vmatprep.subr.bf16.mxu0 0
      %1251 = vmatpush1.bf16.msra.mxu0 0
      %1252 = vmatprep.subr.bf16.mxu0 0
      %1253 = vmatpush1.bf16.msra.mxu0 0
      %1254 = vmatprep.subr.bf16.mxu0 0
      %1255 = vmatpush1.bf16.msra.mxu0 0
      %1256 = vmatprep.subr.bf16.mxu0 0
      %1257 = vmatpush1.bf16.msra.mxu0 0
      %1258 = vmatprep.subr.bf16.mxu0 0
      %1259 = vmatpush1.bf16.msra.mxu0 0
      %1260 = vmatprep.subr.bf16.mxu0 0
      %1261 = vmatpush1.bf16.msra.mxu0 0
      %1262 = vmatprep.mubr.bf16.mxu0 0
      %1263 = vmatmul.mubr.bf16.gmra.mrb[0].mxu0 %v1187
      %v1264 = vpop.f32.mrb[0].mxu0
      %v1265 = vadd.f32 %v1224, %v1264
      %v1266 = vpop.f32.mrb[0].mxu0
      %v1267 = vpop.f32.mrb[0].mxu0
      %v1268 = vadd.f32 %v1227, %v1267
      %v1269 = vpop.f32.mrb[0].mxu0
      %1270 = vdwg.mxu0
      %v1271 = vadd.f32 %v730, %v998
      %v1272 = vadd.f32 %v733, %v1001
      %v1273 = vadd.f32 %v1271, %v1265
      %v1274 = vadd.f32 %v1272, %v1268
      %s1275 = scalar_lea.vmem %s2, 576
      %v1276 = vld [vmem:[%s1275] sm:$0xf]
      %v1277 = vld [vmem:[%s1275 + $0x4] sm:$0xf]
      %v1278 = vld [vmem:[%s1275 + $0x8] sm:$0xf]
      %v1279 = vld [vmem:[%s1275 + $0xc] sm:$0xf]
      %v1280 = vld [vmem:[%s1275 + $0x10] sm:$0xf]
      %v1281 = vld [vmem:[%s1275 + $0x14] sm:$0xf]
      %v1282 = vld [vmem:[%s1275 + $0x18] sm:$0xf]
      %v1283 = vld [vmem:[%s1275 + $0x1c] sm:$0xf]
      %v1284 = vld [vmem:[%s1275 + $0x20] sm:$0xf]
      %v1285 = vld [vmem:[%s1275 + $0x24] sm:$0xf]
      %v1286 = vld [vmem:[%s1275 + $0x28] sm:$0xf]
      %v1287 = vld [vmem:[%s1275 + $0x2c] sm:$0xf]
      %v1288 = vld [vmem:[%s1275 + $0x30] sm:$0xf]
      %v1289 = vld [vmem:[%s1275 + $0x34] sm:$0xf]
      %v1290 = vld [vmem:[%s1275 + $0x38] sm:$0xf]
      %v1291 = vld [vmem:[%s1275 + $0x3c] sm:$0xf]
      %v1292 = vld [vmem:[%s1275 + $0x40] sm:$0xf]
      %v1293 = vld [vmem:[%s1275 + $0x44] sm:$0xf]
      %v1294 = vld [vmem:[%s1275 + $0x48] sm:$0xf]
      %v1295 = vld [vmem:[%s1275 + $0x4c] sm:$0xf]
      %v1296 = vld [vmem:[%s1275 + $0x50] sm:$0xf]
      %v1297 = vld [vmem:[%s1275 + $0x54] sm:$0xf]
      %v1298 = vld [vmem:[%s1275 + $0x58] sm:$0xf]
      %v1299 = vld [vmem:[%s1275 + $0x5c] sm:$0xf]
      %v1300 = vld [vmem:[%s1275 + $0x60] sm:$0xf]
      %v1301 = vld [vmem:[%s1275 + $0x64] sm:$0xf]
      %v1302 = vld [vmem:[%s1275 + $0x68] sm:$0xf]
      %v1303 = vld [vmem:[%s1275 + $0x6c] sm:$0xf]
      %v1304 = vld [vmem:[%s1275 + $0x70] sm:$0xf]
      %v1305 = vld [vmem:[%s1275 + $0x74] sm:$0xf]
      %v1306 = vld [vmem:[%s1275 + $0x78] sm:$0xf]
      %v1307 = vld [vmem:[%s1275 + $0x7c] sm:$0xf]
      %v1308 = vld [vmem:[%s1275 + $0x80] sm:$0xf]
      %v1309 = vld [vmem:[%s1275 + $0x84] sm:$0xf]
      %v1310 = vld [vmem:[%s1275 + $0x88] sm:$0xf]
      %v1311 = vld [vmem:[%s1275 + $0x8c] sm:$0xf]
      %vm1318 = vcmask 1046528
      %v1319 = vrot.slane %v255, 1
      %v1320 = vrot.slane %v258, 1
      %v1321 = vsel %vm1318, %v1319, %v1320
      %v1322 = vrot.slane %v256, 1
      %v1323 = vrot.slane %v259, 1
      %v1324 = vsel %vm1318, %v1322, %v1323
      %v1325 = vrot.slane %v257, 1
      %v1326 = vrot.slane %v260, 1
      %v1327 = vsel %vm1318, %v1325, %v1326
      %v1366 = vunpack.c.l.b16 %v1276
      %v1367 = vunpack.c.l.b16 %v1277
      %v1368 = vunpack.c.l.b16 %v1278
      %v1369 = vunpack.c.l.b16 %v1279
      %v1370 = vunpack.c.l.b16 %v1280
      %v1371 = vunpack.c.l.b16 %v1281
      %v1372 = vunpack.c.l.b16 %v1282
      %v1373 = vunpack.c.l.b16 %v1283
      %v1374 = vunpack.c.l.b16 %v1284
      %v1375 = vunpack.c.l.b16 %v1285
      %v1376 = vunpack.c.l.b16 %v1286
      %v1377 = vunpack.c.l.b16 %v1287
      %v1378 = vunpack.c.l.b16 %v1288
      %v1379 = vunpack.c.l.b16 %v1289
      %v1380 = vunpack.c.l.b16 %v1290
      %v1381 = vunpack.c.l.b16 %v1291
      %v1382 = vunpack.c.l.b16 %v1292
      %v1383 = vunpack.c.l.b16 %v1293
      %v1384 = vunpack.c.l.b16 %v1294
      %v1385 = vunpack.c.l.b16 %v1295
      %v1386 = vunpack.c.l.b16 %v1296
      %v1387 = vunpack.c.l.b16 %v1297
      %v1388 = vunpack.c.l.b16 %v1298
      %v1389 = vunpack.c.l.b16 %v1299
      %v1390 = vunpack.c.l.b16 %v1300
      %v1391 = vunpack.c.l.b16 %v1301
      %v1392 = vunpack.c.l.b16 %v1302
      %v1393 = vunpack.c.l.b16 %v1303
      %v1394 = vunpack.c.l.b16 %v1304
      %v1395 = vunpack.c.l.b16 %v1305
      %v1396 = vunpack.c.l.b16 %v1306
      %v1397 = vunpack.c.l.b16 %v1307
      %v1398 = vunpack.c.l.b16 %v1308
      %v1399 = vunpack.c.l.b16 %v1309
      %v1400 = vunpack.c.l.b16 %v1310
      %v1401 = vunpack.c.l.b16 %v1311
      %v1402 = vpack.c.b16 %v1367, %v1366
      %v1403 = vpack.c.b16 %v1369, %v1368
      %v1404 = vpack.c.b16 %v1371, %v1370
      %v1405 = vpack.c.b16 %v1373, %v1372
      %v1406 = vpack.c.b16 %v1375, %v1374
      %v1407 = vpack.c.b16 %v1377, %v1376
      %v1408 = vpack.c.b16 %v1379, %v1378
      %v1409 = vpack.c.b16 %v1381, %v1380
      %v1410 = vpack.c.b16 %v1383, %v1382
      %v1411 = vpack.c.b16 %v1385, %v1384
      %v1412 = vpack.c.b16 %v1387, %v1386
      %v1413 = vpack.c.b16 %v1389, %v1388
      %v1414 = vpack.c.b16 %v1391, %v1390
      %v1415 = vpack.c.b16 %v1393, %v1392
      %v1416 = vpack.c.b16 %v1395, %v1394
      %v1417 = vpack.c.b16 %v1397, %v1396
      %v1418 = vpack.c.b16 %v1399, %v1398
      %v1419 = vpack.c.b16 %v1401, %v1400
      %v1439 = vsel %vm457, %v1327, 0
      %1441 = vmatprep.subr.bf16.mxu0 0
      %1442 = vmatpush1.bf16.msra.mxu0 %v1402
      %1443 = vmatprep.subr.bf16.mxu0 0
      %1444 = vmatpush1.bf16.msra.mxu0 %v1403
      %1445 = vmatprep.subr.bf16.mxu0 0
      %1446 = vmatpush1.bf16.msra.mxu0 %v1404
      %1447 = vmatprep.subr.bf16.mxu0 0
      %1448 = vmatpush1.bf16.msra.mxu0 %v1405
      %1449 = vmatprep.subr.bf16.mxu0 0
      %1450 = vmatpush1.bf16.msra.mxu0 %v1406
      %1451 = vmatprep.subr.bf16.mxu0 0
      %1452 = vmatpush1.bf16.msra.mxu0 %v1407
      %1453 = vmatprep.subr.bf16.mxu0 0
      %1454 = vmatpush1.bf16.msra.mxu0 %v1408
      %1455 = vmatprep.subr.bf16.mxu0 0
      %1456 = vmatpush1.bf16.msra.mxu0 %v1409
      %1457 = vmatprep.subr.bf16.mxu0 0
      %1458 = vmatpush1.bf16.msra.mxu0 %v1410
      %1459 = vmatprep.subr.bf16.mxu0 0
      %1460 = vmatpush1.bf16.msra.mxu0 %v1411
      %1461 = vmatprep.subr.bf16.mxu0 0
      %1462 = vmatpush1.bf16.msra.mxu0 %v1412
      %1463 = vmatprep.subr.bf16.mxu0 0
      %1464 = vmatpush1.bf16.msra.mxu0 %v1413
      %1465 = vmatprep.subr.bf16.mxu0 0
      %1466 = vmatpush1.bf16.msra.mxu0 %v1414
      %1467 = vmatprep.subr.bf16.mxu0 0
      %1468 = vmatpush1.bf16.msra.mxu0 %v1415
      %1469 = vmatprep.subr.bf16.mxu0 0
      %1470 = vmatpush1.bf16.msra.mxu0 %v1416
      %1471 = vmatprep.subr.bf16.mxu0 0
      %1472 = vmatpush1.bf16.msra.mxu0 %v1417
      %1473 = vmatprep.mubr.bf16.mxu0 %v1324
      %1474 = vmatmul.mubr.bf16.gmra.mrb[0].mxu0 %v1321
      %v1475 = vpop.f32.mrb[0].mxu0
      %v1476 = vadd.f32 0.0, %v1475
      %v1477 = vpop.f32.mrb[0].mxu0
      %v1478 = vpop.f32.mrb[0].mxu0
      %v1479 = vadd.f32 0.0, %v1478
      %v1480 = vpop.f32.mrb[0].mxu0
      %1481 = vdwg.mxu0
      %1482 = vmatprep.subr.bf16.mxu0 0
      %1483 = vmatpush1.bf16.msra.mxu0 %v1418
      %1484 = vmatprep.subr.bf16.mxu0 0
      %1485 = vmatpush1.bf16.msra.mxu0 %v1419
      %1486 = vmatprep.subr.bf16.mxu0 0
      %1487 = vmatpush1.bf16.msra.mxu0 0
      %1488 = vmatprep.subr.bf16.mxu0 0
      %1489 = vmatpush1.bf16.msra.mxu0 0
      %1490 = vmatprep.subr.bf16.mxu0 0
      %1491 = vmatpush1.bf16.msra.mxu0 0
      %1492 = vmatprep.subr.bf16.mxu0 0
      %1493 = vmatpush1.bf16.msra.mxu0 0
      %1494 = vmatprep.subr.bf16.mxu0 0
      %1495 = vmatpush1.bf16.msra.mxu0 0
      %1496 = vmatprep.subr.bf16.mxu0 0
      %1497 = vmatpush1.bf16.msra.mxu0 0
      %1498 = vmatprep.subr.bf16.mxu0 0
      %1499 = vmatpush1.bf16.msra.mxu0 0
      %1500 = vmatprep.subr.bf16.mxu0 0
      %1501 = vmatpush1.bf16.msra.mxu0 0
      %1502 = vmatprep.subr.bf16.mxu0 0
      %1503 = vmatpush1.bf16.msra.mxu0 0
      %1504 = vmatprep.subr.bf16.mxu0 0
      %1505 = vmatpush1.bf16.msra.mxu0 0
      %1506 = vmatprep.subr.bf16.mxu0 0
      %1507 = vmatpush1.bf16.msra.mxu0 0
      %1508 = vmatprep.subr.bf16.mxu0 0
      %1509 = vmatpush1.bf16.msra.mxu0 0
      %1510 = vmatprep.subr.bf16.mxu0 0
      %1511 = vmatpush1.bf16.msra.mxu0 0
      %1512 = vmatprep.subr.bf16.mxu0 0
      %1513 = vmatpush1.bf16.msra.mxu0 0
      %1514 = vmatprep.mubr.bf16.mxu0 0
      %1515 = vmatmul.mubr.bf16.gmra.mrb[0].mxu0 %v1439
      %v1516 = vpop.f32.mrb[0].mxu0
      %v1517 = vadd.f32 %v1476, %v1516
      %v1518 = vpop.f32.mrb[0].mxu0
      %v1519 = vpop.f32.mrb[0].mxu0
      %v1520 = vadd.f32 %v1479, %v1519
      %v1521 = vpop.f32.mrb[0].mxu0
      %1522 = vdwg.mxu0
      %s1523 = scalar_lea.vmem %s2, 720
      %v1524 = vld [vmem:[%s1523] sm:$0xf]
      %v1525 = vld [vmem:[%s1523 + $0x4] sm:$0xf]
      %v1526 = vld [vmem:[%s1523 + $0x8] sm:$0xf]
      %v1527 = vld [vmem:[%s1523 + $0xc] sm:$0xf]
      %v1528 = vld [vmem:[%s1523 + $0x10] sm:$0xf]
      %v1529 = vld [vmem:[%s1523 + $0x14] sm:$0xf]
      %v1530 = vld [vmem:[%s1523 + $0x18] sm:$0xf]
      %v1531 = vld [vmem:[%s1523 + $0x1c] sm:$0xf]
      %v1532 = vld [vmem:[%s1523 + $0x20] sm:$0xf]
      %v1533 = vld [vmem:[%s1523 + $0x24] sm:$0xf]
      %v1534 = vld [vmem:[%s1523 + $0x28] sm:$0xf]
      %v1535 = vld [vmem:[%s1523 + $0x2c] sm:$0xf]
      %v1536 = vld [vmem:[%s1523 + $0x30] sm:$0xf]
      %v1537 = vld [vmem:[%s1523 + $0x34] sm:$0xf]
      %v1538 = vld [vmem:[%s1523 + $0x38] sm:$0xf]
      %v1539 = vld [vmem:[%s1523 + $0x3c] sm:$0xf]
      %v1540 = vld [vmem:[%s1523 + $0x40] sm:$0xf]
      %v1541 = vld [vmem:[%s1523 + $0x44] sm:$0xf]
      %v1542 = vld [vmem:[%s1523 + $0x48] sm:$0xf]
      %v1543 = vld [vmem:[%s1523 + $0x4c] sm:$0xf]
      %v1544 = vld [vmem:[%s1523 + $0x50] sm:$0xf]
      %v1545 = vld [vmem:[%s1523 + $0x54] sm:$0xf]
      %v1546 = vld [vmem:[%s1523 + $0x58] sm:$0xf]
      %v1547 = vld [vmem:[%s1523 + $0x5c] sm:$0xf]
      %v1548 = vld [vmem:[%s1523 + $0x60] sm:$0xf]
      %v1549 = vld [vmem:[%s1523 + $0x64] sm:$0xf]
      %v1550 = vld [vmem:[%s1523 + $0x68] sm:$0xf]
      %v1551 = vld [vmem:[%s1523 + $0x6c] sm:$0xf]
      %v1552 = vld [vmem:[%s1523 + $0x70] sm:$0xf]
      %v1553 = vld [vmem:[%s1523 + $0x74] sm:$0xf]
      %v1554 = vld [vmem:[%s1523 + $0x78] sm:$0xf]
      %v1555 = vld [vmem:[%s1523 + $0x7c] sm:$0xf]
      %v1556 = vld [vmem:[%s1523 + $0x80] sm:$0xf]
      %v1557 = vld [vmem:[%s1523 + $0x84] sm:$0xf]
      %v1558 = vld [vmem:[%s1523 + $0x88] sm:$0xf]
      %v1559 = vld [vmem:[%s1523 + $0x8c] sm:$0xf]
      %v1566 = vrot.slane %v270, 1
      %v1567 = vrot.slane %v273, 1
      %v1568 = vsel %vm1318, %v1566, %v1567
      %v1569 = vrot.slane %v271, 1
      %v1570 = vrot.slane %v274, 1
      %v1571 = vsel %vm1318, %v1569, %v1570
      %v1572 = vrot.slane %v272, 1
      %v1573 = vrot.slane %v275, 1
      %v1574 = vsel %vm1318, %v1572, %v1573
      %v1613 = vunpack.c.l.b16 %v1524
      %v1614 = vunpack.c.l.b16 %v1525
      %v1615 = vunpack.c.l.b16 %v1526
      %v1616 = vunpack.c.l.b16 %v1527
      %v1617 = vunpack.c.l.b16 %v1528
      %v1618 = vunpack.c.l.b16 %v1529
      %v1619 = vunpack.c.l.b16 %v1530
      %v1620 = vunpack.c.l.b16 %v1531
      %v1621 = vunpack.c.l.b16 %v1532
      %v1622 = vunpack.c.l.b16 %v1533
      %v1623 = vunpack.c.l.b16 %v1534
      %v1624 = vunpack.c.l.b16 %v1535
      %v1625 = vunpack.c.l.b16 %v1536
      %v1626 = vunpack.c.l.b16 %v1537
      %v1627 = vunpack.c.l.b16 %v1538
      %v1628 = vunpack.c.l.b16 %v1539
      %v1629 = vunpack.c.l.b16 %v1540
      %v1630 = vunpack.c.l.b16 %v1541
      %v1631 = vunpack.c.l.b16 %v1542
      %v1632 = vunpack.c.l.b16 %v1543
      %v1633 = vunpack.c.l.b16 %v1544
      %v1634 = vunpack.c.l.b16 %v1545
      %v1635 = vunpack.c.l.b16 %v1546
      %v1636 = vunpack.c.l.b16 %v1547
      %v1637 = vunpack.c.l.b16 %v1548
      %v1638 = vunpack.c.l.b16 %v1549
      %v1639 = vunpack.c.l.b16 %v1550
      %v1640 = vunpack.c.l.b16 %v1551
      %v1641 = vunpack.c.l.b16 %v1552
      %v1642 = vunpack.c.l.b16 %v1553
      %v1643 = vunpack.c.l.b16 %v1554
      %v1644 = vunpack.c.l.b16 %v1555
      %v1645 = vunpack.c.l.b16 %v1556
      %v1646 = vunpack.c.l.b16 %v1557
      %v1647 = vunpack.c.l.b16 %v1558
      %v1648 = vunpack.c.l.b16 %v1559
      %v1649 = vpack.c.b16 %v1614, %v1613
      %v1650 = vpack.c.b16 %v1616, %v1615
      %v1651 = vpack.c.b16 %v1618, %v1617
      %v1652 = vpack.c.b16 %v1620, %v1619
      %v1653 = vpack.c.b16 %v1622, %v1621
      %v1654 = vpack.c.b16 %v1624, %v1623
      %v1655 = vpack.c.b16 %v1626, %v1625
      %v1656 = vpack.c.b16 %v1628, %v1627
      %v1657 = vpack.c.b16 %v1630, %v1629
      %v1658 = vpack.c.b16 %v1632, %v1631
      %v1659 = vpack.c.b16 %v1634, %v1633
      %v1660 = vpack.c.b16 %v1636, %v1635
      %v1661 = vpack.c.b16 %v1638, %v1637
      %v1662 = vpack.c.b16 %v1640, %v1639
      %v1663 = vpack.c.b16 %v1642, %v1641
      %v1664 = vpack.c.b16 %v1644, %v1643
      %v1665 = vpack.c.b16 %v1646, %v1645
      %v1666 = vpack.c.b16 %v1648, %v1647
      %v1686 = vsel %vm457, %v1574, 0
      %1688 = vmatprep.subr.bf16.mxu0 0
      %1689 = vmatpush1.bf16.msra.mxu0 %v1649
      %1690 = vmatprep.subr.bf16.mxu0 0
      %1691 = vmatpush1.bf16.msra.mxu0 %v1650
      %1692 = vmatprep.subr.bf16.mxu0 0
      %1693 = vmatpush1.bf16.msra.mxu0 %v1651
      %1694 = vmatprep.subr.bf16.mxu0 0
      %1695 = vmatpush1.bf16.msra.mxu0 %v1652
      %1696 = vmatprep.subr.bf16.mxu0 0
      %1697 = vmatpush1.bf16.msra.mxu0 %v1653
      %1698 = vmatprep.subr.bf16.mxu0 0
      %1699 = vmatpush1.bf16.msra.mxu0 %v1654
      %1700 = vmatprep.subr.bf16.mxu0 0
      %1701 = vmatpush1.bf16.msra.mxu0 %v1655
      %1702 = vmatprep.subr.bf16.mxu0 0
      %1703 = vmatpush1.bf16.msra.mxu0 %v1656
      %1704 = vmatprep.subr.bf16.mxu0 0
      %1705 = vmatpush1.bf16.msra.mxu0 %v1657
      %1706 = vmatprep.subr.bf16.mxu0 0
      %1707 = vmatpush1.bf16.msra.mxu0 %v1658
      %1708 = vmatprep.subr.bf16.mxu0 0
      %1709 = vmatpush1.bf16.msra.mxu0 %v1659
      %1710 = vmatprep.subr.bf16.mxu0 0
      %1711 = vmatpush1.bf16.msra.mxu0 %v1660
      %1712 = vmatprep.subr.bf16.mxu0 0
      %1713 = vmatpush1.bf16.msra.mxu0 %v1661
      %1714 = vmatprep.subr.bf16.mxu0 0
      %1715 = vmatpush1.bf16.msra.mxu0 %v1662
      %1716 = vmatprep.subr.bf16.mxu0 0
      %1717 = vmatpush1.bf16.msra.mxu0 %v1663
      %1718 = vmatprep.subr.bf16.mxu0 0
      %1719 = vmatpush1.bf16.msra.mxu0 %v1664
      %1720 = vmatprep.mubr.bf16.mxu0 %v1571
      %1721 = vmatmul.mubr.bf16.gmra.mrb[0].mxu0 %v1568
      %v1722 = vpop.f32.mrb[0].mxu0
      %v1723 = vadd.f32 0.0, %v1722
      %v1724 = vpop.f32.mrb[0].mxu0
      %v1725 = vpop.f32.mrb[0].mxu0
      %v1726 = vadd.f32 0.0, %v1725
      %v1727 = vpop.f32.mrb[0].mxu0
      %1728 = vdwg.mxu0
      %1729 = vmatprep.subr.bf16.mxu0 0
      %1730 = vmatpush1.bf16.msra.mxu0 %v1665
      %1731 = vmatprep.subr.bf16.mxu0 0
      %1732 = vmatpush1.bf16.msra.mxu0 %v1666
      %1733 = vmatprep.subr.bf16.mxu0 0
      %1734 = vmatpush1.bf16.msra.mxu0 0
      %1735 = vmatprep.subr.bf16.mxu0 0
      %1736 = vmatpush1.bf16.msra.mxu0 0
      %1737 = vmatprep.subr.bf16.mxu0 0
      %1738 = vmatpush1.bf16.msra.mxu0 0
      %1739 = vmatprep.subr.bf16.mxu0 0
      %1740 = vmatpush1.bf16.msra.mxu0 0
      %1741 = vmatprep.subr.bf16.mxu0 0
      %1742 = vmatpush1.bf16.msra.mxu0 0
      %1743 = vmatprep.subr.bf16.mxu0 0
      %1744 = vmatpush1.bf16.msra.mxu0 0
      %1745 = vmatprep.subr.bf16.mxu0 0
      %1746 = vmatpush1.bf16.msra.mxu0 0
      %1747 = vmatprep.subr.bf16.mxu0 0
      %1748 = vmatpush1.bf16.msra.mxu0 0
      %1749 = vmatprep.subr.bf16.mxu0 0
      %1750 = vmatpush1.bf16.msra.mxu0 0
      %1751 = vmatprep.subr.bf16.mxu0 0
      %1752 = vmatpush1.bf16.msra.mxu0 0
      %1753 = vmatprep.subr.bf16.mxu0 0
      %1754 = vmatpush1.bf16.msra.mxu0 0
      %1755 = vmatprep.subr.bf16.mxu0 0
      %1756 = vmatpush1.bf16.msra.mxu0 0
      %1757 = vmatprep.subr.bf16.mxu0 0
      %1758 = vmatpush1.bf16.msra.mxu0 0
      %1759 = vmatprep.subr.bf16.mxu0 0
      %1760 = vmatpush1.bf16.msra.mxu0 0
      %1761 = vmatprep.mubr.bf16.mxu0 0
      %1762 = vmatmul.mubr.bf16.gmra.mrb[0].mxu0 %v1686
      %v1763 = vpop.f32.mrb[0].mxu0
      %v1764 = vadd.f32 %v1723, %v1763
      %v1765 = vpop.f32.mrb[0].mxu0
      %v1766 = vpop.f32.mrb[0].mxu0
      %v1767 = vadd.f32 %v1726, %v1766
      %v1768 = vpop.f32.mrb[0].mxu0
      %1769 = vdwg.mxu0
      %v1770 = vadd.f32 %v1273, %v1517
      %v1771 = vadd.f32 %v1274, %v1520
      %v1772 = vadd.f32 %v1770, %v1764
      %v1773 = vadd.f32 %v1771, %v1767
      %v1774 = vld [vmem:[%s4] sm:$0x1]
      %v1775 = vlaneseq
      %v1776 = vshrl.u32 %v1775, 7
      %v1777 = vsub.s32 0, %v1776
      %v1778 = vrot.slane %v1774, %v1777
      %v1779 = vadd.f32 %v1772, %v1778
      %v1780 = vadd.f32 %v1773, %v1778
      %v1781 = vmax.f32 %v1779, 0.0
      %v1782 = vmax.f32 %v1780, 0.0
      %v1783 = vpack.c.bf16 %v1782, %v1781
      %v1784 = vld [vmem:[%s3] sm:$0xf]
      %v1785 = vld [vmem:[%s3 + $0x4] sm:$0xf]
      %v1786 = vld [vmem:[%s3 + $0x8] sm:$0xf]
      %v1787 = vld [vmem:[%s3 + $0xc] sm:$0xf]
      %v1788 = vld [vmem:[%s3 + $0x10] sm:$0xf]
      %v1789 = vld [vmem:[%s3 + $0x14] sm:$0xf]
      %v1790 = vld [vmem:[%s3 + $0x18] sm:$0xf]
      %v1791 = vld [vmem:[%s3 + $0x1c] sm:$0xf]
      %v1792 = vld [vmem:[%s4 + $0x1] sm:$0x1]
      %v1793 = vlaneseq
      %v1794 = vshrl.u32 %v1793, 7
      %v1795 = vsub.s32 0, %v1794
      %v1796 = vrot.slane %v1792, %v1795
      %v1805 = vunpack.c.l.b16 %v1784
      %v1806 = vunpack.c.l.b16 %v1785
      %v1807 = vunpack.c.l.b16 %v1786
      %v1808 = vunpack.c.l.b16 %v1787
      %v1809 = vunpack.c.l.b16 %v1788
      %v1810 = vunpack.c.l.b16 %v1789
      %v1811 = vunpack.c.l.b16 %v1790
      %v1812 = vunpack.c.l.b16 %v1791
      %v1813 = vpack.c.b16 %v1806, %v1805
      %v1814 = vpack.c.b16 %v1808, %v1807
      %v1815 = vpack.c.b16 %v1810, %v1809
      %v1816 = vpack.c.b16 %v1812, %v1811
      %vm1821 = vcmask 523264
      %v1823 = vsel %vm1821, %v1783, 0
      %1825 = vmatprep.subr.bf16.mxu0 0
      %1826 = vmatpush1.bf16.msra.mxu0 %v1813
      %1827 = vmatprep.subr.bf16.mxu0 0
      %1828 = vmatpush1.bf16.msra.mxu0 %v1814
      %1829 = vmatprep.subr.bf16.mxu0 0
      %1830 = vmatpush1.bf16.msra.mxu0 %v1815
      %1831 = vmatprep.subr.bf16.mxu0 0
      %1832 = vmatpush1.bf16.msra.mxu0 %v1816
      %1833 = vmatprep.subr.bf16.mxu0 0
      %1834 = vmatpush1.bf16.msra.mxu0 0
      %1835 = vmatprep.subr.bf16.mxu0 0
      %1836 = vmatpush1.bf16.msra.mxu0 0
      %1837 = vmatprep.subr.bf16.mxu0 0
      %1838 = vmatpush1.bf16.msra.mxu0 0
      %1839 = vmatprep.subr.bf16.mxu0 0
      %1840 = vmatpush1.bf16.msra.mxu0 0
      %1841 = vmatprep.subr.bf16.mxu0 0
      %1842 = vmatpush1.bf16.msra.mxu0 0
      %1843 = vmatprep.subr.bf16.mxu0 0
      %1844 = vmatpush1.bf16.msra.mxu0 0
      %1845 = vmatprep.subr.bf16.mxu0 0
      %1846 = vmatpush1.bf16.msra.mxu0 0
      %1847 = vmatprep.subr.bf16.mxu0 0
      %1848 = vmatpush1.bf16.msra.mxu0 0
      %1849 = vmatprep.subr.bf16.mxu0 0
      %1850 = vmatpush1.bf16.msra.mxu0 0
      %1851 = vmatprep.subr.bf16.mxu0 0
      %1852 = vmatpush1.bf16.msra.mxu0 0
      %1853 = vmatprep.subr.bf16.mxu0 0
      %1854 = vmatpush1.bf16.msra.mxu0 0
      %1855 = vmatprep.subr.bf16.mxu0 0
      %1856 = vmatpush1.bf16.msra.mxu0 0
      %1857 = vmatprep.mubr.bf16.mxu0 0
      %1858 = vmatmul.mubr.bf16.gmra.mrb[0].mxu0 %v1823
      %v1859 = vpop.f32.mrb[0].mxu0
      %v1860 = vadd.f32 %v1796, %v1859
      %v1861 = vpop.f32.mrb[0].mxu0
      %v1862 = vpop.f32.mrb[0].mxu0
      %v1863 = vadd.f32 %v1796, %v1862
      %v1864 = vpop.f32.mrb[0].mxu0
      %1865 = vdwg.mxu0
      %1866 = vst.msk [vmem:[%s244] sm:$0xff] %vm1821, %v1860
      %1867 = vst.msk [vmem:[%s244 + $0x8] sm:$0xff] %vm1821, %v1863
      %p1868 = scmp.lt.s32.totalorder %s16, 1
      %s1869 = scalar_select %p1868, %s16, 1
      %s1870 = smul.addr %s1869, 2
      %s1871 = smul.addr %s1870, 8
      %s1872 = scalar_lea.vmem %s5, %s1871
      // Predicated region
      $region41: #{abam_forward.2} parent=39 // pred_check
        %p1873 = pneg %p149
      $region42: #{abam_forward.2} parent=39 // pred_check_branch
        %1875 = sbr.rel (%p1873) target = $region44
      $region43: #{abam_forward.2} parent=39 // pred_region
        _
      $region44: #{abam_forward.2} parent=39 // pred_fallthru
        _
    $region40: #{abam_forward.2} parent=5 // pred_fallthru
      _
    %p1876 = scmp.le.s32.totalorder 2, %s11
    // Predicated region
    $region45: #{abam_forward.2} parent=5 // pred_check
      %p1877 = pneg %p1876
    $region46: #{abam_forward.2} parent=5 // pred_check_branch
      %1879 = sbr.rel (%p1877) target = $region48
    $region47: #{abam_forward.2} parent=5 // pred_region
      %s1880 = ssub.s32 %s11, 2
      // Predicated region
      $region49: #{abam_forward.2} parent=47 // pred_check
        %p1881 = pneg %p155
      $region50: #{abam_forward.2} parent=47 // pred_check_branch
        %1883 = sbr.rel (%p1881) target = $region52
      $region51: #{abam_forward.2} parent=47 // pred_region
        %p1884 = scmp.lt.s32.totalorder %s17, 1
        %s1885 = scalar_select %p1884, %s17, 1
        %s1886 = smul.addr %s1885, 2
        %s1887 = smul.addr %s1886, 8
        %s1888 = scalar_lea.vmem %s5, %s1887
      $region52: #{abam_forward.2} parent=47 // pred_fallthru
        _
    $region48: #{abam_forward.2} parent=5 // pred_fallthru
      _
  $region6: #{abam_forward.2} parent=0 // loop_footer
    %s15 = sadd.s32 1, %s11
  $region7: #{abam_forward.2} parent=0 // loop_footer_branch
    %10 = sbr.rel target = $region3
  $region8: #{abam_forward.2} parent=0 // loop_exit
    _

// kernel: abam_forward.3
$region0: #{abam_forward.3}
  #allocation0 [shape = 'u32[]', space=smem, size = 0x4, offset = 0x4, fixed_abs, tag = 'smem constant byte address 0x4 - core index']
  #allocation1 [shape = 'u32[144,128]{1,0:T(1,128)}', space=vmem, size = 0x12000, scoped, tag = 'internal scratch']
  %s0 = inlined_call_operand.vmem [shape: f32[2,18,288], index: 0, kind: input, shape index: {}]
  %s1 = inlined_call_operand.vmem [shape: f32[2,18,288], index: 1, kind: input, shape index: {}]
  %s2 = inlined_call_operand.vmem [shape: f32[2,16,256], index: 2, kind: input, shape index: {}]
  %s3 = inlined_call_operand.vmem [shape: f32[2,1,2], index: 3, kind: input, shape index: {}]
  %s4 = inlined_call_operand.vmem [shape: bf16[3,288,512], index: 4, kind: input, shape index: {}]
  %s5 = inlined_call_operand.vmem [shape: bf16[2,256,320], index: 5, kind: input, shape index: {}]
  %s6 = inlined_call_operand.vmem [shape: bf16[256,32], index: 6, kind: input, shape index: {}]
  %s7 = inlined_call_operand.vmem [shape: f32[5,320], index: 7, kind: input, shape index: {}]
  %s8 = inlined_call_operand.vmem [shape: f32[2,16,256], index: 8, kind: output, shape index: {0}]
  %s9 = inlined_call_operand.vmem [shape: f32[2,16,48], index: 9, kind: output, shape index: {1}]
  %10 = xla_tuple %s8, %s9
  %s11 = sld [smem:[#allocation0]]
  $region73: #{abam_forward.3} parent=0
    _
  %s13 = ssub.s32 1, %s11
  %s14 = scalar_select 0, %s13, %s11
  loop: start=0, step=1, limit=4
  $region2: #{abam_forward.3} parent=0 // loop_pre_header
    _
  $region3: #{abam_forward.3} parent=0 // loop_header
    %s16 = sphi 0, %s20
    %p17 = scmp.ge.s32.totalorder %s16, 4
    %s26 = sphi 0, %s28
    %s29 = sphi 0, %s26
    %s30 = sphi 0, %s29
    %s46 = sphi 0, %s30
    %s52 = sphi 0, %s54
    %s55 = sphi 0, %s52
    %s56 = sphi 0, %s55
    %s72 = sphi 0, %s56
    %s78 = sphi 0, %s80
    %s81 = sphi 0, %s78
    %s82 = sphi 0, %s81
    %s98 = sphi 0, %s82
    %s104 = sphi 0, %s106
    %s107 = sphi 0, %s104
    %s108 = sphi 0, %s107
    %s124 = sphi 0, %s108
    %s128 = sphi 0, %s128
    %s130 = sphi 0, %s128
    %s131 = sphi 0, %s130
    %s145 = sphi 0, %s131
    %s149 = sphi 0, %s149
    %s151 = sphi 0, %s149
    %s152 = sphi 0, %s151
    %s166 = sphi 0, %s152
    %s170 = sphi 0, %s170
    %s172 = sphi 0, %s170
    %s173 = sphi 0, %s172
    %s187 = sphi 0, %s173
    %s191 = sphi 0, %s191
    %s193 = sphi 0, %s191
    %s194 = sphi 0, %s193
    %s208 = sphi 0, %s194
    %s214 = sphi 0, %s216
    %s217 = sphi 0, %s214
    %s218 = sphi 0, %s217
    %s234 = sphi 0, %s218
    %s240 = sphi 0, %s242
    %s243 = sphi 0, %s240
    %s244 = sphi 0, %s243
    %s260 = sphi 0, %s244
  $region4: #{abam_forward.3} parent=0 // loop_header_branch
    %19 = sbr.rel (%p17) target = $region8
  $region5: #{abam_forward.3} parent=0 // loop_body
    %s21 = ssub.s32 %s16, 1
    %s22 = ssub.s32 %s16, 2
    %s23 = sadd.s32 %s16, 1
    %s24 = ssub.s32 %s16, %s23
    %p25 = scmp.eq.s32.totalorder %s24, 0
    %s27 = sadd.s32 %s26, 1
    %s28 = scalar_select %p25, %s26, %s27
    %p31 = pneg %p25
    %p32 = scmp.eq.s32.totalorder %s16, 1
    %p33 = por %p31, %p32
    %p34 = scmp.ne.s32.totalorder %s26, %s29
    %p35 = scmp.eq.s32.totalorder %s16, 0
    %p36 = por %p34, %p35
    %p37 = scmp.ne.s32.totalorder %s26, %s29
    %p38 = scmp.eq.s32.totalorder %s21, 1
    %p39 = por %p37, %p38
    %p40 = scmp.ne.s32.totalorder %s29, %s30
    %p41 = scmp.eq.s32.totalorder %s21, 0
    %p42 = por %p40, %p41
    %p43 = scmp.ne.s32.totalorder %s29, %s30
    %p44 = scmp.eq.s32.totalorder %s22, 1
    %p45 = por %p43, %p44
    %p47 = scmp.ne.s32.totalorder %s30, %s46
    %p48 = scmp.eq.s32.totalorder %s22, 0
    %p49 = por %p47, %p48
    %s50 = ssub.s32 %s16, %s23
    %p51 = scmp.eq.s32.totalorder %s50, 0
    %s53 = sadd.s32 %s52, 1
    %s54 = scalar_select %p51, %s52, %s53
    %p57 = pneg %p51
    %p58 = scmp.eq.s32.totalorder %s16, 1
    %p59 = por %p57, %p58
    %p60 = scmp.ne.s32.totalorder %s52, %s55
    %p61 = scmp.eq.s32.totalorder %s16, 0
    %p62 = por %p60, %p61
    %p63 = scmp.ne.s32.totalorder %s52, %s55
    %p64 = scmp.eq.s32.totalorder %s21, 1
    %p65 = por %p63, %p64
    %p66 = scmp.ne.s32.totalorder %s55, %s56
    %p67 = scmp.eq.s32.totalorder %s21, 0
    %p68 = por %p66, %p67
    %p69 = scmp.ne.s32.totalorder %s55, %s56
    %p70 = scmp.eq.s32.totalorder %s22, 1
    %p71 = por %p69, %p70
    %p73 = scmp.ne.s32.totalorder %s56, %s72
    %p74 = scmp.eq.s32.totalorder %s22, 0
    %p75 = por %p73, %p74
    %s76 = ssub.s32 %s16, %s23
    %p77 = scmp.eq.s32.totalorder %s76, 0
    %s79 = sadd.s32 %s78, 1
    %s80 = scalar_select %p77, %s78, %s79
    %p83 = pneg %p77
    %p84 = scmp.eq.s32.totalorder %s16, 1
    %p85 = por %p83, %p84
    %p86 = scmp.ne.s32.totalorder %s78, %s81
    %p87 = scmp.eq.s32.totalorder %s16, 0
    %p88 = por %p86, %p87
    %p89 = scmp.ne.s32.totalorder %s78, %s81
    %p90 = scmp.eq.s32.totalorder %s21, 1
    %p91 = por %p89, %p90
    %p92 = scmp.ne.s32.totalorder %s81, %s82
    %p93 = scmp.eq.s32.totalorder %s21, 0
    %p94 = por %p92, %p93
    %p95 = scmp.ne.s32.totalorder %s81, %s82
    %p96 = scmp.eq.s32.totalorder %s22, 1
    %p97 = por %p95, %p96
    %p99 = scmp.ne.s32.totalorder %s82, %s98
    %p100 = scmp.eq.s32.totalorder %s22, 0
    %p101 = por %p99, %p100
    %s102 = ssub.s32 %s16, %s23
    %p103 = scmp.eq.s32.totalorder %s102, 0
    %s105 = sadd.s32 %s104, 1
    %s106 = scalar_select %p103, %s104, %s105
    %p109 = pneg %p103
    %p110 = scmp.eq.s32.totalorder %s16, 1
    %p111 = por %p109, %p110
    %p112 = scmp.ne.s32.totalorder %s104, %s107
    %p113 = scmp.eq.s32.totalorder %s16, 0
    %p114 = por %p112, %p113
    %p115 = scmp.ne.s32.totalorder %s104, %s107
    %p116 = scmp.eq.s32.totalorder %s21, 1
    %p117 = por %p115, %p116
    %p118 = scmp.ne.s32.totalorder %s107, %s108
    %p119 = scmp.eq.s32.totalorder %s21, 0
    %p120 = por %p118, %p119
    %p121 = scmp.ne.s32.totalorder %s107, %s108
    %p122 = scmp.eq.s32.totalorder %s22, 1
    %p123 = por %p121, %p122
    %p125 = scmp.ne.s32.totalorder %s108, %s124
    %p126 = scmp.eq.s32.totalorder %s22, 0
    %p127 = por %p125, %p126
    %s129 = sadd.s32 %s128, 1
    %p132 = scmp.eq.s32.totalorder %s16, 1
    %p133 = scmp.ne.s32.totalorder %s128, %s130
    %p134 = scmp.eq.s32.totalorder %s16, 0
    %p135 = por %p133, %p134
    %p136 = scmp.ne.s32.totalorder %s128, %s130
    %p137 = scmp.eq.s32.totalorder %s21, 1
    %p138 = por %p136, %p137
    %p139 = scmp.ne.s32.totalorder %s130, %s131
    %p140 = scmp.eq.s32.totalorder %s21, 0
    %p141 = por %p139, %p140
    %p142 = scmp.ne.s32.totalorder %s130, %s131
    %p143 = scmp.eq.s32.totalorder %s22, 1
    %p144 = por %p142, %p143
    %p146 = scmp.ne.s32.totalorder %s131, %s145
    %p147 = scmp.eq.s32.totalorder %s22, 0
    %p148 = por %p146, %p147
    %s150 = sadd.s32 %s149, 1
    %p153 = scmp.eq.s32.totalorder %s16, 1
    %p154 = scmp.ne.s32.totalorder %s149, %s151
    %p155 = scmp.eq.s32.totalorder %s16, 0
    %p156 = por %p154, %p155
    %p157 = scmp.ne.s32.totalorder %s149, %s151
    %p158 = scmp.eq.s32.totalorder %s21, 1
    %p159 = por %p157, %p158
    %p160 = scmp.ne.s32.totalorder %s151, %s152
    %p161 = scmp.eq.s32.totalorder %s21, 0
    %p162 = por %p160, %p161
    %p163 = scmp.ne.s32.totalorder %s151, %s152
    %p164 = scmp.eq.s32.totalorder %s22, 1
    %p165 = por %p163, %p164
    %p167 = scmp.ne.s32.totalorder %s152, %s166
    %p168 = scmp.eq.s32.totalorder %s22, 0
    %p169 = por %p167, %p168
    %s171 = sadd.s32 %s170, 1
    %p174 = scmp.eq.s32.totalorder %s16, 1
    %p175 = scmp.ne.s32.totalorder %s170, %s172
    %p176 = scmp.eq.s32.totalorder %s16, 0
    %p177 = por %p175, %p176
    %p178 = scmp.ne.s32.totalorder %s170, %s172
    %p179 = scmp.eq.s32.totalorder %s21, 1
    %p180 = por %p178, %p179
    %p181 = scmp.ne.s32.totalorder %s172, %s173
    %p182 = scmp.eq.s32.totalorder %s21, 0
    %p183 = por %p181, %p182
    %p184 = scmp.ne.s32.totalorder %s172, %s173
    %p185 = scmp.eq.s32.totalorder %s22, 1
    %p186 = por %p184, %p185
    %p188 = scmp.ne.s32.totalorder %s173, %s187
    %p189 = scmp.eq.s32.totalorder %s22, 0
    %p190 = por %p188, %p189
    %s192 = sadd.s32 %s191, 1
    %p195 = scmp.eq.s32.totalorder %s16, 1
    %p196 = scmp.ne.s32.totalorder %s191, %s193
    %p197 = scmp.eq.s32.totalorder %s16, 0
    %p198 = por %p196, %p197
    %p199 = scmp.ne.s32.totalorder %s191, %s193
    %p200 = scmp.eq.s32.totalorder %s21, 1
    %p201 = por %p199, %p200
    %p202 = scmp.ne.s32.totalorder %s193, %s194
    %p203 = scmp.eq.s32.totalorder %s21, 0
    %p204 = por %p202, %p203
    %p205 = scmp.ne.s32.totalorder %s193, %s194
    %p206 = scmp.eq.s32.totalorder %s22, 1
    %p207 = por %p205, %p206
    %p209 = scmp.ne.s32.totalorder %s194, %s208
    %p210 = scmp.eq.s32.totalorder %s22, 0
    %p211 = por %p209, %p210
    %s212 = ssub.s32 %s16, %s23
    %p213 = scmp.eq.s32.totalorder %s212, 0
    %s215 = sadd.s32 %s214, 1
    %s216 = scalar_select %p213, %s214, %s215
    %p219 = pneg %p213
    %p220 = scmp.eq.s32.totalorder %s16, 1
    %p221 = por %p219, %p220
    %p222 = scmp.ne.s32.totalorder %s214, %s217
    %p223 = scmp.eq.s32.totalorder %s16, 0
    %p224 = por %p222, %p223
    %p225 = scmp.ne.s32.totalorder %s214, %s217
    %p226 = scmp.eq.s32.totalorder %s21, 1
    %p227 = por %p225, %p226
    %p228 = scmp.ne.s32.totalorder %s217, %s218
    %p229 = scmp.eq.s32.totalorder %s21, 0
    %p230 = por %p228, %p229
    %p231 = scmp.ne.s32.totalorder %s217, %s218
    %p232 = scmp.eq.s32.totalorder %s22, 1
    %p233 = por %p231, %p232
    %p235 = scmp.ne.s32.totalorder %s218, %s234
    %p236 = scmp.eq.s32.totalorder %s22, 0
    %p237 = por %p235, %p236
    %s238 = ssub.s32 %s16, %s23
    %p239 = scmp.eq.s32.totalorder %s238, 0
    %s241 = sadd.s32 %s240, 1
    %s242 = scalar_select %p239, %s240, %s241
    %p245 = pneg %p239
    %p246 = scmp.eq.s32.totalorder %s16, 1
    %p247 = por %p245, %p246
    %p248 = scmp.ne.s32.totalorder %s240, %s243
    %p249 = scmp.eq.s32.totalorder %s16, 0
    %p250 = por %p248, %p249
    %p251 = scmp.ne.s32.totalorder %s240, %s243
    %p252 = scmp.eq.s32.totalorder %s21, 1
    %p253 = por %p251, %p252
    %p254 = scmp.ne.s32.totalorder %s243, %s244
    %p255 = scmp.eq.s32.totalorder %s21, 0
    %p256 = por %p254, %p255
    %p257 = scmp.ne.s32.totalorder %s243, %s244
    %p258 = scmp.eq.s32.totalorder %s22, 1
    %p259 = por %p257, %p258
    %p261 = scmp.ne.s32.totalorder %s244, %s260
    %p262 = scmp.eq.s32.totalorder %s22, 0
    %p263 = por %p261, %p262
    %p264 = scmp.le.s32.totalorder 1, %s16
    %p265 = scmp.lt.s32.totalorder %s16, 3
    %p266 = pnand %p264, %p265
    %p267 = pneg %p266
    // Predicated region
    $region9: #{abam_forward.3} parent=5 // pred_check
      _
    $region10: #{abam_forward.3} parent=5 // pred_check_branch
      %269 = sbr.rel (%p266) target = $region12
    $region11: #{abam_forward.3} parent=5 // pred_region
      %s270 = ssub.s32 %s16, 1
      // Predicated region
      $region13: #{abam_forward.3} parent=11 // pred_check
        %p271 = pneg %p141
      $region14: #{abam_forward.3} parent=11 // pred_check_branch
        %273 = sbr.rel (%p271) target = $region16
      $region15: #{abam_forward.3} parent=11 // pred_region
        _
      $region16: #{abam_forward.3} parent=11 // pred_fallthru
        _
      // Predicated region
      $region17: #{abam_forward.3} parent=11 // pred_check
        %p274 = pneg %p162
      $region18: #{abam_forward.3} parent=11 // pred_check_branch
        %276 = sbr.rel (%p274) target = $region20
      $region19: #{abam_forward.3} parent=11 // pred_region
        _
      $region20: #{abam_forward.3} parent=11 // pred_fallthru
        _
      // Predicated region
      $region21: #{abam_forward.3} parent=11 // pred_check
        %p277 = pneg %p183
      $region22: #{abam_forward.3} parent=11 // pred_check_branch
        %279 = sbr.rel (%p277) target = $region24
      $region23: #{abam_forward.3} parent=11 // pred_region
        _
      $region24: #{abam_forward.3} parent=11 // pred_fallthru
        _
      // Predicated region
      $region25: #{abam_forward.3} parent=11 // pred_check
        %p280 = pneg %p204
      $region26: #{abam_forward.3} parent=11 // pred_check_branch
        %282 = sbr.rel (%p280) target = $region28
      $region27: #{abam_forward.3} parent=11 // pred_region
        _
      $region28: #{abam_forward.3} parent=11 // pred_fallthru
        _
    $region12: #{abam_forward.3} parent=5 // pred_fallthru
      _
    %p283 = scmp.lt.s32.totalorder %s16, 2
    // Predicated region
    $region29: #{abam_forward.3} parent=5 // pred_check
      %p284 = pneg %p283
    $region30: #{abam_forward.3} parent=5 // pred_check_branch
      %286 = sbr.rel (%p284) target = $region32
    $region31: #{abam_forward.3} parent=5 // pred_region
      // Predicated region
      $region33: #{abam_forward.3} parent=31 // pred_check
        %p287 = pneg %p36
      $region34: #{abam_forward.3} parent=31 // pred_check_branch
        %289 = sbr.rel (%p287) target = $region36
      $region35: #{abam_forward.3} parent=31 // pred_region
        %p290 = scmp.lt.s32.totalorder %s16, 1
        %s291 = scalar_select %p290, %s16, 1
        %s292 = smul.addr %s291, 9
        %s293 = smul.addr %s292, 8
        %s294 = scalar_lea.vmem %s0, %s293
      $region36: #{abam_forward.3} parent=31 // pred_fallthru
        _
      // Predicated region
      $region37: #{abam_forward.3} parent=31 // pred_check
        %p295 = pneg %p62
      $region38: #{abam_forward.3} parent=31 // pred_check_branch
        %297 = sbr.rel (%p295) target = $region40
      $region39: #{abam_forward.3} parent=31 // pred_region
        %p298 = scmp.lt.s32.totalorder %s16, 1
        %s299 = scalar_select %p298, %s16, 1
        %s300 = smul.addr %s299, 9
        %s301 = smul.addr %s300, 8
        %s302 = scalar_lea.vmem %s1, %s301
      $region40: #{abam_forward.3} parent=31 // pred_fallthru
        _
      // Predicated region
      $region41: #{abam_forward.3} parent=31 // pred_check
        %p303 = pneg %p88
      $region42: #{abam_forward.3} parent=31 // pred_check_branch
        %305 = sbr.rel (%p303) target = $region44
      $region43: #{abam_forward.3} parent=31 // pred_region
        %p306 = scmp.lt.s32.totalorder %s16, 1
        %s307 = scalar_select %p306, %s16, 1
        %s308 = smul.addr %s307, 4
        %s309 = smul.addr %s308, 8
        %s310 = scalar_lea.vmem %s2, %s309
      $region44: #{abam_forward.3} parent=31 // pred_fallthru
        _
      // Predicated region
      $region45: #{abam_forward.3} parent=31 // pred_check
        %p311 = pneg %p114
      $region46: #{abam_forward.3} parent=31 // pred_check_branch
        %313 = sbr.rel (%p311) target = $region48
      $region47: #{abam_forward.3} parent=31 // pred_region
        %p314 = scmp.lt.s32.totalorder %s16, 1
        %s315 = scalar_select %p314, %s16, 1
        %s316 = scalar_lea.vmem %s3, %s315
      $region48: #{abam_forward.3} parent=31 // pred_fallthru
        _
    $region32: #{abam_forward.3} parent=5 // pred_fallthru
      _
    %p317 = scmp.le.s32.totalorder 1, %s16
    %p318 = scmp.lt.s32.totalorder %s16, 3
    %p319 = pnand %p317, %p318
    %p320 = pneg %p319
    // Predicated region
    $region49: #{abam_forward.3} parent=5 // pred_check
      _
    $region50: #{abam_forward.3} parent=5 // pred_check_branch
      %322 = sbr.rel (%p319) target = $region52
    $region51: #{abam_forward.3} parent=5 // pred_region
      %s323 = ssub.s32 %s16, 1
      %p324 = scmp.lt.s32.totalorder %s21, 1
      %s325 = scalar_select %p324, %s21, 1
      %s326 = smul.addr %s325, 9
      %s327 = smul.addr %s326, 8
      %s328 = scalar_lea.vmem %s0, %s327
      %p329 = pneg %p42
      %p330 = pneg %p39
      %p331 = scmp.lt.s32.totalorder %s21, 1
      %s332 = scalar_select %p331, %s21, 1
      %s333 = smul.addr %s332, 9
      %s334 = smul.addr %s333, 8
      %s335 = scalar_lea.vmem %s1, %s334
      %p336 = pneg %p68
      %p337 = pneg %p65
      %p338 = scmp.lt.s32.totalorder %s21, 1
      %s339 = scalar_select %p338, %s21, 1
      %s340 = smul.addr %s339, 4
      %s341 = smul.addr %s340, 8
      %s342 = scalar_lea.vmem %s2, %s341
      %p343 = pneg %p94
      %p344 = pneg %p91
      %p345 = scmp.lt.s32.totalorder %s21, 1
      %s346 = scalar_select %p345, %s21, 1
      %s347 = scalar_lea.vmem %s3, %s346
      %p348 = pneg %p120
      %p349 = pneg %p117
      %p350 = pneg %p141
      %p351 = pneg %p138
      %p352 = pneg %p162
      %p353 = pneg %p159
      %p354 = pneg %p183
      %p355 = pneg %p180
      %p356 = pneg %p204
      %p357 = pneg %p201
      %p358 = pneg %p230
      %p359 = pneg %p227
      %p360 = scmp.lt.s32.totalorder %s21, 1
      %s361 = scalar_select %p360, %s21, 1
      %s362 = smul.addr %s361, 4
      %s363 = smul.addr %s362, 8
      %s364 = scalar_lea.vmem %s8, %s363
      %p365 = pneg %p256
      %p366 = pneg %p253
      %p367 = scmp.lt.s32.totalorder %s21, 1
      %s368 = scalar_select %p367, %s21, 1
      %s369 = smul.addr %s368, 2
      %s370 = smul.addr %s369, 8
      %s371 = scalar_lea.vmem %s9, %s370
      %p372 = scmp.lt.s32.totalorder %s21, 1
      %s373 = scalar_select %p372, %s21, 1
      %s374 = smul.addr %s373, 9
      %s375 = smul.addr %s374, 8
      %s376 = scalar_lea.vmem %s0, %s375
      %p377 = scmp.lt.s32.totalorder %s21, 1
      %s378 = scalar_select %p377, %s21, 1
      %s379 = smul.addr %s378, 9
      %s380 = smul.addr %s379, 8
      %s381 = scalar_lea.vmem %s1, %s380
      %p382 = scmp.lt.s32.totalorder %s21, 1
      %s383 = scalar_select %p382, %s21, 1
      %s384 = smul.addr %s383, 4
      %s385 = smul.addr %s384, 8
      %s386 = scalar_lea.vmem %s2, %s385
      %p387 = scmp.lt.s32.totalorder %s21, 1
      %s388 = scalar_select %p387, %s21, 1
      %s389 = scalar_lea.vmem %s3, %s388
      %p390 = scmp.lt.s32.totalorder %s21, 1
      %s391 = scalar_select %p390, %s21, 1
      %s392 = smul.addr %s391, 4
      %s393 = smul.addr %s392, 8
      %s394 = scalar_lea.vmem %s8, %s393
      %p395 = scmp.lt.s32.totalorder %s21, 1
      %s396 = scalar_select %p395, %s21, 1
      %s397 = smul.addr %s396, 2
      %s398 = smul.addr %s397, 8
      %s399 = scalar_lea.vmem %s9, %s398
      %v401 = vld [vmem:[%s376] sm:$0xff]
      %v402 = vld [vmem:[%s376 + $0x8] sm:$0xff]
      %v403 = vld [vmem:[%s376 + $0x10] sm:$0xff]
      %v404 = vld [vmem:[%s376 + $0x18] sm:$0xff]
      %v405 = vld [vmem:[%s376 + $0x20] sm:$0xff]
      %v406 = vld [vmem:[%s376 + $0x28] sm:$0xff]
      %v407 = vld [vmem:[%s376 + $0x30] sm:$0x3]
      %v408 = vld [vmem:[%s376 + $0x38] sm:$0x3]
      %v409 = vld [vmem:[%s376 + $0x40] sm:$0x3]
      %v410 = vld [vmem:[%s381] sm:$0xff]
      %v411 = vld [vmem:[%s381 + $0x8] sm:$0xff]
      %v412 = vld [vmem:[%s381 + $0x10] sm:$0xff]
      %v413 = vld [vmem:[%s381 + $0x18] sm:$0xff]
      %v414 = vld [vmem:[%s381 + $0x20] sm:$0xff]
      %v415 = vld [vmem:[%s381 + $0x28] sm:$0xff]
      %v416 = vld [vmem:[%s381 + $0x30] sm:$0x3]
      %v417 = vld [vmem:[%s381 + $0x38] sm:$0x3]
      %v418 = vld [vmem:[%s381 + $0x40] sm:$0x3]
      %v419 = vpack.c.bf16 %v404, %v401
      %v420 = vpack.c.bf16 %v405, %v402
      %v421 = vpack.c.bf16 %v406, %v403
      %v422 = vpack.c.bf16 %v407, %v407
      %v423 = vpack.c.bf16 %v408, %v408
      %v424 = vpack.c.bf16 %v409, %v409
      %v425 = vpack.c.bf16 %v413, %v410
      %v426 = vpack.c.bf16 %v414, %v411
      %v427 = vpack.c.bf16 %v415, %v412
      %v428 = vpack.c.bf16 %v416, %v416
      %v429 = vpack.c.bf16 %v417, %v417
      %v430 = vpack.c.bf16 %v418, %v418
      %v431 = vld [vmem:[%s4] sm:$0xff]
      %v432 = vld [vmem:[%s4 + $0x8] sm:$0xff]
      %v433 = vld [vmem:[%s4 + $0x10] sm:$0xff]
      %v434 = vld [vmem:[%s4 + $0x18] sm:$0xff]
      %v435 = vld [vmem:[%s4 + $0x20] sm:$0xff]
      %v436 = vld [vmem:[%s4 + $0x28] sm:$0xff]
      %v437 = vld [vmem:[%s4 + $0x30] sm:$0xff]
      %v438 = vld [vmem:[%s4 + $0x38] sm:$0xff]
      %v439 = vld [vmem:[%s4 + $0x40] sm:$0xff]
      %v440 = vld [vmem:[%s4 + $0x48] sm:$0xff]
      %v441 = vld [vmem:[%s4 + $0x50] sm:$0xff]
      %v442 = vld [vmem:[%s4 + $0x58] sm:$0xff]
      %v443 = vld [vmem:[%s4 + $0x60] sm:$0xff]
      %v444 = vld [vmem:[%s4 + $0x68] sm:$0xff]
      %v445 = vld [vmem:[%s4 + $0x70] sm:$0xff]
      %v446 = vld [vmem:[%s4 + $0x78] sm:$0xff]
      %v447 = vld [vmem:[%s4 + $0x80] sm:$0xff]
      %v448 = vld [vmem:[%s4 + $0x88] sm:$0xff]
      %v449 = vld [vmem:[%s4 + $0x90] sm:$0xff]
      %v450 = vld [vmem:[%s4 + $0x98] sm:$0xff]
      %v451 = vld [vmem:[%s4 + $0xa0] sm:$0xff]
      %v452 = vld [vmem:[%s4 + $0xa8] sm:$0xff]
      %v453 = vld [vmem:[%s4 + $0xb0] sm:$0xff]
      %v454 = vld [vmem:[%s4 + $0xb8] sm:$0xff]
      %v455 = vld [vmem:[%s4 + $0xc0] sm:$0xff]
      %v456 = vld [vmem:[%s4 + $0xc8] sm:$0xff]
      %v457 = vld [vmem:[%s4 + $0xd0] sm:$0xff]
      %v458 = vld [vmem:[%s4 + $0xd8] sm:$0xff]
      %v459 = vld [vmem:[%s4 + $0xe0] sm:$0xff]
      %v460 = vld [vmem:[%s4 + $0xe8] sm:$0xff]
      %v461 = vld [vmem:[%s4 + $0xf0] sm:$0xff]
      %v462 = vld [vmem:[%s4 + $0xf8] sm:$0xff]
      %v463 = vld [vmem:[%s4 + $0x100] sm:$0xff]
      %v464 = vld [vmem:[%s4 + $0x108] sm:$0xff]
      %v465 = vld [vmem:[%s4 + $0x110] sm:$0xff]
      %v466 = vld [vmem:[%s4 + $0x118] sm:$0xff]
      %v467 = vld [vmem:[%s4 + $0x120] sm:$0xff]
      %v468 = vld [vmem:[%s4 + $0x128] sm:$0xff]
      %v469 = vld [vmem:[%s4 + $0x130] sm:$0xff]
      %v470 = vld [vmem:[%s4 + $0x138] sm:$0xff]
      %v471 = vld [vmem:[%s4 + $0x140] sm:$0xff]
      %v472 = vld [vmem:[%s4 + $0x148] sm:$0xff]
      %v473 = vld [vmem:[%s4 + $0x150] sm:$0xff]
      %v474 = vld [vmem:[%s4 + $0x158] sm:$0xff]
      %v475 = vld [vmem:[%s4 + $0x160] sm:$0xff]
      %v476 = vld [vmem:[%s4 + $0x168] sm:$0xff]
      %v477 = vld [vmem:[%s4 + $0x170] sm:$0xff]
      %v478 = vld [vmem:[%s4 + $0x178] sm:$0xff]
      %v479 = vld [vmem:[%s4 + $0x180] sm:$0xff]
      %v480 = vld [vmem:[%s4 + $0x188] sm:$0xff]
      %v481 = vld [vmem:[%s4 + $0x190] sm:$0xff]
      %v482 = vld [vmem:[%s4 + $0x198] sm:$0xff]
      %v483 = vld [vmem:[%s4 + $0x1a0] sm:$0xff]
      %v484 = vld [vmem:[%s4 + $0x1a8] sm:$0xff]
      %v485 = vld [vmem:[%s4 + $0x1b0] sm:$0xff]
      %v486 = vld [vmem:[%s4 + $0x1b8] sm:$0xff]
      %v487 = vld [vmem:[%s4 + $0x1c0] sm:$0xff]
      %v488 = vld [vmem:[%s4 + $0x1c8] sm:$0xff]
      %v489 = vld [vmem:[%s4 + $0x1d0] sm:$0xff]
      %v490 = vld [vmem:[%s4 + $0x1d8] sm:$0xff]
      %v491 = vld [vmem:[%s4 + $0x1e0] sm:$0xff]
      %v492 = vld [vmem:[%s4 + $0x1e8] sm:$0xff]
      %v493 = vld [vmem:[%s4 + $0x1f0] sm:$0xff]
      %v494 = vld [vmem:[%s4 + $0x1f8] sm:$0xff]
      %v495 = vld [vmem:[%s4 + $0x200] sm:$0xff]
      %v496 = vld [vmem:[%s4 + $0x208] sm:$0xff]
      %v497 = vld [vmem:[%s4 + $0x210] sm:$0xff]
      %v498 = vld [vmem:[%s4 + $0x218] sm:$0xff]
      %v499 = vld [vmem:[%s4 + $0x220] sm:$0xff]
      %v500 = vld [vmem:[%s4 + $0x228] sm:$0xff]
      %v501 = vld [vmem:[%s4 + $0x230] sm:$0xff]
      %v502 = vld [vmem:[%s4 + $0x238] sm:$0xff]
      %s503 = scalar_lea.vmem %s4, 576
      %v504 = vld [vmem:[%s503] sm:$0xff]
      %v505 = vld [vmem:[%s503 + $0x8] sm:$0xff]
      %v506 = vld [vmem:[%s503 + $0x10] sm:$0xff]
      %v507 = vld [vmem:[%s503 + $0x18] sm:$0xff]
      %v508 = vld [vmem:[%s503 + $0x20] sm:$0xff]
      %v509 = vld [vmem:[%s503 + $0x28] sm:$0xff]
      %v510 = vld [vmem:[%s503 + $0x30] sm:$0xff]
      %v511 = vld [vmem:[%s503 + $0x38] sm:$0xff]
      %v512 = vld [vmem:[%s503 + $0x40] sm:$0xff]
      %v513 = vld [vmem:[%s503 + $0x48] sm:$0xff]
      %v514 = vld [vmem:[%s503 + $0x50] sm:$0xff]
      %v515 = vld [vmem:[%s503 + $0x58] sm:$0xff]
      %v516 = vld [vmem:[%s503 + $0x60] sm:$0xff]
      %v517 = vld [vmem:[%s503 + $0x68] sm:$0xff]
      %v518 = vld [vmem:[%s503 + $0x70] sm:$0xff]
      %v519 = vld [vmem:[%s503 + $0x78] sm:$0xff]
      %v520 = vld [vmem:[%s503 + $0x80] sm:$0xff]
      %v521 = vld [vmem:[%s503 + $0x88] sm:$0xff]
      %v522 = vld [vmem:[%s503 + $0x90] sm:$0xff]
      %v523 = vld [vmem:[%s503 + $0x98] sm:$0xff]
      %v524 = vld [vmem:[%s503 + $0xa0] sm:$0xff]
      %v525 = vld [vmem:[%s503 + $0xa8] sm:$0xff]
      %v526 = vld [vmem:[%s503 + $0xb0] sm:$0xff]
      %v527 = vld [vmem:[%s503 + $0xb8] sm:$0xff]
      %v528 = vld [vmem:[%s503 + $0xc0] sm:$0xff]
      %v529 = vld [vmem:[%s503 + $0xc8] sm:$0xff]
      %v530 = vld [vmem:[%s503 + $0xd0] sm:$0xff]
      %v531 = vld [vmem:[%s503 + $0xd8] sm:$0xff]
      %v532 = vld [vmem:[%s503 + $0xe0] sm:$0xff]
      %v533 = vld [vmem:[%s503 + $0xe8] sm:$0xff]
      %v534 = vld [vmem:[%s503 + $0xf0] sm:$0xff]
      %v535 = vld [vmem:[%s503 + $0xf8] sm:$0xff]
      %v536 = vld [vmem:[%s503 + $0x100] sm:$0xff]
      %v537 = vld [vmem:[%s503 + $0x108] sm:$0xff]
      %v538 = vld [vmem:[%s503 + $0x110] sm:$0xff]
      %v539 = vld [vmem:[%s503 + $0x118] sm:$0xff]
      %v540 = vld [vmem:[%s503 + $0x120] sm:$0xff]
      %v541 = vld [vmem:[%s503 + $0x128] sm:$0xff]
      %v542 = vld [vmem:[%s503 + $0x130] sm:$0xff]
      %v543 = vld [vmem:[%s503 + $0x138] sm:$0xff]
      %v544 = vld [vmem:[%s503 + $0x140] sm:$0xff]
      %v545 = vld [vmem:[%s503 + $0x148] sm:$0xff]
      %v546 = vld [vmem:[%s503 + $0x150] sm:$0xff]
      %v547 = vld [vmem:[%s503 + $0x158] sm:$0xff]
      %v548 = vld [vmem:[%s503 + $0x160] sm:$0xff]
      %v549 = vld [vmem:[%s503 + $0x168] sm:$0xff]
      %v550 = vld [vmem:[%s503 + $0x170] sm:$0xff]
      %v551 = vld [vmem:[%s503 + $0x178] sm:$0xff]
      %v552 = vld [vmem:[%s503 + $0x180] sm:$0xff]
      %v553 = vld [vmem:[%s503 + $0x188] sm:$0xff]
      %v554 = vld [vmem:[%s503 + $0x190] sm:$0xff]
      %v555 = vld [vmem:[%s503 + $0x198] sm:$0xff]
      %v556 = vld [vmem:[%s503 + $0x1a0] sm:$0xff]
      %v557 = vld [vmem:[%s503 + $0x1a8] sm:$0xff]
      %v558 = vld [vmem:[%s503 + $0x1b0] sm:$0xff]
      %v559 = vld [vmem:[%s503 + $0x1b8] sm:$0xff]
      %v560 = vld [vmem:[%s503 + $0x1c0] sm:$0xff]
      %v561 = vld [vmem:[%s503 + $0x1c8] sm:$0xff]
      %v562 = vld [vmem:[%s503 + $0x1d0] sm:$0xff]
      %v563 = vld [vmem:[%s503 + $0x1d8] sm:$0xff]
      %v564 = vld [vmem:[%s503 + $0x1e0] sm:$0xff]
      %v565 = vld [vmem:[%s503 + $0x1e8] sm:$0xff]
      %v566 = vld [vmem:[%s503 + $0x1f0] sm:$0xff]
      %v567 = vld [vmem:[%s503 + $0x1f8] sm:$0xff]
      %v568 = vld [vmem:[%s503 + $0x200] sm:$0xff]
      %v569 = vld [vmem:[%s503 + $0x208] sm:$0xff]
      %v570 = vld [vmem:[%s503 + $0x210] sm:$0xff]
      %v571 = vld [vmem:[%s503 + $0x218] sm:$0xff]
      %v572 = vld [vmem:[%s503 + $0x220] sm:$0xff]
      %v573 = vld [vmem:[%s503 + $0x228] sm:$0xff]
      %v574 = vld [vmem:[%s503 + $0x230] sm:$0xff]
      %v575 = vld [vmem:[%s503 + $0x238] sm:$0xff]
      %vm576 = vsmask.f32 7424
      %v578 = vshrl.u32 %v419, 16
      %v580 = vshll.u32 %v419, 16
      %v582 = vrot.slane %v580, 1
      %v583 = vor.u32 %v578, %v582
      %v585 = vshll.u32 %v422, 16
      %v587 = vrot.slane %v585, 1
      %v588 = vsel %vm576, %v583, %v587
      %v590 = vshrl.u32 %v420, 16
      %v592 = vshll.u32 %v420, 16
      %v594 = vrot.slane %v592, 1
      %v595 = vor.u32 %v590, %v594
      %v597 = vshll.u32 %v423, 16
      %v599 = vrot.slane %v597, 1
      %v600 = vsel %vm576, %v595, %v599
      %v602 = vshrl.u32 %v421, 16
      %v604 = vshll.u32 %v421, 16
      %v606 = vrot.slane %v604, 1
      %v607 = vor.u32 %v602, %v606
      %v609 = vshll.u32 %v424, 16
      %v611 = vrot.slane %v609, 1
      %v612 = vsel %vm576, %v607, %v611
      %v687 = vunpack.c.l.b16 %v504
      %v688 = vunpack.c.h.b16 %v504
      %v689 = vunpack.c.l.b16 %v505
      %v690 = vunpack.c.h.b16 %v505
      %v691 = vunpack.c.l.b16 %v506
      %v692 = vunpack.c.h.b16 %v506
      %v693 = vunpack.c.l.b16 %v507
      %v694 = vunpack.c.h.b16 %v507
      %v695 = vunpack.c.l.b16 %v508
      %v696 = vunpack.c.h.b16 %v508
      %v697 = vunpack.c.l.b16 %v509
      %v698 = vunpack.c.h.b16 %v509
      %v699 = vunpack.c.l.b16 %v510
      %v700 = vunpack.c.h.b16 %v510
      %v701 = vunpack.c.l.b16 %v511
      %v702 = vunpack.c.h.b16 %v511
      %v703 = vunpack.c.l.b16 %v512
      %v704 = vunpack.c.h.b16 %v512
      %v705 = vunpack.c.l.b16 %v513
      %v706 = vunpack.c.h.b16 %v513
      %v707 = vunpack.c.l.b16 %v514
      %v708 = vunpack.c.h.b16 %v514
      %v709 = vunpack.c.l.b16 %v515
      %v710 = vunpack.c.h.b16 %v515
      %v711 = vunpack.c.l.b16 %v516
      %v712 = vunpack.c.h.b16 %v516
      %v713 = vunpack.c.l.b16 %v517
      %v714 = vunpack.c.h.b16 %v517
      %v715 = vunpack.c.l.b16 %v518
      %v716 = vunpack.c.h.b16 %v518
      %v717 = vunpack.c.l.b16 %v519
      %v718 = vunpack.c.h.b16 %v519
      %v719 = vunpack.c.l.b16 %v520
      %v720 = vunpack.c.h.b16 %v520
      %v721 = vunpack.c.l.b16 %v521
      %v722 = vunpack.c.h.b16 %v521
      %v723 = vunpack.c.l.b16 %v522
      %v724 = vunpack.c.h.b16 %v522
      %v725 = vunpack.c.l.b16 %v523
      %v726 = vunpack.c.h.b16 %v523
      %v727 = vunpack.c.l.b16 %v524
      %v728 = vunpack.c.h.b16 %v524
      %v729 = vunpack.c.l.b16 %v525
      %v730 = vunpack.c.h.b16 %v525
      %v731 = vunpack.c.l.b16 %v526
      %v732 = vunpack.c.h.b16 %v526
      %v733 = vunpack.c.l.b16 %v527
      %v734 = vunpack.c.h.b16 %v527
      %v735 = vunpack.c.l.b16 %v528
      %v736 = vunpack.c.h.b16 %v528
      %v737 = vunpack.c.l.b16 %v529
      %v738 = vunpack.c.h.b16 %v529
      %v739 = vunpack.c.l.b16 %v530
      %v740 = vunpack.c.h.b16 %v530
      %v741 = vunpack.c.l.b16 %v531
      %v742 = vunpack.c.h.b16 %v531
      %v743 = vunpack.c.l.b16 %v532
      %v744 = vunpack.c.h.b16 %v532
      %v745 = vunpack.c.l.b16 %v533
      %v746 = vunpack.c.h.b16 %v533
      %v747 = vunpack.c.l.b16 %v534
      %v748 = vunpack.c.h.b16 %v534
      %v749 = vunpack.c.l.b16 %v535
      %v750 = vunpack.c.h.b16 %v535
      %v751 = vunpack.c.l.b16 %v536
      %v752 = vunpack.c.h.b16 %v536
      %v753 = vunpack.c.l.b16 %v537
      %v754 = vunpack.c.h.b16 %v537
      %v755 = vunpack.c.l.b16 %v538
      %v756 = vunpack.c.h.b16 %v538
      %v757 = vunpack.c.l.b16 %v539
      %v758 = vunpack.c.h.b16 %v539
      %v759 = vunpack.c.l.b16 %v540
      %v760 = vunpack.c.h.b16 %v540
      %v761 = vunpack.c.l.b16 %v541
      %v762 = vunpack.c.h.b16 %v541
      %v763 = vunpack.c.l.b16 %v542
      %v764 = vunpack.c.h.b16 %v542
      %v765 = vunpack.c.l.b16 %v543
      %v766 = vunpack.c.h.b16 %v543
      %v767 = vunpack.c.l.b16 %v544
      %v768 = vunpack.c.h.b16 %v544
      %v769 = vunpack.c.l.b16 %v545
      %v770 = vunpack.c.h.b16 %v545
      %v771 = vunpack.c.l.b16 %v546
      %v772 = vunpack.c.h.b16 %v546
      %v773 = vunpack.c.l.b16 %v547
      %v774 = vunpack.c.h.b16 %v547
      %v775 = vunpack.c.l.b16 %v548
      %v776 = vunpack.c.h.b16 %v548
      %v777 = vunpack.c.l.b16 %v549
      %v778 = vunpack.c.h.b16 %v549
      %v779 = vunpack.c.l.b16 %v550
      %v780 = vunpack.c.h.b16 %v550
      %v781 = vunpack.c.l.b16 %v551
      %v782 = vunpack.c.h.b16 %v551
      %v783 = vunpack.c.l.b16 %v552
      %v784 = vunpack.c.h.b16 %v552
      %v785 = vunpack.c.l.b16 %v553
      %v786 = vunpack.c.h.b16 %v553
      %v787 = vunpack.c.l.b16 %v554
      %v788 = vunpack.c.h.b16 %v554
      %v789 = vunpack.c.l.b16 %v555
      %v790 = vunpack.c.h.b16 %v555
      %v791 = vunpack.c.l.b16 %v556
      %v792 = vunpack.c.h.b16 %v556
      %v793 = vunpack.c.l.b16 %v557
      %v794 = vunpack.c.h.b16 %v557
      %v795 = vunpack.c.l.b16 %v558
      %v796 = vunpack.c.h.b16 %v558
      %v797 = vunpack.c.l.b16 %v559
      %v798 = vunpack.c.h.b16 %v559
      %v799 = vunpack.c.l.b16 %v560
      %v800 = vunpack.c.h.b16 %v560
      %v801 = vunpack.c.l.b16 %v561
      %v802 = vunpack.c.h.b16 %v561
      %v803 = vunpack.c.l.b16 %v562
      %v804 = vunpack.c.h.b16 %v562
      %v805 = vunpack.c.l.b16 %v563
      %v806 = vunpack.c.h.b16 %v563
      %v807 = vunpack.c.l.b16 %v564
      %v808 = vunpack.c.h.b16 %v564
      %v809 = vunpack.c.l.b16 %v565
      %v810 = vunpack.c.h.b16 %v565
      %v811 = vunpack.c.l.b16 %v566
      %v812 = vunpack.c.h.b16 %v566
      %v813 = vunpack.c.l.b16 %v567
      %v814 = vunpack.c.h.b16 %v567
      %v815 = vunpack.c.l.b16 %v568
      %v816 = vunpack.c.h.b16 %v568
      %v817 = vunpack.c.l.b16 %v569
      %v818 = vunpack.c.h.b16 %v569
      %v819 = vunpack.c.l.b16 %v570
      %v820 = vunpack.c.h.b16 %v570
      %v821 = vunpack.c.l.b16 %v571
      %v822 = vunpack.c.h.b16 %v571
      %v823 = vunpack.c.l.b16 %v572
      %v824 = vunpack.c.h.b16 %v572
      %v825 = vunpack.c.l.b16 %v573
      %v826 = vunpack.c.h.b16 %v573
      %v827 = vunpack.c.l.b16 %v574
      %v828 = vunpack.c.h.b16 %v574
      %v829 = vunpack.c.l.b16 %v575
      %v830 = vunpack.c.h.b16 %v575
      %v831 = vpack.c.b16 %v691, %v687
      %v832 = vpack.c.b16 %v692, %v688
      %v833 = vpack.c.b16 %v693, %v689
      %v834 = vpack.c.b16 %v694, %v690
      %v835 = vpack.c.b16 %v699, %v695
      %v836 = vpack.c.b16 %v700, %v696
      %v837 = vpack.c.b16 %v701, %v697
      %v838 = vpack.c.b16 %v702, %v698
      %v839 = vpack.c.b16 %v707, %v703
      %v840 = vpack.c.b16 %v708, %v704
      %v841 = vpack.c.b16 %v709, %v705
      %v842 = vpack.c.b16 %v710, %v706
      %v843 = vpack.c.b16 %v715, %v711
      %v844 = vpack.c.b16 %v716, %v712
      %v845 = vpack.c.b16 %v717, %v713
      %v846 = vpack.c.b16 %v718, %v714
      %v847 = vpack.c.b16 %v723, %v719
      %v848 = vpack.c.b16 %v724, %v720
      %v849 = vpack.c.b16 %v725, %v721
      %v850 = vpack.c.b16 %v726, %v722
      %v851 = vpack.c.b16 %v731, %v727
      %v852 = vpack.c.b16 %v732, %v728
      %v853 = vpack.c.b16 %v733, %v729
      %v854 = vpack.c.b16 %v734, %v730
      %v855 = vpack.c.b16 %v739, %v735
      %v856 = vpack.c.b16 %v740, %v736
      %v857 = vpack.c.b16 %v741, %v737
      %v858 = vpack.c.b16 %v742, %v738
      %v859 = vpack.c.b16 %v747, %v743
      %v860 = vpack.c.b16 %v748, %v744
      %v861 = vpack.c.b16 %v749, %v745
      %v862 = vpack.c.b16 %v750, %v746
      %v863 = vpack.c.b16 %v755, %v751
      %v864 = vpack.c.b16 %v756, %v752
      %v865 = vpack.c.b16 %v757, %v753
      %v866 = vpack.c.b16 %v758, %v754
      %v867 = vpack.c.b16 %v763, %v759
      %v868 = vpack.c.b16 %v764, %v760
      %v869 = vpack.c.b16 %v765, %v761
      %v870 = vpack.c.b16 %v766, %v762
      %v871 = vpack.c.b16 %v771, %v767
      %v872 = vpack.c.b16 %v772, %v768
      %v873 = vpack.c.b16 %v773, %v769
      %v874 = vpack.c.b16 %v774, %v770
      %v875 = vpack.c.b16 %v779, %v775
      %v876 = vpack.c.b16 %v780, %v776
      %v877 = vpack.c.b16 %v781, %v777
      %v878 = vpack.c.b16 %v782, %v778
      %v879 = vpack.c.b16 %v787, %v783
      %v880 = vpack.c.b16 %v788, %v784
      %v881 = vpack.c.b16 %v789, %v785
      %v882 = vpack.c.b16 %v790, %v786
      %v883 = vpack.c.b16 %v795, %v791
      %v884 = vpack.c.b16 %v796, %v792
      %v885 = vpack.c.b16 %v797, %v793
      %v886 = vpack.c.b16 %v798, %v794
      %v887 = vpack.c.b16 %v803, %v799
      %v888 = vpack.c.b16 %v804, %v800
      %v889 = vpack.c.b16 %v805, %v801
      %v890 = vpack.c.b16 %v806, %v802
      %v891 = vpack.c.b16 %v811, %v807
      %v892 = vpack.c.b16 %v812, %v808
      %v893 = vpack.c.b16 %v813, %v809
      %v894 = vpack.c.b16 %v814, %v810
      %v895 = vpack.c.b16 %v819, %v815
      %v896 = vpack.c.b16 %v820, %v816
      %v897 = vpack.c.b16 %v821, %v817
      %v898 = vpack.c.b16 %v822, %v818
      %v899 = vpack.c.b16 %v827, %v823
      %v900 = vpack.c.b16 %v828, %v824
      %v901 = vpack.c.b16 %v829, %v825
      %v902 = vpack.c.b16 %v830, %v826
      %vm975 = vcmask 261120
      %v977 = vsel %vm975, %v612, 0
      %979 = vmatprep.subr.bf16.mxu0 %v832
      %980 = vmatpush1.bf16.msra.mxu0 %v831
      %981 = vmatprep.subr.bf16.mxu0 %v836
      %982 = vmatpush1.bf16.msra.mxu0 %v835
      %983 = vmatprep.subr.bf16.mxu0 %v840
      %984 = vmatpush1.bf16.msra.mxu0 %v839
      %985 = vmatprep.subr.bf16.mxu0 %v844
      %986 = vmatpush1.bf16.msra.mxu0 %v843
      %987 = vmatprep.subr.bf16.mxu0 %v848
      %988 = vmatpush1.bf16.msra.mxu0 %v847
      %989 = vmatprep.subr.bf16.mxu0 %v852
      %990 = vmatpush1.bf16.msra.mxu0 %v851
      %991 = vmatprep.subr.bf16.mxu0 %v856
      %992 = vmatpush1.bf16.msra.mxu0 %v855
      %993 = vmatprep.subr.bf16.mxu0 %v860
      %994 = vmatpush1.bf16.msra.mxu0 %v859
      %995 = vmatprep.subr.bf16.mxu0 %v864
      %996 = vmatpush1.bf16.msra.mxu0 %v863
      %997 = vmatprep.subr.bf16.mxu0 %v868
      %998 = vmatpush1.bf16.msra.mxu0 %v867
      %999 = vmatprep.subr.bf16.mxu0 %v872
      %1000 = vmatpush1.bf16.msra.mxu0 %v871
      %1001 = vmatprep.subr.bf16.mxu0 %v876
      %1002 = vmatpush1.bf16.msra.mxu0 %v875
      %1003 = vmatprep.subr.bf16.mxu0 %v880
      %1004 = vmatpush1.bf16.msra.mxu0 %v879
      %1005 = vmatprep.subr.bf16.mxu0 %v884
      %1006 = vmatpush1.bf16.msra.mxu0 %v883
      %1007 = vmatprep.subr.bf16.mxu0 %v888
      %1008 = vmatpush1.bf16.msra.mxu0 %v887
      %1009 = vmatprep.subr.bf16.mxu0 %v892
      %1010 = vmatpush1.bf16.msra.mxu0 %v891
      %1011 = vmatprep.mubr.bf16.mxu0 %v600
      %1012 = vmatmul.mubr.bf16.gmra.mrb[0].mxu0 %v588
      %v1013 = vpop.f32.mrb[0].mxu0
      %v1014 = vadd.f32 0.0, %v1013
      %v1015 = vpop.f32.mrb[0].mxu0
      %v1016 = vadd.f32 0.0, %v1015
      %v1017 = vpop.f32.mrb[0].mxu0
      %v1018 = vadd.f32 0.0, %v1017
      %v1019 = vpop.f32.mrb[0].mxu0
      %v1020 = vadd.f32 0.0, %v1019
      %1021 = vdwg.mxu0
      %1022 = vmatprep.subr.bf16.mxu0 %v896
      %1023 = vmatpush1.bf16.msra.mxu0 %v895
      %1024 = vmatprep.subr.bf16.mxu0 %v900
      %1025 = vmatpush1.bf16.msra.mxu0 %v899
      %1026 = vmatprep.subr.bf16.mxu0 0
      %1027 = vmatpush1.bf16.msra.mxu0 0
      %1028 = vmatprep.subr.bf16.mxu0 0
      %1029 = vmatpush1.bf16.msra.mxu0 0
      %1030 = vmatprep.subr.bf16.mxu0 0
      %1031 = vmatpush1.bf16.msra.mxu0 0
      %1032 = vmatprep.subr.bf16.mxu0 0
      %1033 = vmatpush1.bf16.msra.mxu0 0
      %1034 = vmatprep.subr.bf16.mxu0 0
      %1035 = vmatpush1.bf16.msra.mxu0 0
      %1036 = vmatprep.subr.bf16.mxu0 0
      %1037 = vmatpush1.bf16.msra.mxu0 0
      %1038 = vmatprep.subr.bf16.mxu0 0
      %1039 = vmatpush1.bf16.msra.mxu0 0
      %1040 = vmatprep.subr.bf16.mxu0 0
      %1041 = vmatpush1.bf16.msra.mxu0 0
      %1042 = vmatprep.subr.bf16.mxu0 0
      %1043 = vmatpush1.bf16.msra.mxu0 0
      %1044 = vmatprep.subr.bf16.mxu0 0
      %1045 = vmatpush1.bf16.msra.mxu0 0
      %1046 = vmatprep.subr.bf16.mxu0 0
      %1047 = vmatpush1.bf16.msra.mxu0 0
      %1048 = vmatprep.subr.bf16.mxu0 0
      %1049 = vmatpush1.bf16.msra.mxu0 0
      %1050 = vmatprep.subr.bf16.mxu0 0
      %1051 = vmatpush1.bf16.msra.mxu0 0
      %1052 = vmatprep.subr.bf16.mxu0 0
      %1053 = vmatpush1.bf16.msra.mxu0 0
      %1054 = vmatprep.mubr.bf16.mxu0 0
      %1055 = vmatmul.mubr.bf16.gmra.mrb[0].mxu0 %v977
      %v1056 = vpop.f32.mrb[0].mxu0
      %v1057 = vadd.f32 %v1014, %v1056
      %v1058 = vpop.f32.mrb[0].mxu0
      %v1059 = vadd.f32 %v1016, %v1058
      %v1060 = vpop.f32.mrb[0].mxu0
      %v1061 = vadd.f32 %v1018, %v1060
      %v1062 = vpop.f32.mrb[0].mxu0
      %v1063 = vadd.f32 %v1020, %v1062
      %1064 = vdwg.mxu0
      %1065 = vmatprep.subr.bf16.mxu0 %v834
      %1066 = vmatpush1.bf16.msra.mxu0 %v833
      %1067 = vmatprep.subr.bf16.mxu0 %v838
      %1068 = vmatpush1.bf16.msra.mxu0 %v837
      %1069 = vmatprep.subr.bf16.mxu0 %v842
      %1070 = vmatpush1.bf16.msra.mxu0 %v841
      %1071 = vmatprep.subr.bf16.mxu0 %v846
      %1072 = vmatpush1.bf16.msra.mxu0 %v845
      %1073 = vmatprep.subr.bf16.mxu0 %v850
      %1074 = vmatpush1.bf16.msra.mxu0 %v849
      %1075 = vmatprep.subr.bf16.mxu0 %v854
      %1076 = vmatpush1.bf16.msra.mxu0 %v853
      %1077 = vmatprep.subr.bf16.mxu0 %v858
      %1078 = vmatpush1.bf16.msra.mxu0 %v857
      %1079 = vmatprep.subr.bf16.mxu0 %v862
      %1080 = vmatpush1.bf16.msra.mxu0 %v861
      %1081 = vmatprep.subr.bf16.mxu0 %v866
      %1082 = vmatpush1.bf16.msra.mxu0 %v865
      %1083 = vmatprep.subr.bf16.mxu0 %v870
      %1084 = vmatpush1.bf16.msra.mxu0 %v869
      %1085 = vmatprep.subr.bf16.mxu0 %v874
      %1086 = vmatpush1.bf16.msra.mxu0 %v873
      %1087 = vmatprep.subr.bf16.mxu0 %v878
      %1088 = vmatpush1.bf16.msra.mxu0 %v877
      %1089 = vmatprep.subr.bf16.mxu0 %v882
      %1090 = vmatpush1.bf16.msra.mxu0 %v881
      %1091 = vmatprep.subr.bf16.mxu0 %v886
      %1092 = vmatpush1.bf16.msra.mxu0 %v885
      %1093 = vmatprep.subr.bf16.mxu0 %v890
      %1094 = vmatpush1.bf16.msra.mxu0 %v889
      %1095 = vmatprep.subr.bf16.mxu0 %v894
      %1096 = vmatpush1.bf16.msra.mxu0 %v893
      %1097 = vmatprep.mubr.bf16.mxu0 %v600
      %1098 = vmatmul.mubr.bf16.gmra.mrb[0].mxu0 %v588
      %v1099 = vpop.f32.mrb[0].mxu0
      %v1100 = vadd.f32 0.0, %v1099
      %v1101 = vpop.f32.mrb[0].mxu0
      %v1102 = vadd.f32 0.0, %v1101
      %v1103 = vpop.f32.mrb[0].mxu0
      %v1104 = vadd.f32 0.0, %v1103
      %v1105 = vpop.f32.mrb[0].mxu0
      %v1106 = vadd.f32 0.0, %v1105
      %1107 = vdwg.mxu0
      %1108 = vmatprep.subr.bf16.mxu0 %v898
      %1109 = vmatpush1.bf16.msra.mxu0 %v897
      %1110 = vmatprep.subr.bf16.mxu0 %v902
      %1111 = vmatpush1.bf16.msra.mxu0 %v901
      %1112 = vmatprep.subr.bf16.mxu0 0
      %1113 = vmatpush1.bf16.msra.mxu0 0
      %1114 = vmatprep.subr.bf16.mxu0 0
      %1115 = vmatpush1.bf16.msra.mxu0 0
      %1116 = vmatprep.subr.bf16.mxu0 0
      %1117 = vmatpush1.bf16.msra.mxu0 0
      %1118 = vmatprep.subr.bf16.mxu0 0
      %1119 = vmatpush1.bf16.msra.mxu0 0
      %1120 = vmatprep.subr.bf16.mxu0 0
      %1121 = vmatpush1.bf16.msra.mxu0 0
      %1122 = vmatprep.subr.bf16.mxu0 0
      %1123 = vmatpush1.bf16.msra.mxu0 0
      %1124 = vmatprep.subr.bf16.mxu0 0
      %1125 = vmatpush1.bf16.msra.mxu0 0
      %1126 = vmatprep.subr.bf16.mxu0 0
      %1127 = vmatpush1.bf16.msra.mxu0 0
      %1128 = vmatprep.subr.bf16.mxu0 0
      %1129 = vmatpush1.bf16.msra.mxu0 0
      %1130 = vmatprep.subr.bf16.mxu0 0
      %1131 = vmatpush1.bf16.msra.mxu0 0
      %1132 = vmatprep.subr.bf16.mxu0 0
      %1133 = vmatpush1.bf16.msra.mxu0 0
      %1134 = vmatprep.subr.bf16.mxu0 0
      %1135 = vmatpush1.bf16.msra.mxu0 0
      %1136 = vmatprep.subr.bf16.mxu0 0
      %1137 = vmatpush1.bf16.msra.mxu0 0
      %1138 = vmatprep.subr.bf16.mxu0 0
      %1139 = vmatpush1.bf16.msra.mxu0 0
      %1140 = vmatprep.mubr.bf16.mxu0 0
      %1141 = vmatmul.mubr.bf16.gmra.mrb[0].mxu0 %v977
      %v1142 = vpop.f32.mrb[0].mxu0
      %v1143 = vadd.f32 %v1100, %v1142
      %v1144 = vpop.f32.mrb[0].mxu0
      %v1145 = vadd.f32 %v1102, %v1144
      %v1146 = vpop.f32.mrb[0].mxu0
      %v1147 = vadd.f32 %v1104, %v1146
      %v1148 = vpop.f32.mrb[0].mxu0
      %v1149 = vadd.f32 %v1106, %v1148
      %1150 = vdwg.mxu0
      %v1152 = vshrl.u32 %v425, 16
      %v1154 = vshll.u32 %v425, 16
      %v1156 = vrot.slane %v1154, 1
      %v1157 = vor.u32 %v1152, %v1156
      %v1159 = vshll.u32 %v428, 16
      %v1161 = vrot.slane %v1159, 1
      %v1162 = vsel %vm576, %v1157, %v1161
      %v1164 = vshrl.u32 %v426, 16
      %v1166 = vshll.u32 %v426, 16
      %v1168 = vrot.slane %v1166, 1
      %v1169 = vor.u32 %v1164, %v1168
      %v1171 = vshll.u32 %v429, 16
      %v1173 = vrot.slane %v1171, 1
      %v1174 = vsel %vm576, %v1169, %v1173
      %v1176 = vshrl.u32 %v427, 16
      %v1178 = vshll.u32 %v427, 16
      %v1180 = vrot.slane %v1178, 1
      %v1181 = vor.u32 %v1176, %v1180
      %v1183 = vshll.u32 %v430, 16
      %v1185 = vrot.slane %v1183, 1
      %v1186 = vsel %vm576, %v1181, %v1185
      %v1190 = vsel %vm975, %v1186, 0
      %1192 = vmatprep.subr.bf16.mxu0 %v832
      %1193 = vmatpush1.bf16.msra.mxu0 %v831
      %1194 = vmatprep.subr.bf16.mxu0 %v836
      %1195 = vmatpush1.bf16.msra.mxu0 %v835
      %1196 = vmatprep.subr.bf16.mxu0 %v840
      %1197 = vmatpush1.bf16.msra.mxu0 %v839
      %1198 = vmatprep.subr.bf16.mxu0 %v844
      %1199 = vmatpush1.bf16.msra.mxu0 %v843
      %1200 = vmatprep.subr.bf16.mxu0 %v848
      %1201 = vmatpush1.bf16.msra.mxu0 %v847
      %1202 = vmatprep.subr.bf16.mxu0 %v852
      %1203 = vmatpush1.bf16.msra.mxu0 %v851
      %1204 = vmatprep.subr.bf16.mxu0 %v856
      %1205 = vmatpush1.bf16.msra.mxu0 %v855
      %1206 = vmatprep.subr.bf16.mxu0 %v860
      %1207 = vmatpush1.bf16.msra.mxu0 %v859
      %1208 = vmatprep.subr.bf16.mxu0 %v864
      %1209 = vmatpush1.bf16.msra.mxu0 %v863
      %1210 = vmatprep.subr.bf16.mxu0 %v868
      %1211 = vmatpush1.bf16.msra.mxu0 %v867
      %1212 = vmatprep.subr.bf16.mxu0 %v872
      %1213 = vmatpush1.bf16.msra.mxu0 %v871
      %1214 = vmatprep.subr.bf16.mxu0 %v876
      %1215 = vmatpush1.bf16.msra.mxu0 %v875
      %1216 = vmatprep.subr.bf16.mxu0 %v880
      %1217 = vmatpush1.bf16.msra.mxu0 %v879
      %1218 = vmatprep.subr.bf16.mxu0 %v884
      %1219 = vmatpush1.bf16.msra.mxu0 %v883
      %1220 = vmatprep.subr.bf16.mxu0 %v888
      %1221 = vmatpush1.bf16.msra.mxu0 %v887
      %1222 = vmatprep.subr.bf16.mxu0 %v892
      %1223 = vmatpush1.bf16.msra.mxu0 %v891
      %1224 = vmatprep.mubr.bf16.mxu0 %v1174
      %1225 = vmatmul.mubr.bf16.gmra.mrb[0].mxu0 %v1162
      %v1226 = vpop.f32.mrb[0].mxu0
      %v1227 = vadd.f32 0.0, %v1226
      %v1228 = vpop.f32.mrb[0].mxu0
      %v1229 = vadd.f32 0.0, %v1228
      %v1230 = vpop.f32.mrb[0].mxu0
      %v1231 = vadd.f32 0.0, %v1230
      %v1232 = vpop.f32.mrb[0].mxu0
      %v1233 = vadd.f32 0.0, %v1232
      %1234 = vdwg.mxu0
      %1235 = vmatprep.subr.bf16.mxu0 %v896
      %1236 = vmatpush1.bf16.msra.mxu0 %v895
      %1237 = vmatprep.subr.bf16.mxu0 %v900
      %1238 = vmatpush1.bf16.msra.mxu0 %v899
      %1239 = vmatprep.subr.bf16.mxu0 0
      %1240 = vmatpush1.bf16.msra.mxu0 0
      %1241 = vmatprep.subr.bf16.mxu0 0
      %1242 = vmatpush1.bf16.msra.mxu0 0
      %1243 = vmatprep.subr.bf16.mxu0 0
      %1244 = vmatpush1.bf16.msra.mxu0 0
      %1245 = vmatprep.subr.bf16.mxu0 0
      %1246 = vmatpush1.bf16.msra.mxu0 0
      %1247 = vmatprep.subr.bf16.mxu0 0
      %1248 = vmatpush1.bf16.msra.mxu0 0
      %1249 = vmatprep.subr.bf16.mxu0 0
      %1250 = vmatpush1.bf16.msra.mxu0 0
      %1251 = vmatprep.subr.bf16.mxu0 0
      %1252 = vmatpush1.bf16.msra.mxu0 0
      %1253 = vmatprep.subr.bf16.mxu0 0
      %1254 = vmatpush1.bf16.msra.mxu0 0
      %1255 = vmatprep.subr.bf16.mxu0 0
      %1256 = vmatpush1.bf16.msra.mxu0 0
      %1257 = vmatprep.subr.bf16.mxu0 0
      %1258 = vmatpush1.bf16.msra.mxu0 0
      %1259 = vmatprep.subr.bf16.mxu0 0
      %1260 = vmatpush1.bf16.msra.mxu0 0
      %1261 = vmatprep.subr.bf16.mxu0 0
      %1262 = vmatpush1.bf16.msra.mxu0 0
      %1263 = vmatprep.subr.bf16.mxu0 0
      %1264 = vmatpush1.bf16.msra.mxu0 0
      %1265 = vmatprep.subr.bf16.mxu0 0
      %1266 = vmatpush1.bf16.msra.mxu0 0
      %1267 = vmatprep.mubr.bf16.mxu0 0
      %1268 = vmatmul.mubr.bf16.gmra.mrb[0].mxu0 %v1190
      %v1269 = vpop.f32.mrb[0].mxu0
      %v1270 = vadd.f32 %v1227, %v1269
      %v1271 = vpop.f32.mrb[0].mxu0
      %v1272 = vadd.f32 %v1229, %v1271
      %v1273 = vpop.f32.mrb[0].mxu0
      %v1274 = vadd.f32 %v1231, %v1273
      %v1275 = vpop.f32.mrb[0].mxu0
      %v1276 = vadd.f32 %v1233, %v1275
      %1277 = vdwg.mxu0
      %1278 = vmatprep.subr.bf16.mxu0 %v834
      %1279 = vmatpush1.bf16.msra.mxu0 %v833
      %1280 = vmatprep.subr.bf16.mxu0 %v838
      %1281 = vmatpush1.bf16.msra.mxu0 %v837
      %1282 = vmatprep.subr.bf16.mxu0 %v842
      %1283 = vmatpush1.bf16.msra.mxu0 %v841
      %1284 = vmatprep.subr.bf16.mxu0 %v846
      %1285 = vmatpush1.bf16.msra.mxu0 %v845
      %1286 = vmatprep.subr.bf16.mxu0 %v850
      %1287 = vmatpush1.bf16.msra.mxu0 %v849
      %1288 = vmatprep.subr.bf16.mxu0 %v854
      %1289 = vmatpush1.bf16.msra.mxu0 %v853
      %1290 = vmatprep.subr.bf16.mxu0 %v858
      %1291 = vmatpush1.bf16.msra.mxu0 %v857
      %1292 = vmatprep.subr.bf16.mxu0 %v862
      %1293 = vmatpush1.bf16.msra.mxu0 %v861
      %1294 = vmatprep.subr.bf16.mxu0 %v866
      %1295 = vmatpush1.bf16.msra.mxu0 %v865
      %1296 = vmatprep.subr.bf16.mxu0 %v870
      %1297 = vmatpush1.bf16.msra.mxu0 %v869
      %1298 = vmatprep.subr.bf16.mxu0 %v874
      %1299 = vmatpush1.bf16.msra.mxu0 %v873
      %1300 = vmatprep.subr.bf16.mxu0 %v878
      %1301 = vmatpush1.bf16.msra.mxu0 %v877
      %1302 = vmatprep.subr.bf16.mxu0 %v882
      %1303 = vmatpush1.bf16.msra.mxu0 %v881
      %1304 = vmatprep.subr.bf16.mxu0 %v886
      %1305 = vmatpush1.bf16.msra.mxu0 %v885
      %1306 = vmatprep.subr.bf16.mxu0 %v890
      %1307 = vmatpush1.bf16.msra.mxu0 %v889
      %1308 = vmatprep.subr.bf16.mxu0 %v894
      %1309 = vmatpush1.bf16.msra.mxu0 %v893
      %1310 = vmatprep.mubr.bf16.mxu0 %v1174
      %1311 = vmatmul.mubr.bf16.gmra.mrb[0].mxu0 %v1162
      %v1312 = vpop.f32.mrb[0].mxu0
      %v1313 = vadd.f32 0.0, %v1312
      %v1314 = vpop.f32.mrb[0].mxu0
      %v1315 = vadd.f32 0.0, %v1314
      %v1316 = vpop.f32.mrb[0].mxu0
      %v1317 = vadd.f32 0.0, %v1316
      %v1318 = vpop.f32.mrb[0].mxu0
      %v1319 = vadd.f32 0.0, %v1318
      %1320 = vdwg.mxu0
      %1321 = vmatprep.subr.bf16.mxu0 %v898
      %1322 = vmatpush1.bf16.msra.mxu0 %v897
      %1323 = vmatprep.subr.bf16.mxu0 %v902
      %1324 = vmatpush1.bf16.msra.mxu0 %v901
      %1325 = vmatprep.subr.bf16.mxu0 0
      %1326 = vmatpush1.bf16.msra.mxu0 0
      %1327 = vmatprep.subr.bf16.mxu0 0
      %1328 = vmatpush1.bf16.msra.mxu0 0
      %1329 = vmatprep.subr.bf16.mxu0 0
      %1330 = vmatpush1.bf16.msra.mxu0 0
      %1331 = vmatprep.subr.bf16.mxu0 0
      %1332 = vmatpush1.bf16.msra.mxu0 0
      %1333 = vmatprep.subr.bf16.mxu0 0
      %1334 = vmatpush1.bf16.msra.mxu0 0
      %1335 = vmatprep.subr.bf16.mxu0 0
      %1336 = vmatpush1.bf16.msra.mxu0 0
      %1337 = vmatprep.subr.bf16.mxu0 0
      %1338 = vmatpush1.bf16.msra.mxu0 0
      %1339 = vmatprep.subr.bf16.mxu0 0
      %1340 = vmatpush1.bf16.msra.mxu0 0
      %1341 = vmatprep.subr.bf16.mxu0 0
      %1342 = vmatpush1.bf16.msra.mxu0 0
      %1343 = vmatprep.subr.bf16.mxu0 0
      %1344 = vmatpush1.bf16.msra.mxu0 0
      %1345 = vmatprep.subr.bf16.mxu0 0
      %1346 = vmatpush1.bf16.msra.mxu0 0
      %1347 = vmatprep.subr.bf16.mxu0 0
      %1348 = vmatpush1.bf16.msra.mxu0 0
      %1349 = vmatprep.subr.bf16.mxu0 0
      %1350 = vmatpush1.bf16.msra.mxu0 0
      %1351 = vmatprep.subr.bf16.mxu0 0
      %1352 = vmatpush1.bf16.msra.mxu0 0
      %1353 = vmatprep.mubr.bf16.mxu0 0
      %1354 = vmatmul.mubr.bf16.gmra.mrb[0].mxu0 %v1190
      %v1355 = vpop.f32.mrb[0].mxu0
      %v1356 = vadd.f32 %v1313, %v1355
      %v1357 = vpop.f32.mrb[0].mxu0
      %v1358 = vadd.f32 %v1315, %v1357
      %v1359 = vpop.f32.mrb[0].mxu0
      %v1360 = vadd.f32 %v1317, %v1359
      %v1361 = vpop.f32.mrb[0].mxu0
      %v1362 = vadd.f32 %v1319, %v1361
      %1363 = vdwg.mxu0
      %v1436 = vunpack.c.l.b16 %v431
      %v1437 = vunpack.c.h.b16 %v431
      %v1438 = vunpack.c.l.b16 %v432
      %v1439 = vunpack.c.h.b16 %v432
      %v1440 = vunpack.c.l.b16 %v433
      %v1441 = vunpack.c.h.b16 %v433
      %v1442 = vunpack.c.l.b16 %v434
      %v1443 = vunpack.c.h.b16 %v434
      %v1444 = vunpack.c.l.b16 %v435
      %v1445 = vunpack.c.h.b16 %v435
      %v1446 = vunpack.c.l.b16 %v436
      %v1447 = vunpack.c.h.b16 %v436
      %v1448 = vunpack.c.l.b16 %v437
      %v1449 = vunpack.c.h.b16 %v437
      %v1450 = vunpack.c.l.b16 %v438
      %v1451 = vunpack.c.h.b16 %v438
      %v1452 = vunpack.c.l.b16 %v439
      %v1453 = vunpack.c.h.b16 %v439
      %v1454 = vunpack.c.l.b16 %v440
      %v1455 = vunpack.c.h.b16 %v440
      %v1456 = vunpack.c.l.b16 %v441
      %v1457 = vunpack.c.h.b16 %v441
      %v1458 = vunpack.c.l.b16 %v442
      %v1459 = vunpack.c.h.b16 %v442
      %v1460 = vunpack.c.l.b16 %v443
      %v1461 = vunpack.c.h.b16 %v443
      %v1462 = vunpack.c.l.b16 %v444
      %v1463 = vunpack.c.h.b16 %v444
      %v1464 = vunpack.c.l.b16 %v445
      %v1465 = vunpack.c.h.b16 %v445
      %v1466 = vunpack.c.l.b16 %v446
      %v1467 = vunpack.c.h.b16 %v446
      %v1468 = vunpack.c.l.b16 %v447
      %v1469 = vunpack.c.h.b16 %v447
      %v1470 = vunpack.c.l.b16 %v448
      %v1471 = vunpack.c.h.b16 %v448
      %v1472 = vunpack.c.l.b16 %v449
      %v1473 = vunpack.c.h.b16 %v449
      %v1474 = vunpack.c.l.b16 %v450
      %v1475 = vunpack.c.h.b16 %v450
      %v1476 = vunpack.c.l.b16 %v451
      %v1477 = vunpack.c.h.b16 %v451
      %v1478 = vunpack.c.l.b16 %v452
      %v1479 = vunpack.c.h.b16 %v452
      %v1480 = vunpack.c.l.b16 %v453
      %v1481 = vunpack.c.h.b16 %v453
      %v1482 = vunpack.c.l.b16 %v454
      %v1483 = vunpack.c.h.b16 %v454
      %v1484 = vunpack.c.l.b16 %v455
      %v1485 = vunpack.c.h.b16 %v455
      %v1486 = vunpack.c.l.b16 %v456
      %v1487 = vunpack.c.h.b16 %v456
      %v1488 = vunpack.c.l.b16 %v457
      %v1489 = vunpack.c.h.b16 %v457
      %v1490 = vunpack.c.l.b16 %v458
      %v1491 = vunpack.c.h.b16 %v458
      %v1492 = vunpack.c.l.b16 %v459
      %v1493 = vunpack.c.h.b16 %v459
      %v1494 = vunpack.c.l.b16 %v460
      %v1495 = vunpack.c.h.b16 %v460
      %v1496 = vunpack.c.l.b16 %v461
      %v1497 = vunpack.c.h.b16 %v461
      %v1498 = vunpack.c.l.b16 %v462
      %v1499 = vunpack.c.h.b16 %v462
      %v1500 = vunpack.c.l.b16 %v463
      %v1501 = vunpack.c.h.b16 %v463
      %v1502 = vunpack.c.l.b16 %v464
      %v1503 = vunpack.c.h.b16 %v464
      %v1504 = vunpack.c.l.b16 %v465
      %v1505 = vunpack.c.h.b16 %v465
      %v1506 = vunpack.c.l.b16 %v466
      %v1507 = vunpack.c.h.b16 %v466
      %v1508 = vunpack.c.l.b16 %v467
      %v1509 = vunpack.c.h.b16 %v467
      %v1510 = vunpack.c.l.b16 %v468
      %v1511 = vunpack.c.h.b16 %v468
      %v1512 = vunpack.c.l.b16 %v469
      %v1513 = vunpack.c.h.b16 %v469
      %v1514 = vunpack.c.l.b16 %v470
      %v1515 = vunpack.c.h.b16 %v470
      %v1516 = vunpack.c.l.b16 %v471
      %v1517 = vunpack.c.h.b16 %v471
      %v1518 = vunpack.c.l.b16 %v472
      %v1519 = vunpack.c.h.b16 %v472
      %v1520 = vunpack.c.l.b16 %v473
      %v1521 = vunpack.c.h.b16 %v473
      %v1522 = vunpack.c.l.b16 %v474
      %v1523 = vunpack.c.h.b16 %v474
      %v1524 = vunpack.c.l.b16 %v475
      %v1525 = vunpack.c.h.b16 %v475
      %v1526 = vunpack.c.l.b16 %v476
      %v1527 = vunpack.c.h.b16 %v476
      %v1528 = vunpack.c.l.b16 %v477
      %v1529 = vunpack.c.h.b16 %v477
      %v1530 = vunpack.c.l.b16 %v478
      %v1531 = vunpack.c.h.b16 %v478
      %v1532 = vunpack.c.l.b16 %v479
      %v1533 = vunpack.c.h.b16 %v479
      %v1534 = vunpack.c.l.b16 %v480
      %v1535 = vunpack.c.h.b16 %v480
      %v1536 = vunpack.c.l.b16 %v481
      %v1537 = vunpack.c.h.b16 %v481
      %v1538 = vunpack.c.l.b16 %v482
      %v1539 = vunpack.c.h.b16 %v482
      %v1540 = vunpack.c.l.b16 %v483
      %v1541 = vunpack.c.h.b16 %v483
      %v1542 = vunpack.c.l.b16 %v484
      %v1543 = vunpack.c.h.b16 %v484
      %v1544 = vunpack.c.l.b16 %v485
      %v1545 = vunpack.c.h.b16 %v485
      %v1546 = vunpack.c.l.b16 %v486
      %v1547 = vunpack.c.h.b16 %v486
      %v1548 = vunpack.c.l.b16 %v487
      %v1549 = vunpack.c.h.b16 %v487
      %v1550 = vunpack.c.l.b16 %v488
      %v1551 = vunpack.c.h.b16 %v488
      %v1552 = vunpack.c.l.b16 %v489
      %v1553 = vunpack.c.h.b16 %v489
      %v1554 = vunpack.c.l.b16 %v490
      %v1555 = vunpack.c.h.b16 %v490
      %v1556 = vunpack.c.l.b16 %v491
      %v1557 = vunpack.c.h.b16 %v491
      %v1558 = vunpack.c.l.b16 %v492
      %v1559 = vunpack.c.h.b16 %v492
      %v1560 = vunpack.c.l.b16 %v493
      %v1561 = vunpack.c.h.b16 %v493
      %v1562 = vunpack.c.l.b16 %v494
      %v1563 = vunpack.c.h.b16 %v494
      %v1564 = vunpack.c.l.b16 %v495
      %v1565 = vunpack.c.h.b16 %v495
      %v1566 = vunpack.c.l.b16 %v496
      %v1567 = vunpack.c.h.b16 %v496
      %v1568 = vunpack.c.l.b16 %v497
      %v1569 = vunpack.c.h.b16 %v497
      %v1570 = vunpack.c.l.b16 %v498
      %v1571 = vunpack.c.h.b16 %v498
      %v1572 = vunpack.c.l.b16 %v499
      %v1573 = vunpack.c.h.b16 %v499
      %v1574 = vunpack.c.l.b16 %v500
      %v1575 = vunpack.c.h.b16 %v500
      %v1576 = vunpack.c.l.b16 %v501
      %v1577 = vunpack.c.h.b16 %v501
      %v1578 = vunpack.c.l.b16 %v502
      %v1579 = vunpack.c.h.b16 %v502
      %v1580 = vpack.c.b16 %v1440, %v1436
      %v1581 = vpack.c.b16 %v1441, %v1437
      %v1582 = vpack.c.b16 %v1442, %v1438
      %v1583 = vpack.c.b16 %v1443, %v1439
      %v1584 = vpack.c.b16 %v1448, %v1444
      %v1585 = vpack.c.b16 %v1449, %v1445
      %v1586 = vpack.c.b16 %v1450, %v1446
      %v1587 = vpack.c.b16 %v1451, %v1447
      %v1588 = vpack.c.b16 %v1456, %v1452
      %v1589 = vpack.c.b16 %v1457, %v1453
      %v1590 = vpack.c.b16 %v1458, %v1454
      %v1591 = vpack.c.b16 %v1459, %v1455
      %v1592 = vpack.c.b16 %v1464, %v1460
      %v1593 = vpack.c.b16 %v1465, %v1461
      %v1594 = vpack.c.b16 %v1466, %v1462
      %v1595 = vpack.c.b16 %v1467, %v1463
      %v1596 = vpack.c.b16 %v1472, %v1468
      %v1597 = vpack.c.b16 %v1473, %v1469
      %v1598 = vpack.c.b16 %v1474, %v1470
      %v1599 = vpack.c.b16 %v1475, %v1471
      %v1600 = vpack.c.b16 %v1480, %v1476
      %v1601 = vpack.c.b16 %v1481, %v1477
      %v1602 = vpack.c.b16 %v1482, %v1478
      %v1603 = vpack.c.b16 %v1483, %v1479
      %v1604 = vpack.c.b16 %v1488, %v1484
      %v1605 = vpack.c.b16 %v1489, %v1485
      %v1606 = vpack.c.b16 %v1490, %v1486
      %v1607 = vpack.c.b16 %v1491, %v1487
      %v1608 = vpack.c.b16 %v1496, %v1492
      %v1609 = vpack.c.b16 %v1497, %v1493
      %v1610 = vpack.c.b16 %v1498, %v1494
      %v1611 = vpack.c.b16 %v1499, %v1495
      %v1612 = vpack.c.b16 %v1504, %v1500
      %v1613 = vpack.c.b16 %v1505, %v1501
      %v1614 = vpack.c.b16 %v1506, %v1502
      %v1615 = vpack.c.b16 %v1507, %v1503
      %v1616 = vpack.c.b16 %v1512, %v1508
      %v1617 = vpack.c.b16 %v1513, %v1509
      %v1618 = vpack.c.b16 %v1514, %v1510
      %v1619 = vpack.c.b16 %v1515, %v1511
      %v1620 = vpack.c.b16 %v1520, %v1516
      %v1621 = vpack.c.b16 %v1521, %v1517
      %v1622 = vpack.c.b16 %v1522, %v1518
      %v1623 = vpack.c.b16 %v1523, %v1519
      %v1624 = vpack.c.b16 %v1528, %v1524
      %v1625 = vpack.c.b16 %v1529, %v1525
      %v1626 = vpack.c.b16 %v1530, %v1526
      %v1627 = vpack.c.b16 %v1531, %v1527
      %v1628 = vpack.c.b16 %v1536, %v1532
      %v1629 = vpack.c.b16 %v1537, %v1533
      %v1630 = vpack.c.b16 %v1538, %v1534
      %v1631 = vpack.c.b16 %v1539, %v1535
      %v1632 = vpack.c.b16 %v1544, %v1540
      %v1633 = vpack.c.b16 %v1545, %v1541
      %v1634 = vpack.c.b16 %v1546, %v1542
      %v1635 = vpack.c.b16 %v1547, %v1543
      %v1636 = vpack.c.b16 %v1552, %v1548
      %v1637 = vpack.c.b16 %v1553, %v1549
      %v1638 = vpack.c.b16 %v1554, %v1550
      %v1639 = vpack.c.b16 %v1555, %v1551
      %v1640 = vpack.c.b16 %v1560, %v1556
      %v1641 = vpack.c.b16 %v1561, %v1557
      %v1642 = vpack.c.b16 %v1562, %v1558
      %v1643 = vpack.c.b16 %v1563, %v1559
      %v1644 = vpack.c.b16 %v1568, %v1564
      %v1645 = vpack.c.b16 %v1569, %v1565
      %v1646 = vpack.c.b16 %v1570, %v1566
      %v1647 = vpack.c.b16 %v1571, %v1567
      %v1648 = vpack.c.b16 %v1576, %v1572
      %v1649 = vpack.c.b16 %v1577, %v1573
      %v1650 = vpack.c.b16 %v1578, %v1574
      %v1651 = vpack.c.b16 %v1579, %v1575
      %v1724 = vsel %vm975, %v421, 0
      %1726 = vmatprep.subr.bf16.mxu0 %v1581
      %1727 = vmatpush1.bf16.msra.mxu0 %v1580
      %1728 = vmatprep.subr.bf16.mxu0 %v1585
      %1729 = vmatpush1.bf16.msra.mxu0 %v1584
      %1730 = vmatprep.subr.bf16.mxu0 %v1589
      %1731 = vmatpush1.bf16.msra.mxu0 %v1588
      %1732 = vmatprep.subr.bf16.mxu0 %v1593
      %1733 = vmatpush1.bf16.msra.mxu0 %v1592
      %1734 = vmatprep.subr.bf16.mxu0 %v1597
      %1735 = vmatpush1.bf16.msra.mxu0 %v1596
      %1736 = vmatprep.subr.bf16.mxu0 %v1601
      %1737 = vmatpush1.bf16.msra.mxu0 %v1600
      %1738 = vmatprep.subr.bf16.mxu0 %v1605
      %1739 = vmatpush1.bf16.msra.mxu0 %v1604
      %1740 = vmatprep.subr.bf16.mxu0 %v1609
      %1741 = vmatpush1.bf16.msra.mxu0 %v1608
      %1742 = vmatprep.subr.bf16.mxu0 %v1613
      %1743 = vmatpush1.bf16.msra.mxu0 %v1612
      %1744 = vmatprep.subr.bf16.mxu0 %v1617
      %1745 = vmatpush1.bf16.msra.mxu0 %v1616
      %1746 = vmatprep.subr.bf16.mxu0 %v1621
      %1747 = vmatpush1.bf16.msra.mxu0 %v1620
      %1748 = vmatprep.subr.bf16.mxu0 %v1625
      %1749 = vmatpush1.bf16.msra.mxu0 %v1624
      %1750 = vmatprep.subr.bf16.mxu0 %v1629
      %1751 = vmatpush1.bf16.msra.mxu0 %v1628
      %1752 = vmatprep.subr.bf16.mxu0 %v1633
      %1753 = vmatpush1.bf16.msra.mxu0 %v1632
      %1754 = vmatprep.subr.bf16.mxu0 %v1637
      %1755 = vmatpush1.bf16.msra.mxu0 %v1636
      %1756 = vmatprep.subr.bf16.mxu0 %v1641
      %1757 = vmatpush1.bf16.msra.mxu0 %v1640
      %1758 = vmatprep.mubr.bf16.mxu0 %v420
      %1759 = vmatmul.mubr.bf16.gmra.mrb[0].mxu0 %v419
      %v1760 = vpop.f32.mrb[0].mxu0
      %v1761 = vadd.f32 %v1057, %v1760
      %v1762 = vpop.f32.mrb[0].mxu0
      %v1763 = vadd.f32 %v1059, %v1762
      %v1764 = vpop.f32.mrb[0].mxu0
      %v1765 = vadd.f32 %v1061, %v1764
      %v1766 = vpop.f32.mrb[0].mxu0
      %v1767 = vadd.f32 %v1063, %v1766
      %1768 = vdwg.mxu0
      %1769 = vmatprep.subr.bf16.mxu0 %v1645
      %1770 = vmatpush1.bf16.msra.mxu0 %v1644
      %1771 = vmatprep.subr.bf16.mxu0 %v1649
      %1772 = vmatpush1.bf16.msra.mxu0 %v1648
      %1773 = vmatprep.subr.bf16.mxu0 0
      %1774 = vmatpush1.bf16.msra.mxu0 0
      %1775 = vmatprep.subr.bf16.mxu0 0
      %1776 = vmatpush1.bf16.msra.mxu0 0
      %1777 = vmatprep.subr.bf16.mxu0 0
      %1778 = vmatpush1.bf16.msra.mxu0 0
      %1779 = vmatprep.subr.bf16.mxu0 0
      %1780 = vmatpush1.bf16.msra.mxu0 0
      %1781 = vmatprep.subr.bf16.mxu0 0
      %1782 = vmatpush1.bf16.msra.mxu0 0
      %1783 = vmatprep.subr.bf16.mxu0 0
      %1784 = vmatpush1.bf16.msra.mxu0 0
      %1785 = vmatprep.subr.bf16.mxu0 0
      %1786 = vmatpush1.bf16.msra.mxu0 0
      %1787 = vmatprep.subr.bf16.mxu0 0
      %1788 = vmatpush1.bf16.msra.mxu0 0
      %1789 = vmatprep.subr.bf16.mxu0 0
      %1790 = vmatpush1.bf16.msra.mxu0 0
      %1791 = vmatprep.subr.bf16.mxu0 0
      %1792 = vmatpush1.bf16.msra.mxu0 0
      %1793 = vmatprep.subr.bf16.mxu0 0
      %1794 = vmatpush1.bf16.msra.mxu0 0
      %1795 = vmatprep.subr.bf16.mxu0 0
      %1796 = vmatpush1.bf16.msra.mxu0 0
      %1797 = vmatprep.subr.bf16.mxu0 0
      %1798 = vmatpush1.bf16.msra.mxu0 0
      %1799 = vmatprep.subr.bf16.mxu0 0
      %1800 = vmatpush1.bf16.msra.mxu0 0
      %1801 = vmatprep.mubr.bf16.mxu0 0
      %1802 = vmatmul.mubr.bf16.gmra.mrb[0].mxu0 %v1724
      %v1803 = vpop.f32.mrb[0].mxu0
      %v1804 = vadd.f32 %v1761, %v1803
      %v1805 = vpop.f32.mrb[0].mxu0
      %v1806 = vadd.f32 %v1763, %v1805
      %v1807 = vpop.f32.mrb[0].mxu0
      %v1808 = vadd.f32 %v1765, %v1807
      %v1809 = vpop.f32.mrb[0].mxu0
      %v1810 = vadd.f32 %v1767, %v1809
      %1811 = vdwg.mxu0
      %1812 = vmatprep.subr.bf16.mxu0 %v1583
      %1813 = vmatpush1.bf16.msra.mxu0 %v1582
      %1814 = vmatprep.subr.bf16.mxu0 %v1587
      %1815 = vmatpush1.bf16.msra.mxu0 %v1586
      %1816 = vmatprep.subr.bf16.mxu0 %v1591
      %1817 = vmatpush1.bf16.msra.mxu0 %v1590
      %1818 = vmatprep.subr.bf16.mxu0 %v1595
      %1819 = vmatpush1.bf16.msra.mxu0 %v1594
      %1820 = vmatprep.subr.bf16.mxu0 %v1599
      %1821 = vmatpush1.bf16.msra.mxu0 %v1598
      %1822 = vmatprep.subr.bf16.mxu0 %v1603
      %1823 = vmatpush1.bf16.msra.mxu0 %v1602
      %1824 = vmatprep.subr.bf16.mxu0 %v1607
      %1825 = vmatpush1.bf16.msra.mxu0 %v1606
      %1826 = vmatprep.subr.bf16.mxu0 %v1611
      %1827 = vmatpush1.bf16.msra.mxu0 %v1610
      %1828 = vmatprep.subr.bf16.mxu0 %v1615
      %1829 = vmatpush1.bf16.msra.mxu0 %v1614
      %1830 = vmatprep.subr.bf16.mxu0 %v1619
      %1831 = vmatpush1.bf16.msra.mxu0 %v1618
      %1832 = vmatprep.subr.bf16.mxu0 %v1623
      %1833 = vmatpush1.bf16.msra.mxu0 %v1622
      %1834 = vmatprep.subr.bf16.mxu0 %v1627
      %1835 = vmatpush1.bf16.msra.mxu0 %v1626
      %1836 = vmatprep.subr.bf16.mxu0 %v1631
      %1837 = vmatpush1.bf16.msra.mxu0 %v1630
      %1838 = vmatprep.subr.bf16.mxu0 %v1635
      %1839 = vmatpush1.bf16.msra.mxu0 %v1634
      %1840 = vmatprep.subr.bf16.mxu0 %v1639
      %1841 = vmatpush1.bf16.msra.mxu0 %v1638
      %1842 = vmatprep.subr.bf16.mxu0 %v1643
      %1843 = vmatpush1.bf16.msra.mxu0 %v1642
      %1844 = vmatprep.mubr.bf16.mxu0 %v420
      %1845 = vmatmul.mubr.bf16.gmra.mrb[0].mxu0 %v419
      %v1846 = vpop.f32.mrb[0].mxu0
      %v1847 = vadd.f32 %v1143, %v1846
      %v1848 = vpop.f32.mrb[0].mxu0
      %v1849 = vadd.f32 %v1145, %v1848
      %v1850 = vpop.f32.mrb[0].mxu0
      %v1851 = vadd.f32 %v1147, %v1850
      %v1852 = vpop.f32.mrb[0].mxu0
      %v1853 = vadd.f32 %v1149, %v1852
      %1854 = vdwg.mxu0
      %1855 = vmatprep.subr.bf16.mxu0 %v1647
      %1856 = vmatpush1.bf16.msra.mxu0 %v1646
      %1857 = vmatprep.subr.bf16.mxu0 %v1651
      %1858 = vmatpush1.bf16.msra.mxu0 %v1650
      %1859 = vmatprep.subr.bf16.mxu0 0
      %1860 = vmatpush1.bf16.msra.mxu0 0
      %1861 = vmatprep.subr.bf16.mxu0 0
      %1862 = vmatpush1.bf16.msra.mxu0 0
      %1863 = vmatprep.subr.bf16.mxu0 0
      %1864 = vmatpush1.bf16.msra.mxu0 0
      %1865 = vmatprep.subr.bf16.mxu0 0
      %1866 = vmatpush1.bf16.msra.mxu0 0
      %1867 = vmatprep.subr.bf16.mxu0 0
      %1868 = vmatpush1.bf16.msra.mxu0 0
      %1869 = vmatprep.subr.bf16.mxu0 0
      %1870 = vmatpush1.bf16.msra.mxu0 0
      %1871 = vmatprep.subr.bf16.mxu0 0
      %1872 = vmatpush1.bf16.msra.mxu0 0
      %1873 = vmatprep.subr.bf16.mxu0 0
      %1874 = vmatpush1.bf16.msra.mxu0 0
      %1875 = vmatprep.subr.bf16.mxu0 0
      %1876 = vmatpush1.bf16.msra.mxu0 0
      %1877 = vmatprep.subr.bf16.mxu0 0
      %1878 = vmatpush1.bf16.msra.mxu0 0
      %1879 = vmatprep.subr.bf16.mxu0 0
      %1880 = vmatpush1.bf16.msra.mxu0 0
      %1881 = vmatprep.subr.bf16.mxu0 0
      %1882 = vmatpush1.bf16.msra.mxu0 0
      %1883 = vmatprep.subr.bf16.mxu0 0
      %1884 = vmatpush1.bf16.msra.mxu0 0
      %1885 = vmatprep.subr.bf16.mxu0 0
      %1886 = vmatpush1.bf16.msra.mxu0 0
      %1887 = vmatprep.mubr.bf16.mxu0 0
      %1888 = vmatmul.mubr.bf16.gmra.mrb[0].mxu0 %v1724
      %v1889 = vpop.f32.mrb[0].mxu0
      %v1890 = vadd.f32 %v1847, %v1889
      %v1891 = vpop.f32.mrb[0].mxu0
      %v1892 = vadd.f32 %v1849, %v1891
      %v1893 = vpop.f32.mrb[0].mxu0
      %v1894 = vadd.f32 %v1851, %v1893
      %v1895 = vpop.f32.mrb[0].mxu0
      %v1896 = vadd.f32 %v1853, %v1895
      %1897 = vdwg.mxu0
      %v1898 = vsel %vm975, %v427, 0
      %1900 = vmatprep.subr.bf16.mxu0 %v1581
      %1901 = vmatpush1.bf16.msra.mxu0 %v1580
      %1902 = vmatprep.subr.bf16.mxu0 %v1585
      %1903 = vmatpush1.bf16.msra.mxu0 %v1584
      %1904 = vmatprep.subr.bf16.mxu0 %v1589
      %1905 = vmatpush1.bf16.msra.mxu0 %v1588
      %1906 = vmatprep.subr.bf16.mxu0 %v1593
      %1907 = vmatpush1.bf16.msra.mxu0 %v1592
      %1908 = vmatprep.subr.bf16.mxu0 %v1597
      %1909 = vmatpush1.bf16.msra.mxu0 %v1596
      %1910 = vmatprep.subr.bf16.mxu0 %v1601
      %1911 = vmatpush1.bf16.msra.mxu0 %v1600
      %1912 = vmatprep.subr.bf16.mxu0 %v1605
      %1913 = vmatpush1.bf16.msra.mxu0 %v1604
      %1914 = vmatprep.subr.bf16.mxu0 %v1609
      %1915 = vmatpush1.bf16.msra.mxu0 %v1608
      %1916 = vmatprep.subr.bf16.mxu0 %v1613
      %1917 = vmatpush1.bf16.msra.mxu0 %v1612
      %1918 = vmatprep.subr.bf16.mxu0 %v1617
      %1919 = vmatpush1.bf16.msra.mxu0 %v1616
      %1920 = vmatprep.subr.bf16.mxu0 %v1621
      %1921 = vmatpush1.bf16.msra.mxu0 %v1620
      %1922 = vmatprep.subr.bf16.mxu0 %v1625
      %1923 = vmatpush1.bf16.msra.mxu0 %v1624
      %1924 = vmatprep.subr.bf16.mxu0 %v1629
      %1925 = vmatpush1.bf16.msra.mxu0 %v1628
      %1926 = vmatprep.subr.bf16.mxu0 %v1633
      %1927 = vmatpush1.bf16.msra.mxu0 %v1632
      %1928 = vmatprep.subr.bf16.mxu0 %v1637
      %1929 = vmatpush1.bf16.msra.mxu0 %v1636
      %1930 = vmatprep.subr.bf16.mxu0 %v1641
      %1931 = vmatpush1.bf16.msra.mxu0 %v1640
      %1932 = vmatprep.mubr.bf16.mxu0 %v426
      %1933 = vmatmul.mubr.bf16.gmra.mrb[0].mxu0 %v425
      %v1934 = vpop.f32.mrb[0].mxu0
      %v1935 = vadd.f32 %v1270, %v1934
      %v1936 = vpop.f32.mrb[0].mxu0
      %v1937 = vadd.f32 %v1272, %v1936
      %v1938 = vpop.f32.mrb[0].mxu0
      %v1939 = vadd.f32 %v1274, %v1938
      %v1940 = vpop.f32.mrb[0].mxu0
      %v1941 = vadd.f32 %v1276, %v1940
      %1942 = vdwg.mxu0
      %1943 = vmatprep.subr.bf16.mxu0 %v1645
      %1944 = vmatpush1.bf16.msra.mxu0 %v1644
      %1945 = vmatprep.subr.bf16.mxu0 %v1649
      %1946 = vmatpush1.bf16.msra.mxu0 %v1648
      %1947 = vmatprep.subr.bf16.mxu0 0
      %1948 = vmatpush1.bf16.msra.mxu0 0
      %1949 = vmatprep.subr.bf16.mxu0 0
      %1950 = vmatpush1.bf16.msra.mxu0 0
      %1951 = vmatprep.subr.bf16.mxu0 0
      %1952 = vmatpush1.bf16.msra.mxu0 0
      %1953 = vmatprep.subr.bf16.mxu0 0
      %1954 = vmatpush1.bf16.msra.mxu0 0
      %1955 = vmatprep.subr.bf16.mxu0 0
      %1956 = vmatpush1.bf16.msra.mxu0 0
      %1957 = vmatprep.subr.bf16.mxu0 0
      %1958 = vmatpush1.bf16.msra.mxu0 0
      %1959 = vmatprep.subr.bf16.mxu0 0
      %1960 = vmatpush1.bf16.msra.mxu0 0
      %1961 = vmatprep.subr.bf16.mxu0 0
      %1962 = vmatpush1.bf16.msra.mxu0 0
      %1963 = vmatprep.subr.bf16.mxu0 0
      %1964 = vmatpush1.bf16.msra.mxu0 0
      %1965 = vmatprep.subr.bf16.mxu0 0
      %1966 = vmatpush1.bf16.msra.mxu0 0
      %1967 = vmatprep.subr.bf16.mxu0 0
      %1968 = vmatpush1.bf16.msra.mxu0 0
      %1969 = vmatprep.subr.bf16.mxu0 0
      %1970 = vmatpush1.bf16.msra.mxu0 0
      %1971 = vmatprep.subr.bf16.mxu0 0
      %1972 = vmatpush1.bf16.msra.mxu0 0
      %1973 = vmatprep.subr.bf16.mxu0 0
      %1974 = vmatpush1.bf16.msra.mxu0 0
      %1975 = vmatprep.mubr.bf16.mxu0 0
      %1976 = vmatmul.mubr.bf16.gmra.mrb[0].mxu0 %v1898
      %v1977 = vpop.f32.mrb[0].mxu0
      %v1978 = vadd.f32 %v1935, %v1977
      %v1979 = vpop.f32.mrb[0].mxu0
      %v1980 = vadd.f32 %v1937, %v1979
      %v1981 = vpop.f32.mrb[0].mxu0
      %v1982 = vadd.f32 %v1939, %v1981
      %v1983 = vpop.f32.mrb[0].mxu0
      %v1984 = vadd.f32 %v1941, %v1983
      %1985 = vdwg.mxu0
      %1986 = vmatprep.subr.bf16.mxu0 %v1583
      %1987 = vmatpush1.bf16.msra.mxu0 %v1582
      %1988 = vmatprep.subr.bf16.mxu0 %v1587
      %1989 = vmatpush1.bf16.msra.mxu0 %v1586
      %1990 = vmatprep.subr.bf16.mxu0 %v1591
      %1991 = vmatpush1.bf16.msra.mxu0 %v1590
      %1992 = vmatprep.subr.bf16.mxu0 %v1595
      %1993 = vmatpush1.bf16.msra.mxu0 %v1594
      %1994 = vmatprep.subr.bf16.mxu0 %v1599
      %1995 = vmatpush1.bf16.msra.mxu0 %v1598
      %1996 = vmatprep.subr.bf16.mxu0 %v1603
      %1997 = vmatpush1.bf16.msra.mxu0 %v1602
      %1998 = vmatprep.subr.bf16.mxu0 %v1607
      %1999 = vmatpush1.bf16.msra.mxu0 %v1606
      %2000 = vmatprep.subr.bf16.mxu0 %v1611
      %2001 = vmatpush1.bf16.msra.mxu0 %v1610
      %2002 = vmatprep.subr.bf16.mxu0 %v1615
      %2003 = vmatpush1.bf16.msra.mxu0 %v1614
      %2004 = vmatprep.subr.bf16.mxu0 %v1619
      %2005 = vmatpush1.bf16.msra.mxu0 %v1618
      %2006 = vmatprep.subr.bf16.mxu0 %v1623
      %2007 = vmatpush1.bf16.msra.mxu0 %v1622
      %2008 = vmatprep.subr.bf16.mxu0 %v1627
      %2009 = vmatpush1.bf16.msra.mxu0 %v1626
      %2010 = vmatprep.subr.bf16.mxu0 %v1631
      %2011 = vmatpush1.bf16.msra.mxu0 %v1630
      %2012 = vmatprep.subr.bf16.mxu0 %v1635
      %2013 = vmatpush1.bf16.msra.mxu0 %v1634
      %2014 = vmatprep.subr.bf16.mxu0 %v1639
      %2015 = vmatpush1.bf16.msra.mxu0 %v1638
      %2016 = vmatprep.subr.bf16.mxu0 %v1643
      %2017 = vmatpush1.bf16.msra.mxu0 %v1642
      %2018 = vmatprep.mubr.bf16.mxu0 %v426
      %2019 = vmatmul.mubr.bf16.gmra.mrb[0].mxu0 %v425
      %v2020 = vpop.f32.mrb[0].mxu0
      %v2021 = vadd.f32 %v1356, %v2020
      %v2022 = vpop.f32.mrb[0].mxu0
      %v2023 = vadd.f32 %v1358, %v2022
      %v2024 = vpop.f32.mrb[0].mxu0
      %v2025 = vadd.f32 %v1360, %v2024
      %v2026 = vpop.f32.mrb[0].mxu0
      %v2027 = vadd.f32 %v1362, %v2026
      %2028 = vdwg.mxu0
      %2029 = vmatprep.subr.bf16.mxu0 %v1647
      %2030 = vmatpush1.bf16.msra.mxu0 %v1646
      %2031 = vmatprep.subr.bf16.mxu0 %v1651
      %2032 = vmatpush1.bf16.msra.mxu0 %v1650
      %2033 = vmatprep.subr.bf16.mxu0 0
      %2034 = vmatpush1.bf16.msra.mxu0 0
      %2035 = vmatprep.subr.bf16.mxu0 0
      %2036 = vmatpush1.bf16.msra.mxu0 0
      %2037 = vmatprep.subr.bf16.mxu0 0
      %2038 = vmatpush1.bf16.msra.mxu0 0
      %2039 = vmatprep.subr.bf16.mxu0 0
      %2040 = vmatpush1.bf16.msra.mxu0 0
      %2041 = vmatprep.subr.bf16.mxu0 0
      %2042 = vmatpush1.bf16.msra.mxu0 0
      %2043 = vmatprep.subr.bf16.mxu0 0
      %2044 = vmatpush1.bf16.msra.mxu0 0
      %2045 = vmatprep.subr.bf16.mxu0 0
      %2046 = vmatpush1.bf16.msra.mxu0 0
      %2047 = vmatprep.subr.bf16.mxu0 0
      %2048 = vmatpush1.bf16.msra.mxu0 0
      %2049 = vmatprep.subr.bf16.mxu0 0
      %2050 = vmatpush1.bf16.msra.mxu0 0
      %2051 = vmatprep.subr.bf16.mxu0 0
      %2052 = vmatpush1.bf16.msra.mxu0 0
      %2053 = vmatprep.subr.bf16.mxu0 0
      %2054 = vmatpush1.bf16.msra.mxu0 0
      %2055 = vmatprep.subr.bf16.mxu0 0
      %2056 = vmatpush1.bf16.msra.mxu0 0
      %2057 = vmatprep.subr.bf16.mxu0 0
      %2058 = vmatpush1.bf16.msra.mxu0 0
      %2059 = vmatprep.subr.bf16.mxu0 0
      %2060 = vmatpush1.bf16.msra.mxu0 0
      %2061 = vmatprep.mubr.bf16.mxu0 0
      %2062 = vmatmul.mubr.bf16.gmra.mrb[0].mxu0 %v1898
      %v2063 = vpop.f32.mrb[0].mxu0
      %v2064 = vadd.f32 %v2021, %v2063
      %v2065 = vpop.f32.mrb[0].mxu0
      %v2066 = vadd.f32 %v2023, %v2065
      %v2067 = vpop.f32.mrb[0].mxu0
      %v2068 = vadd.f32 %v2025, %v2067
      %v2069 = vpop.f32.mrb[0].mxu0
      %v2070 = vadd.f32 %v2027, %v2069
      %2071 = vdwg.mxu0
      %s2072 = scalar_lea.vmem %s4, 1152
      %v2073 = vld [vmem:[%s2072] sm:$0xff]
      %v2074 = vld [vmem:[%s2072 + $0x8] sm:$0xff]
      %v2075 = vld [vmem:[%s2072 + $0x10] sm:$0xff]
      %v2076 = vld [vmem:[%s2072 + $0x18] sm:$0xff]
      %v2077 = vld [vmem:[%s2072 + $0x20] sm:$0xff]
      %v2078 = vld [vmem:[%s2072 + $0x28] sm:$0xff]
      %v2079 = vld [vmem:[%s2072 + $0x30] sm:$0xff]
      %v2080 = vld [vmem:[%s2072 + $0x38] sm:$0xff]
      %v2081 = vld [vmem:[%s2072 + $0x40] sm:$0xff]
      %v2082 = vld [vmem:[%s2072 + $0x48] sm:$0xff]
      %v2083 = vld [vmem:[%s2072 + $0x50] sm:$0xff]
      %v2084 = vld [vmem:[%s2072 + $0x58] sm:$0xff]
      %v2085 = vld [vmem:[%s2072 + $0x60] sm:$0xff]
      %v2086 = vld [vmem:[%s2072 + $0x68] sm:$0xff]
      %v2087 = vld [vmem:[%s2072 + $0x70] sm:$0xff]
      %v2088 = vld [vmem:[%s2072 + $0x78] sm:$0xff]
      %v2089 = vld [vmem:[%s2072 + $0x80] sm:$0xff]
      %v2090 = vld [vmem:[%s2072 + $0x88] sm:$0xff]
      %v2091 = vld [vmem:[%s2072 + $0x90] sm:$0xff]
      %v2092 = vld [vmem:[%s2072 + $0x98] sm:$0xff]
      %v2093 = vld [vmem:[%s2072 + $0xa0] sm:$0xff]
      %v2094 = vld [vmem:[%s2072 + $0xa8] sm:$0xff]
      %v2095 = vld [vmem:[%s2072 + $0xb0] sm:$0xff]
      %v2096 = vld [vmem:[%s2072 + $0xb8] sm:$0xff]
      %v2097 = vld [vmem:[%s2072 + $0xc0] sm:$0xff]
      %v2098 = vld [vmem:[%s2072 + $0xc8] sm:$0xff]
      %v2099 = vld [vmem:[%s2072 + $0xd0] sm:$0xff]
      %v2100 = vld [vmem:[%s2072 + $0xd8] sm:$0xff]
      %v2101 = vld [vmem:[%s2072 + $0xe0] sm:$0xff]
      %v2102 = vld [vmem:[%s2072 + $0xe8] sm:$0xff]
      %v2103 = vld [vmem:[%s2072 + $0xf0] sm:$0xff]
      %v2104 = vld [vmem:[%s2072 + $0xf8] sm:$0xff]
      %v2105 = vld [vmem:[%s2072 + $0x100] sm:$0xff]
      %v2106 = vld [vmem:[%s2072 + $0x108] sm:$0xff]
      %v2107 = vld [vmem:[%s2072 + $0x110] sm:$0xff]
      %v2108 = vld [vmem:[%s2072 + $0x118] sm:$0xff]
      %v2109 = vld [vmem:[%s2072 + $0x120] sm:$0xff]
      %v2110 = vld [vmem:[%s2072 + $0x128] sm:$0xff]
      %v2111 = vld [vmem:[%s2072 + $0x130] sm:$0xff]
      %v2112 = vld [vmem:[%s2072 + $0x138] sm:$0xff]
      %v2113 = vld [vmem:[%s2072 + $0x140] sm:$0xff]
      %v2114 = vld [vmem:[%s2072 + $0x148] sm:$0xff]
      %v2115 = vld [vmem:[%s2072 + $0x150] sm:$0xff]
      %v2116 = vld [vmem:[%s2072 + $0x158] sm:$0xff]
      %v2117 = vld [vmem:[%s2072 + $0x160] sm:$0xff]
      %v2118 = vld [vmem:[%s2072 + $0x168] sm:$0xff]
      %v2119 = vld [vmem:[%s2072 + $0x170] sm:$0xff]
      %v2120 = vld [vmem:[%s2072 + $0x178] sm:$0xff]
      %v2121 = vld [vmem:[%s2072 + $0x180] sm:$0xff]
      %v2122 = vld [vmem:[%s2072 + $0x188] sm:$0xff]
      %v2123 = vld [vmem:[%s2072 + $0x190] sm:$0xff]
      %v2124 = vld [vmem:[%s2072 + $0x198] sm:$0xff]
      %v2125 = vld [vmem:[%s2072 + $0x1a0] sm:$0xff]
      %v2126 = vld [vmem:[%s2072 + $0x1a8] sm:$0xff]
      %v2127 = vld [vmem:[%s2072 + $0x1b0] sm:$0xff]
      %v2128 = vld [vmem:[%s2072 + $0x1b8] sm:$0xff]
      %v2129 = vld [vmem:[%s2072 + $0x1c0] sm:$0xff]
      %v2130 = vld [vmem:[%s2072 + $0x1c8] sm:$0xff]
      %v2131 = vld [vmem:[%s2072 + $0x1d0] sm:$0xff]
      %v2132 = vld [vmem:[%s2072 + $0x1d8] sm:$0xff]
      %v2133 = vld [vmem:[%s2072 + $0x1e0] sm:$0xff]
      %v2134 = vld [vmem:[%s2072 + $0x1e8] sm:$0xff]
      %v2135 = vld [vmem:[%s2072 + $0x1f0] sm:$0xff]
      %v2136 = vld [vmem:[%s2072 + $0x1f8] sm:$0xff]
      %v2137 = vld [vmem:[%s2072 + $0x200] sm:$0xff]
      %v2138 = vld [vmem:[%s2072 + $0x208] sm:$0xff]
      %v2139 = vld [vmem:[%s2072 + $0x210] sm:$0xff]
      %v2140 = vld [vmem:[%s2072 + $0x218] sm:$0xff]
      %v2141 = vld [vmem:[%s2072 + $0x220] sm:$0xff]
      %v2142 = vld [vmem:[%s2072 + $0x228] sm:$0xff]
      %v2143 = vld [vmem:[%s2072 + $0x230] sm:$0xff]
      %v2144 = vld [vmem:[%s2072 + $0x238] sm:$0xff]
      %vm2151 = vcmask 1046528
      %v2152 = vrot.slane %v419, 1
      %v2153 = vrot.slane %v422, 1
      %v2154 = vsel %vm2151, %v2152, %v2153
      %v2155 = vrot.slane %v420, 1
      %v2156 = vrot.slane %v423, 1
      %v2157 = vsel %vm2151, %v2155, %v2156
      %v2158 = vrot.slane %v421, 1
      %v2159 = vrot.slane %v424, 1
      %v2160 = vsel %vm2151, %v2158, %v2159
      %v2235 = vunpack.c.l.b16 %v2073
      %v2236 = vunpack.c.h.b16 %v2073
      %v2237 = vunpack.c.l.b16 %v2074
      %v2238 = vunpack.c.h.b16 %v2074
      %v2239 = vunpack.c.l.b16 %v2075
      %v2240 = vunpack.c.h.b16 %v2075
      %v2241 = vunpack.c.l.b16 %v2076
      %v2242 = vunpack.c.h.b16 %v2076
      %v2243 = vunpack.c.l.b16 %v2077
      %v2244 = vunpack.c.h.b16 %v2077
      %v2245 = vunpack.c.l.b16 %v2078
      %v2246 = vunpack.c.h.b16 %v2078
      %v2247 = vunpack.c.l.b16 %v2079
      %v2248 = vunpack.c.h.b16 %v2079
      %v2249 = vunpack.c.l.b16 %v2080
      %v2250 = vunpack.c.h.b16 %v2080
      %v2251 = vunpack.c.l.b16 %v2081
      %v2252 = vunpack.c.h.b16 %v2081
      %v2253 = vunpack.c.l.b16 %v2082
      %v2254 = vunpack.c.h.b16 %v2082
      %v2255 = vunpack.c.l.b16 %v2083
      %v2256 = vunpack.c.h.b16 %v2083
      %v2257 = vunpack.c.l.b16 %v2084
      %v2258 = vunpack.c.h.b16 %v2084
      %v2259 = vunpack.c.l.b16 %v2085
      %v2260 = vunpack.c.h.b16 %v2085
      %v2261 = vunpack.c.l.b16 %v2086
      %v2262 = vunpack.c.h.b16 %v2086
      %v2263 = vunpack.c.l.b16 %v2087
      %v2264 = vunpack.c.h.b16 %v2087
      %v2265 = vunpack.c.l.b16 %v2088
      %v2266 = vunpack.c.h.b16 %v2088
      %v2267 = vunpack.c.l.b16 %v2089
      %v2268 = vunpack.c.h.b16 %v2089
      %v2269 = vunpack.c.l.b16 %v2090
      %v2270 = vunpack.c.h.b16 %v2090
      %v2271 = vunpack.c.l.b16 %v2091
      %v2272 = vunpack.c.h.b16 %v2091
      %v2273 = vunpack.c.l.b16 %v2092
      %v2274 = vunpack.c.h.b16 %v2092
      %v2275 = vunpack.c.l.b16 %v2093
      %v2276 = vunpack.c.h.b16 %v2093
      %v2277 = vunpack.c.l.b16 %v2094
      %v2278 = vunpack.c.h.b16 %v2094
      %v2279 = vunpack.c.l.b16 %v2095
      %v2280 = vunpack.c.h.b16 %v2095
      %v2281 = vunpack.c.l.b16 %v2096
      %v2282 = vunpack.c.h.b16 %v2096
      %v2283 = vunpack.c.l.b16 %v2097
      %v2284 = vunpack.c.h.b16 %v2097
      %v2285 = vunpack.c.l.b16 %v2098
      %v2286 = vunpack.c.h.b16 %v2098
      %v2287 = vunpack.c.l.b16 %v2099
      %v2288 = vunpack.c.h.b16 %v2099
      %v2289 = vunpack.c.l.b16 %v2100
      %v2290 = vunpack.c.h.b16 %v2100
      %v2291 = vunpack.c.l.b16 %v2101
      %v2292 = vunpack.c.h.b16 %v2101
      %v2293 = vunpack.c.l.b16 %v2102
      %v2294 = vunpack.c.h.b16 %v2102
      %v2295 = vunpack.c.l.b16 %v2103
      %v2296 = vunpack.c.h.b16 %v2103
      %v2297 = vunpack.c.l.b16 %v2104
      %v2298 = vunpack.c.h.b16 %v2104
      %v2299 = vunpack.c.l.b16 %v2105
      %v2300 = vunpack.c.h.b16 %v2105
      %v2301 = vunpack.c.l.b16 %v2106
      %v2302 = vunpack.c.h.b16 %v2106
      %v2303 = vunpack.c.l.b16 %v2107
      %v2304 = vunpack.c.h.b16 %v2107
      %v2305 = vunpack.c.l.b16 %v2108
      %v2306 = vunpack.c.h.b16 %v2108
      %v2307 = vunpack.c.l.b16 %v2109
      %v2308 = vunpack.c.h.b16 %v2109
      %v2309 = vunpack.c.l.b16 %v2110
      %v2310 = vunpack.c.h.b16 %v2110
      %v2311 = vunpack.c.l.b16 %v2111
      %v2312 = vunpack.c.h.b16 %v2111
      %v2313 = vunpack.c.l.b16 %v2112
      %v2314 = vunpack.c.h.b16 %v2112
      %v2315 = vunpack.c.l.b16 %v2113
      %v2316 = vunpack.c.h.b16 %v2113
      %v2317 = vunpack.c.l.b16 %v2114
      %v2318 = vunpack.c.h.b16 %v2114
      %v2319 = vunpack.c.l.b16 %v2115
      %v2320 = vunpack.c.h.b16 %v2115
      %v2321 = vunpack.c.l.b16 %v2116
      %v2322 = vunpack.c.h.b16 %v2116
      %v2323 = vunpack.c.l.b16 %v2117
      %v2324 = vunpack.c.h.b16 %v2117
      %v2325 = vunpack.c.l.b16 %v2118
      %v2326 = vunpack.c.h.b16 %v2118
      %v2327 = vunpack.c.l.b16 %v2119
      %v2328 = vunpack.c.h.b16 %v2119
      %v2329 = vunpack.c.l.b16 %v2120
      %v2330 = vunpack.c.h.b16 %v2120
      %v2331 = vunpack.c.l.b16 %v2121
      %v2332 = vunpack.c.h.b16 %v2121
      %v2333 = vunpack.c.l.b16 %v2122
      %v2334 = vunpack.c.h.b16 %v2122
      %v2335 = vunpack.c.l.b16 %v2123
      %v2336 = vunpack.c.h.b16 %v2123
      %v2337 = vunpack.c.l.b16 %v2124
      %v2338 = vunpack.c.h.b16 %v2124
      %v2339 = vunpack.c.l.b16 %v2125
      %v2340 = vunpack.c.h.b16 %v2125
      %v2341 = vunpack.c.l.b16 %v2126
      %v2342 = vunpack.c.h.b16 %v2126
      %v2343 = vunpack.c.l.b16 %v2127
      %v2344 = vunpack.c.h.b16 %v2127
      %v2345 = vunpack.c.l.b16 %v2128
      %v2346 = vunpack.c.h.b16 %v2128
      %v2347 = vunpack.c.l.b16 %v2129
      %v2348 = vunpack.c.h.b16 %v2129
      %v2349 = vunpack.c.l.b16 %v2130
      %v2350 = vunpack.c.h.b16 %v2130
      %v2351 = vunpack.c.l.b16 %v2131
      %v2352 = vunpack.c.h.b16 %v2131
      %v2353 = vunpack.c.l.b16 %v2132
      %v2354 = vunpack.c.h.b16 %v2132
      %v2355 = vunpack.c.l.b16 %v2133
      %v2356 = vunpack.c.h.b16 %v2133
      %v2357 = vunpack.c.l.b16 %v2134
      %v2358 = vunpack.c.h.b16 %v2134
      %v2359 = vunpack.c.l.b16 %v2135
      %v2360 = vunpack.c.h.b16 %v2135
      %v2361 = vunpack.c.l.b16 %v2136
      %v2362 = vunpack.c.h.b16 %v2136
      %v2363 = vunpack.c.l.b16 %v2137
      %v2364 = vunpack.c.h.b16 %v2137
      %v2365 = vunpack.c.l.b16 %v2138
      %v2366 = vunpack.c.h.b16 %v2138
      %v2367 = vunpack.c.l.b16 %v2139
      %v2368 = vunpack.c.h.b16 %v2139
      %v2369 = vunpack.c.l.b16 %v2140
      %v2370 = vunpack.c.h.b16 %v2140
      %v2371 = vunpack.c.l.b16 %v2141
      %v2372 = vunpack.c.h.b16 %v2141
      %v2373 = vunpack.c.l.b16 %v2142
      %v2374 = vunpack.c.h.b16 %v2142
      %v2375 = vunpack.c.l.b16 %v2143
      %v2376 = vunpack.c.h.b16 %v2143
      %v2377 = vunpack.c.l.b16 %v2144
      %v2378 = vunpack.c.h.b16 %v2144
      %v2379 = vpack.c.b16 %v2239, %v2235
      %v2380 = vpack.c.b16 %v2240, %v2236
      %v2381 = vpack.c.b16 %v2241, %v2237
      %v2382 = vpack.c.b16 %v2242, %v2238
      %v2383 = vpack.c.b16 %v2247, %v2243
      %v2384 = vpack.c.b16 %v2248, %v2244
      %v2385 = vpack.c.b16 %v2249, %v2245
      %v2386 = vpack.c.b16 %v2250, %v2246
      %v2387 = vpack.c.b16 %v2255, %v2251
      %v2388 = vpack.c.b16 %v2256, %v2252
      %v2389 = vpack.c.b16 %v2257, %v2253
      %v2390 = vpack.c.b16 %v2258, %v2254
      %v2391 = vpack.c.b16 %v2263, %v2259
      %v2392 = vpack.c.b16 %v2264, %v2260
      %v2393 = vpack.c.b16 %v2265, %v2261
      %v2394 = vpack.c.b16 %v2266, %v2262
      %v2395 = vpack.c.b16 %v2271, %v2267
      %v2396 = vpack.c.b16 %v2272, %v2268
      %v2397 = vpack.c.b16 %v2273, %v2269
      %v2398 = vpack.c.b16 %v2274, %v2270
      %v2399 = vpack.c.b16 %v2279, %v2275
      %v2400 = vpack.c.b16 %v2280, %v2276
      %v2401 = vpack.c.b16 %v2281, %v2277
      %v2402 = vpack.c.b16 %v2282, %v2278
      %v2403 = vpack.c.b16 %v2287, %v2283
      %v2404 = vpack.c.b16 %v2288, %v2284
      %v2405 = vpack.c.b16 %v2289, %v2285
      %v2406 = vpack.c.b16 %v2290, %v2286
      %v2407 = vpack.c.b16 %v2295, %v2291
      %v2408 = vpack.c.b16 %v2296, %v2292
      %v2409 = vpack.c.b16 %v2297, %v2293
      %v2410 = vpack.c.b16 %v2298, %v2294
      %v2411 = vpack.c.b16 %v2303, %v2299
      %v2412 = vpack.c.b16 %v2304, %v2300
      %v2413 = vpack.c.b16 %v2305, %v2301
      %v2414 = vpack.c.b16 %v2306, %v2302
      %v2415 = vpack.c.b16 %v2311, %v2307
      %v2416 = vpack.c.b16 %v2312, %v2308
      %v2417 = vpack.c.b16 %v2313, %v2309
      %v2418 = vpack.c.b16 %v2314, %v2310
      %v2419 = vpack.c.b16 %v2319, %v2315
      %v2420 = vpack.c.b16 %v2320, %v2316
      %v2421 = vpack.c.b16 %v2321, %v2317
      %v2422 = vpack.c.b16 %v2322, %v2318
      %v2423 = vpack.c.b16 %v2327, %v2323
      %v2424 = vpack.c.b16 %v2328, %v2324
      %v2425 = vpack.c.b16 %v2329, %v2325
      %v2426 = vpack.c.b16 %v2330, %v2326
      %v2427 = vpack.c.b16 %v2335, %v2331
      %v2428 = vpack.c.b16 %v2336, %v2332
      %v2429 = vpack.c.b16 %v2337, %v2333
      %v2430 = vpack.c.b16 %v2338, %v2334
      %v2431 = vpack.c.b16 %v2343, %v2339
      %v2432 = vpack.c.b16 %v2344, %v2340
      %v2433 = vpack.c.b16 %v2345, %v2341
      %v2434 = vpack.c.b16 %v2346, %v2342
      %v2435 = vpack.c.b16 %v2351, %v2347
      %v2436 = vpack.c.b16 %v2352, %v2348
      %v2437 = vpack.c.b16 %v2353, %v2349
      %v2438 = vpack.c.b16 %v2354, %v2350
      %v2439 = vpack.c.b16 %v2359, %v2355
      %v2440 = vpack.c.b16 %v2360, %v2356
      %v2441 = vpack.c.b16 %v2361, %v2357
      %v2442 = vpack.c.b16 %v2362, %v2358
      %v2443 = vpack.c.b16 %v2367, %v2363
      %v2444 = vpack.c.b16 %v2368, %v2364
      %v2445 = vpack.c.b16 %v2369, %v2365
      %v2446 = vpack.c.b16 %v2370, %v2366
      %v2447 = vpack.c.b16 %v2375, %v2371
      %v2448 = vpack.c.b16 %v2376, %v2372
      %v2449 = vpack.c.b16 %v2377, %v2373
      %v2450 = vpack.c.b16 %v2378, %v2374
      %v2524 = vsel %vm975, %v2160, 0
      %2526 = vmatprep.subr.bf16.mxu0 %v2380
      %2527 = vmatpush1.bf16.msra.mxu0 %v2379
      %2528 = vmatprep.subr.bf16.mxu0 %v2384
      %2529 = vmatpush1.bf16.msra.mxu0 %v2383
      %2530 = vmatprep.subr.bf16.mxu0 %v2388
      %2531 = vmatpush1.bf16.msra.mxu0 %v2387
      %2532 = vmatprep.subr.bf16.mxu0 %v2392
      %2533 = vmatpush1.bf16.msra.mxu0 %v2391
      %2534 = vmatprep.subr.bf16.mxu0 %v2396
      %2535 = vmatpush1.bf16.msra.mxu0 %v2395
      %2536 = vmatprep.subr.bf16.mxu0 %v2400
      %2537 = vmatpush1.bf16.msra.mxu0 %v2399
      %2538 = vmatprep.subr.bf16.mxu0 %v2404
      %2539 = vmatpush1.bf16.msra.mxu0 %v2403
      %2540 = vmatprep.subr.bf16.mxu0 %v2408
      %2541 = vmatpush1.bf16.msra.mxu0 %v2407
      %2542 = vmatprep.subr.bf16.mxu0 %v2412
      %2543 = vmatpush1.bf16.msra.mxu0 %v2411
      %2544 = vmatprep.subr.bf16.mxu0 %v2416
      %2545 = vmatpush1.bf16.msra.mxu0 %v2415
      %2546 = vmatprep.subr.bf16.mxu0 %v2420
      %2547 = vmatpush1.bf16.msra.mxu0 %v2419
      %2548 = vmatprep.subr.bf16.mxu0 %v2424
      %2549 = vmatpush1.bf16.msra.mxu0 %v2423
      %2550 = vmatprep.subr.bf16.mxu0 %v2428
      %2551 = vmatpush1.bf16.msra.mxu0 %v2427
      %2552 = vmatprep.subr.bf16.mxu0 %v2432
      %2553 = vmatpush1.bf16.msra.mxu0 %v2431
      %2554 = vmatprep.subr.bf16.mxu0 %v2436
      %2555 = vmatpush1.bf16.msra.mxu0 %v2435
      %2556 = vmatprep.subr.bf16.mxu0 %v2440
      %2557 = vmatpush1.bf16.msra.mxu0 %v2439
      %2558 = vmatprep.mubr.bf16.mxu0 %v2157
      %2559 = vmatmul.mubr.bf16.gmra.mrb[0].mxu0 %v2154
      %v2560 = vpop.f32.mrb[0].mxu0
      %v2561 = vadd.f32 0.0, %v2560
      %v2562 = vpop.f32.mrb[0].mxu0
      %v2563 = vadd.f32 0.0, %v2562
      %v2564 = vpop.f32.mrb[0].mxu0
      %v2565 = vadd.f32 0.0, %v2564
      %v2566 = vpop.f32.mrb[0].mxu0
      %v2567 = vadd.f32 0.0, %v2566
      %2568 = vdwg.mxu0
      %2569 = vmatprep.subr.bf16.mxu0 %v2444
      %2570 = vmatpush1.bf16.msra.mxu0 %v2443
      %2571 = vmatprep.subr.bf16.mxu0 %v2448
      %2572 = vmatpush1.bf16.msra.mxu0 %v2447
      %2573 = vmatprep.subr.bf16.mxu0 0
      %2574 = vmatpush1.bf16.msra.mxu0 0
      %2575 = vmatprep.subr.bf16.mxu0 0
      %2576 = vmatpush1.bf16.msra.mxu0 0
      %2577 = vmatprep.subr.bf16.mxu0 0
      %2578 = vmatpush1.bf16.msra.mxu0 0
      %2579 = vmatprep.subr.bf16.mxu0 0
      %2580 = vmatpush1.bf16.msra.mxu0 0
      %2581 = vmatprep.subr.bf16.mxu0 0
      %2582 = vmatpush1.bf16.msra.mxu0 0
      %2583 = vmatprep.subr.bf16.mxu0 0
      %2584 = vmatpush1.bf16.msra.mxu0 0
      %2585 = vmatprep.subr.bf16.mxu0 0
      %2586 = vmatpush1.bf16.msra.mxu0 0
      %2587 = vmatprep.subr.bf16.mxu0 0
      %2588 = vmatpush1.bf16.msra.mxu0 0
      %2589 = vmatprep.subr.bf16.mxu0 0
      %2590 = vmatpush1.bf16.msra.mxu0 0
      %2591 = vmatprep.subr.bf16.mxu0 0
      %2592 = vmatpush1.bf16.msra.mxu0 0
      %2593 = vmatprep.subr.bf16.mxu0 0
      %2594 = vmatpush1.bf16.msra.mxu0 0
      %2595 = vmatprep.subr.bf16.mxu0 0
      %2596 = vmatpush1.bf16.msra.mxu0 0
      %2597 = vmatprep.subr.bf16.mxu0 0
      %2598 = vmatpush1.bf16.msra.mxu0 0
      %2599 = vmatprep.subr.bf16.mxu0 0
      %2600 = vmatpush1.bf16.msra.mxu0 0
      %2601 = vmatprep.mubr.bf16.mxu0 0
      %2602 = vmatmul.mubr.bf16.gmra.mrb[0].mxu0 %v2524
      %v2603 = vpop.f32.mrb[0].mxu0
      %v2604 = vadd.f32 %v2561, %v2603
      %v2605 = vpop.f32.mrb[0].mxu0
      %v2606 = vadd.f32 %v2563, %v2605
      %v2607 = vpop.f32.mrb[0].mxu0
      %v2608 = vadd.f32 %v2565, %v2607
      %v2609 = vpop.f32.mrb[0].mxu0
      %v2610 = vadd.f32 %v2567, %v2609
      %2611 = vdwg.mxu0
      %2612 = vmatprep.subr.bf16.mxu0 %v2382
      %2613 = vmatpush1.bf16.msra.mxu0 %v2381
      %2614 = vmatprep.subr.bf16.mxu0 %v2386
      %2615 = vmatpush1.bf16.msra.mxu0 %v2385
      %2616 = vmatprep.subr.bf16.mxu0 %v2390
      %2617 = vmatpush1.bf16.msra.mxu0 %v2389
      %2618 = vmatprep.subr.bf16.mxu0 %v2394
      %2619 = vmatpush1.bf16.msra.mxu0 %v2393
      %2620 = vmatprep.subr.bf16.mxu0 %v2398
      %2621 = vmatpush1.bf16.msra.mxu0 %v2397
      %2622 = vmatprep.subr.bf16.mxu0 %v2402
      %2623 = vmatpush1.bf16.msra.mxu0 %v2401
      %2624 = vmatprep.subr.bf16.mxu0 %v2406
      %2625 = vmatpush1.bf16.msra.mxu0 %v2405
      %2626 = vmatprep.subr.bf16.mxu0 %v2410
      %2627 = vmatpush1.bf16.msra.mxu0 %v2409
      %2628 = vmatprep.subr.bf16.mxu0 %v2414
      %2629 = vmatpush1.bf16.msra.mxu0 %v2413
      %2630 = vmatprep.subr.bf16.mxu0 %v2418
      %2631 = vmatpush1.bf16.msra.mxu0 %v2417
      %2632 = vmatprep.subr.bf16.mxu0 %v2422
      %2633 = vmatpush1.bf16.msra.mxu0 %v2421
      %2634 = vmatprep.subr.bf16.mxu0 %v2426
      %2635 = vmatpush1.bf16.msra.mxu0 %v2425
      %2636 = vmatprep.subr.bf16.mxu0 %v2430
      %2637 = vmatpush1.bf16.msra.mxu0 %v2429
      %2638 = vmatprep.subr.bf16.mxu0 %v2434
      %2639 = vmatpush1.bf16.msra.mxu0 %v2433
      %2640 = vmatprep.subr.bf16.mxu0 %v2438
      %2641 = vmatpush1.bf16.msra.mxu0 %v2437
      %2642 = vmatprep.subr.bf16.mxu0 %v2442
      %2643 = vmatpush1.bf16.msra.mxu0 %v2441
      %2644 = vmatprep.mubr.bf16.mxu0 %v2157
      %2645 = vmatmul.mubr.bf16.gmra.mrb[0].mxu0 %v2154
      %v2646 = vpop.f32.mrb[0].mxu0
      %v2647 = vadd.f32 0.0, %v2646
      %v2648 = vpop.f32.mrb[0].mxu0
      %v2649 = vadd.f32 0.0, %v2648
      %v2650 = vpop.f32.mrb[0].mxu0
      %v2651 = vadd.f32 0.0, %v2650
      %v2652 = vpop.f32.mrb[0].mxu0
      %v2653 = vadd.f32 0.0, %v2652
      %2654 = vdwg.mxu0
      %2655 = vmatprep.subr.bf16.mxu0 %v2446
      %2656 = vmatpush1.bf16.msra.mxu0 %v2445
      %2657 = vmatprep.subr.bf16.mxu0 %v2450
      %2658 = vmatpush1.bf16.msra.mxu0 %v2449
      %2659 = vmatprep.subr.bf16.mxu0 0
      %2660 = vmatpush1.bf16.msra.mxu0 0
      %2661 = vmatprep.subr.bf16.mxu0 0
      %2662 = vmatpush1.bf16.msra.mxu0 0
      %2663 = vmatprep.subr.bf16.mxu0 0
      %2664 = vmatpush1.bf16.msra.mxu0 0
      %2665 = vmatprep.subr.bf16.mxu0 0
      %2666 = vmatpush1.bf16.msra.mxu0 0
      %2667 = vmatprep.subr.bf16.mxu0 0
      %2668 = vmatpush1.bf16.msra.mxu0 0
      %2669 = vmatprep.subr.bf16.mxu0 0
      %2670 = vmatpush1.bf16.msra.mxu0 0
      %2671 = vmatprep.subr.bf16.mxu0 0
      %2672 = vmatpush1.bf16.msra.mxu0 0
      %2673 = vmatprep.subr.bf16.mxu0 0
      %2674 = vmatpush1.bf16.msra.mxu0 0
      %2675 = vmatprep.subr.bf16.mxu0 0
      %2676 = vmatpush1.bf16.msra.mxu0 0
      %2677 = vmatprep.subr.bf16.mxu0 0
      %2678 = vmatpush1.bf16.msra.mxu0 0
      %2679 = vmatprep.subr.bf16.mxu0 0
      %2680 = vmatpush1.bf16.msra.mxu0 0
      %2681 = vmatprep.subr.bf16.mxu0 0
      %2682 = vmatpush1.bf16.msra.mxu0 0
      %2683 = vmatprep.subr.bf16.mxu0 0
      %2684 = vmatpush1.bf16.msra.mxu0 0
      %2685 = vmatprep.subr.bf16.mxu0 0
      %2686 = vmatpush1.bf16.msra.mxu0 0
      %2687 = vmatprep.mubr.bf16.mxu0 0
      %2688 = vmatmul.mubr.bf16.gmra.mrb[0].mxu0 %v2524
      %v2689 = vpop.f32.mrb[0].mxu0
      %v2690 = vadd.f32 %v2647, %v2689
      %v2691 = vpop.f32.mrb[0].mxu0
      %v2692 = vadd.f32 %v2649, %v2691
      %v2693 = vpop.f32.mrb[0].mxu0
      %v2694 = vadd.f32 %v2651, %v2693
      %v2695 = vpop.f32.mrb[0].mxu0
      %v2696 = vadd.f32 %v2653, %v2695
      %2697 = vdwg.mxu0
      %v2704 = vrot.slane %v425, 1
      %v2705 = vrot.slane %v428, 1
      %v2706 = vsel %vm2151, %v2704, %v2705
      %v2707 = vrot.slane %v426, 1
      %v2708 = vrot.slane %v429, 1
      %v2709 = vsel %vm2151, %v2707, %v2708
      %v2710 = vrot.slane %v427, 1
      %v2711 = vrot.slane %v430, 1
      %v2712 = vsel %vm2151, %v2710, %v2711
      %v2716 = vsel %vm975, %v2712, 0
      %2718 = vmatprep.subr.bf16.mxu0 %v2380
      %2719 = vmatpush1.bf16.msra.mxu0 %v2379
      %2720 = vmatprep.subr.bf16.mxu0 %v2384
      %2721 = vmatpush1.bf16.msra.mxu0 %v2383
      %2722 = vmatprep.subr.bf16.mxu0 %v2388
      %2723 = vmatpush1.bf16.msra.mxu0 %v2387
      %2724 = vmatprep.subr.bf16.mxu0 %v2392
      %2725 = vmatpush1.bf16.msra.mxu0 %v2391
      %2726 = vmatprep.subr.bf16.mxu0 %v2396
      %2727 = vmatpush1.bf16.msra.mxu0 %v2395
      %2728 = vmatprep.subr.bf16.mxu0 %v2400
      %2729 = vmatpush1.bf16.msra.mxu0 %v2399
      %2730 = vmatprep.subr.bf16.mxu0 %v2404
      %2731 = vmatpush1.bf16.msra.mxu0 %v2403
      %2732 = vmatprep.subr.bf16.mxu0 %v2408
      %2733 = vmatpush1.bf16.msra.mxu0 %v2407
      %2734 = vmatprep.subr.bf16.mxu0 %v2412
      %2735 = vmatpush1.bf16.msra.mxu0 %v2411
      %2736 = vmatprep.subr.bf16.mxu0 %v2416
      %2737 = vmatpush1.bf16.msra.mxu0 %v2415
      %2738 = vmatprep.subr.bf16.mxu0 %v2420
      %2739 = vmatpush1.bf16.msra.mxu0 %v2419
      %2740 = vmatprep.subr.bf16.mxu0 %v2424
      %2741 = vmatpush1.bf16.msra.mxu0 %v2423
      %2742 = vmatprep.subr.bf16.mxu0 %v2428
      %2743 = vmatpush1.bf16.msra.mxu0 %v2427
      %2744 = vmatprep.subr.bf16.mxu0 %v2432
      %2745 = vmatpush1.bf16.msra.mxu0 %v2431
      %2746 = vmatprep.subr.bf16.mxu0 %v2436
      %2747 = vmatpush1.bf16.msra.mxu0 %v2435
      %2748 = vmatprep.subr.bf16.mxu0 %v2440
      %2749 = vmatpush1.bf16.msra.mxu0 %v2439
      %2750 = vmatprep.mubr.bf16.mxu0 %v2709
      %2751 = vmatmul.mubr.bf16.gmra.mrb[0].mxu0 %v2706
      %v2752 = vpop.f32.mrb[0].mxu0
      %v2753 = vadd.f32 0.0, %v2752
      %v2754 = vpop.f32.mrb[0].mxu0
      %v2755 = vadd.f32 0.0, %v2754
      %v2756 = vpop.f32.mrb[0].mxu0
      %v2757 = vadd.f32 0.0, %v2756
      %v2758 = vpop.f32.mrb[0].mxu0
      %v2759 = vadd.f32 0.0, %v2758
      %2760 = vdwg.mxu0
      %2761 = vmatprep.subr.bf16.mxu0 %v2444
      %2762 = vmatpush1.bf16.msra.mxu0 %v2443
      %2763 = vmatprep.subr.bf16.mxu0 %v2448
      %2764 = vmatpush1.bf16.msra.mxu0 %v2447
      %2765 = vmatprep.subr.bf16.mxu0 0
      %2766 = vmatpush1.bf16.msra.mxu0 0
      %2767 = vmatprep.subr.bf16.mxu0 0
      %2768 = vmatpush1.bf16.msra.mxu0 0
      %2769 = vmatprep.subr.bf16.mxu0 0
      %2770 = vmatpush1.bf16.msra.mxu0 0
      %2771 = vmatprep.subr.bf16.mxu0 0
      %2772 = vmatpush1.bf16.msra.mxu0 0
      %2773 = vmatprep.subr.bf16.mxu0 0
      %2774 = vmatpush1.bf16.msra.mxu0 0
      %2775 = vmatprep.subr.bf16.mxu0 0
      %2776 = vmatpush1.bf16.msra.mxu0 0
      %2777 = vmatprep.subr.bf16.mxu0 0
      %2778 = vmatpush1.bf16.msra.mxu0 0
      %2779 = vmatprep.subr.bf16.mxu0 0
      %2780 = vmatpush1.bf16.msra.mxu0 0
      %2781 = vmatprep.subr.bf16.mxu0 0
      %2782 = vmatpush1.bf16.msra.mxu0 0
      %2783 = vmatprep.subr.bf16.mxu0 0
      %2784 = vmatpush1.bf16.msra.mxu0 0
      %2785 = vmatprep.subr.bf16.mxu0 0
      %2786 = vmatpush1.bf16.msra.mxu0 0
      %2787 = vmatprep.subr.bf16.mxu0 0
      %2788 = vmatpush1.bf16.msra.mxu0 0
      %2789 = vmatprep.subr.bf16.mxu0 0
      %2790 = vmatpush1.bf16.msra.mxu0 0
      %2791 = vmatprep.subr.bf16.mxu0 0
      %2792 = vmatpush1.bf16.msra.mxu0 0
      %2793 = vmatprep.mubr.bf16.mxu0 0
      %2794 = vmatmul.mubr.bf16.gmra.mrb[0].mxu0 %v2716
      %v2795 = vpop.f32.mrb[0].mxu0
      %v2796 = vadd.f32 %v2753, %v2795
      %v2797 = vpop.f32.mrb[0].mxu0
      %v2798 = vadd.f32 %v2755, %v2797
      %v2799 = vpop.f32.mrb[0].mxu0
      %v2800 = vadd.f32 %v2757, %v2799
      %v2801 = vpop.f32.mrb[0].mxu0
      %v2802 = vadd.f32 %v2759, %v2801
      %2803 = vdwg.mxu0
      %2804 = vmatprep.subr.bf16.mxu0 %v2382
      %2805 = vmatpush1.bf16.msra.mxu0 %v2381
      %2806 = vmatprep.subr.bf16.mxu0 %v2386
      %2807 = vmatpush1.bf16.msra.mxu0 %v2385
      %2808 = vmatprep.subr.bf16.mxu0 %v2390
      %2809 = vmatpush1.bf16.msra.mxu0 %v2389
      %2810 = vmatprep.subr.bf16.mxu0 %v2394
      %2811 = vmatpush1.bf16.msra.mxu0 %v2393
      %2812 = vmatprep.subr.bf16.mxu0 %v2398
      %2813 = vmatpush1.bf16.msra.mxu0 %v2397
      %2814 = vmatprep.subr.bf16.mxu0 %v2402
      %2815 = vmatpush1.bf16.msra.mxu0 %v2401
      %2816 = vmatprep.subr.bf16.mxu0 %v2406
      %2817 = vmatpush1.bf16.msra.mxu0 %v2405
      %2818 = vmatprep.subr.bf16.mxu0 %v2410
      %2819 = vmatpush1.bf16.msra.mxu0 %v2409
      %2820 = vmatprep.subr.bf16.mxu0 %v2414
      %2821 = vmatpush1.bf16.msra.mxu0 %v2413
      %2822 = vmatprep.subr.bf16.mxu0 %v2418
      %2823 = vmatpush1.bf16.msra.mxu0 %v2417
      %2824 = vmatprep.subr.bf16.mxu0 %v2422
      %2825 = vmatpush1.bf16.msra.mxu0 %v2421
      %2826 = vmatprep.subr.bf16.mxu0 %v2426
      %2827 = vmatpush1.bf16.msra.mxu0 %v2425
      %2828 = vmatprep.subr.bf16.mxu0 %v2430
      %2829 = vmatpush1.bf16.msra.mxu0 %v2429
      %2830 = vmatprep.subr.bf16.mxu0 %v2434
      %2831 = vmatpush1.bf16.msra.mxu0 %v2433
      %2832 = vmatprep.subr.bf16.mxu0 %v2438
      %2833 = vmatpush1.bf16.msra.mxu0 %v2437
      %2834 = vmatprep.subr.bf16.mxu0 %v2442
      %2835 = vmatpush1.bf16.msra.mxu0 %v2441
      %2836 = vmatprep.mubr.bf16.mxu0 %v2709
      %2837 = vmatmul.mubr.bf16.gmra.mrb[0].mxu0 %v2706
      %v2838 = vpop.f32.mrb[0].mxu0
      %v2839 = vadd.f32 0.0, %v2838
      %v2840 = vpop.f32.mrb[0].mxu0
      %v2841 = vadd.f32 0.0, %v2840
      %v2842 = vpop.f32.mrb[0].mxu0
      %v2843 = vadd.f32 0.0, %v2842
      %v2844 = vpop.f32.mrb[0].mxu0
      %v2845 = vadd.f32 0.0, %v2844
      %2846 = vdwg.mxu0
      %2847 = vmatprep.subr.bf16.mxu0 %v2446
      %2848 = vmatpush1.bf16.msra.mxu0 %v2445
      %2849 = vmatprep.subr.bf16.mxu0 %v2450
      %2850 = vmatpush1.bf16.msra.mxu0 %v2449
      %2851 = vmatprep.subr.bf16.mxu0 0
      %2852 = vmatpush1.bf16.msra.mxu0 0
      %2853 = vmatprep.subr.bf16.mxu0 0
      %2854 = vmatpush1.bf16.msra.mxu0 0
      %2855 = vmatprep.subr.bf16.mxu0 0
      %2856 = vmatpush1.bf16.msra.mxu0 0
      %2857 = vmatprep.subr.bf16.mxu0 0
      %2858 = vmatpush1.bf16.msra.mxu0 0
      %2859 = vmatprep.subr.bf16.mxu0 0
      %2860 = vmatpush1.bf16.msra.mxu0 0
      %2861 = vmatprep.subr.bf16.mxu0 0
      %2862 = vmatpush1.bf16.msra.mxu0 0
      %2863 = vmatprep.subr.bf16.mxu0 0
      %2864 = vmatpush1.bf16.msra.mxu0 0
      %2865 = vmatprep.subr.bf16.mxu0 0
      %2866 = vmatpush1.bf16.msra.mxu0 0
      %2867 = vmatprep.subr.bf16.mxu0 0
      %2868 = vmatpush1.bf16.msra.mxu0 0
      %2869 = vmatprep.subr.bf16.mxu0 0
      %2870 = vmatpush1.bf16.msra.mxu0 0
      %2871 = vmatprep.subr.bf16.mxu0 0
      %2872 = vmatpush1.bf16.msra.mxu0 0
      %2873 = vmatprep.subr.bf16.mxu0 0
      %2874 = vmatpush1.bf16.msra.mxu0 0
      %2875 = vmatprep.subr.bf16.mxu0 0
      %2876 = vmatpush1.bf16.msra.mxu0 0
      %2877 = vmatprep.subr.bf16.mxu0 0
      %2878 = vmatpush1.bf16.msra.mxu0 0
      %2879 = vmatprep.mubr.bf16.mxu0 0
      %2880 = vmatmul.mubr.bf16.gmra.mrb[0].mxu0 %v2716
      %v2881 = vpop.f32.mrb[0].mxu0
      %v2882 = vadd.f32 %v2839, %v2881
      %v2883 = vpop.f32.mrb[0].mxu0
      %v2884 = vadd.f32 %v2841, %v2883
      %v2885 = vpop.f32.mrb[0].mxu0
      %v2886 = vadd.f32 %v2843, %v2885
      %v2887 = vpop.f32.mrb[0].mxu0
      %v2888 = vadd.f32 %v2845, %v2887
      %2889 = vdwg.mxu0
      %v2890 = vadd.f32 %v1804, %v2604
      %v2891 = vadd.f32 %v1806, %v2606
      %v2892 = vadd.f32 %v1890, %v2690
      %v2893 = vadd.f32 %v1892, %v2692
      %v2894 = vadd.f32 %v1808, %v2608
      %v2895 = vadd.f32 %v1810, %v2610
      %v2896 = vadd.f32 %v1894, %v2694
      %v2897 = vadd.f32 %v1896, %v2696
      %v2898 = vadd.f32 %v1978, %v2796
      %v2899 = vadd.f32 %v1980, %v2798
      %v2900 = vadd.f32 %v2064, %v2882
      %v2901 = vadd.f32 %v2066, %v2884
      %v2902 = vadd.f32 %v1982, %v2800
      %v2903 = vadd.f32 %v1984, %v2802
      %v2904 = vadd.f32 %v2068, %v2886
      %v2905 = vadd.f32 %v2070, %v2888
      %v2906 = vld [vmem:[%s7] ss:$8 sm:$0x3]
      %v2908 = vlaneseq
      %v2909 = vshrl.u32 %v2908, 7
      %v2910 = vsub.s32 0, %v2909
      %v2911 = vrot.slane %v2906, %v2910
      %v2912 = vlaneseq
      %v2913 = vshrl.u32 %v2912, 7
      %v2914 = vsub.s32 1, %v2913
      %v2915 = vrot.slane %v2906, %v2914
      %v2918 = vadd.f32 %v2890, %v2911
      %v2919 = vadd.f32 %v2891, %v2915
      %v2920 = vadd.f32 %v2894, %v2911
      %v2921 = vadd.f32 %v2895, %v2915
      %v2922 = vmax.f32 %v2918, 0.0
      %v2923 = vmax.f32 %v2919, 0.0
      %v2924 = vmax.f32 %v2920, 0.0
      %v2925 = vmax.f32 %v2921, 0.0
      %v2926 = vadd.f32 %v2898, %v2911
      %v2927 = vadd.f32 %v2899, %v2915
      %v2928 = vadd.f32 %v2902, %v2911
      %v2929 = vadd.f32 %v2903, %v2915
      %v2930 = vmax.f32 %v2926, 0.0
      %v2931 = vmax.f32 %v2927, 0.0
      %v2932 = vmax.f32 %v2928, 0.0
      %v2933 = vmax.f32 %v2929, 0.0
      %v2934 = vadd.f32 %v2892, %v2900
      %v2935 = vadd.f32 %v2893, %v2901
      %v2936 = vadd.f32 %v2896, %v2904
      %v2937 = vadd.f32 %v2897, %v2905
      %v2938 = vmul.f32 %v2934, 0.5
      %v2939 = vmul.f32 %v2935, 0.5
      %v2940 = vmul.f32 %v2936, 0.5
      %v2941 = vmul.f32 %v2937, 0.5
      %s2942 = scalar_lea.vmem %s7, 1
      %v2943 = vld [vmem:[%s2942] ss:$8 sm:$0x3]
      %v2945 = vlaneseq
      %v2946 = vshrl.u32 %v2945, 7
      %v2947 = vsub.s32 0, %v2946
      %v2948 = vrot.slane %v2943, %v2947
      %v2949 = vlaneseq
      %v2950 = vshrl.u32 %v2949, 7
      %v2951 = vsub.s32 1, %v2950
      %v2952 = vrot.slane %v2943, %v2951
      %v2955 = vadd.f32 %v2938, %v2948
      %v2956 = vadd.f32 %v2939, %v2952
      %v2957 = vadd.f32 %v2940, %v2948
      %v2958 = vadd.f32 %v2941, %v2952
      %v2959 = vmax.f32 %v2955, 0.0
      %v2960 = vmax.f32 %v2956, 0.0
      %v2961 = vmax.f32 %v2957, 0.0
      %v2962 = vmax.f32 %v2958, 0.0
      %v2963 = vpack.c.bf16 %v2961, %v2959
      %v2964 = vpack.c.bf16 %v2962, %v2960
      %s2965 = scalar_lea.vmem %s5, 384
      %v2966 = vld [vmem:[%s2965] sm:$0xff]
      %v2967 = vld [vmem:[%s2965 + $0x8] sm:$0xf]
      %v2968 = vld [vmem:[%s2965 + $0xc] sm:$0xff]
      %v2969 = vld [vmem:[%s2965 + $0x14] sm:$0xf]
      %v2970 = vld [vmem:[%s2965 + $0x18] sm:$0xff]
      %v2971 = vld [vmem:[%s2965 + $0x20] sm:$0xf]
      %v2972 = vld [vmem:[%s2965 + $0x24] sm:$0xff]
      %v2973 = vld [vmem:[%s2965 + $0x2c] sm:$0xf]
      %v2974 = vld [vmem:[%s2965 + $0x30] sm:$0xff]
      %v2975 = vld [vmem:[%s2965 + $0x38] sm:$0xf]
      %v2976 = vld [vmem:[%s2965 + $0x3c] sm:$0xff]
      %v2977 = vld [vmem:[%s2965 + $0x44] sm:$0xf]
      %v2978 = vld [vmem:[%s2965 + $0x48] sm:$0xff]
      %v2979 = vld [vmem:[%s2965 + $0x50] sm:$0xf]
      %v2980 = vld [vmem:[%s2965 + $0x54] sm:$0xff]
      %v2981 = vld [vmem:[%s2965 + $0x5c] sm:$0xf]
      %v2982 = vld [vmem:[%s2965 + $0x60] sm:$0xff]
      %v2983 = vld [vmem:[%s2965 + $0x68] sm:$0xf]
      %v2984 = vld [vmem:[%s2965 + $0x6c] sm:$0xff]
      %v2985 = vld [vmem:[%s2965 + $0x74] sm:$0xf]
      %v2986 = vld [vmem:[%s2965 + $0x78] sm:$0xff]
      %v2987 = vld [vmem:[%s2965 + $0x80] sm:$0xf]
      %v2988 = vld [vmem:[%s2965 + $0x84] sm:$0xff]
      %v2989 = vld [vmem:[%s2965 + $0x8c] sm:$0xf]
      %v2990 = vld [vmem:[%s2965 + $0x90] sm:$0xff]
      %v2991 = vld [vmem:[%s2965 + $0x98] sm:$0xf]
      %v2992 = vld [vmem:[%s2965 + $0x9c] sm:$0xff]
      %v2993 = vld [vmem:[%s2965 + $0xa4] sm:$0xf]
      %v2994 = vld [vmem:[%s2965 + $0xa8] sm:$0xff]
      %v2995 = vld [vmem:[%s2965 + $0xb0] sm:$0xf]
      %v2996 = vld [vmem:[%s2965 + $0xb4] sm:$0xff]
      %v2997 = vld [vmem:[%s2965 + $0xbc] sm:$0xf]
      %v2998 = vld [vmem:[%s2965 + $0xc0] sm:$0xff]
      %v2999 = vld [vmem:[%s2965 + $0xc8] sm:$0xf]
      %v3000 = vld [vmem:[%s2965 + $0xcc] sm:$0xff]
      %v3001 = vld [vmem:[%s2965 + $0xd4] sm:$0xf]
      %v3002 = vld [vmem:[%s2965 + $0xd8] sm:$0xff]
      %v3003 = vld [vmem:[%s2965 + $0xe0] sm:$0xf]
      %v3004 = vld [vmem:[%s2965 + $0xe4] sm:$0xff]
      %v3005 = vld [vmem:[%s2965 + $0xec] sm:$0xf]
      %v3006 = vld [vmem:[%s2965 + $0xf0] sm:$0xff]
      %v3007 = vld [vmem:[%s2965 + $0xf8] sm:$0xf]
      %v3008 = vld [vmem:[%s2965 + $0xfc] sm:$0xff]
      %v3009 = vld [vmem:[%s2965 + $0x104] sm:$0xf]
      %v3010 = vld [vmem:[%s2965 + $0x108] sm:$0xff]
      %v3011 = vld [vmem:[%s2965 + $0x110] sm:$0xf]
      %v3012 = vld [vmem:[%s2965 + $0x114] sm:$0xff]
      %v3013 = vld [vmem:[%s2965 + $0x11c] sm:$0xf]
      %v3014 = vld [vmem:[%s2965 + $0x120] sm:$0xff]
      %v3015 = vld [vmem:[%s2965 + $0x128] sm:$0xf]
      %v3016 = vld [vmem:[%s2965 + $0x12c] sm:$0xff]
      %v3017 = vld [vmem:[%s2965 + $0x134] sm:$0xf]
      %v3018 = vld [vmem:[%s2965 + $0x138] sm:$0xff]
      %v3019 = vld [vmem:[%s2965 + $0x140] sm:$0xf]
      %v3020 = vld [vmem:[%s2965 + $0x144] sm:$0xff]
      %v3021 = vld [vmem:[%s2965 + $0x14c] sm:$0xf]
      %v3022 = vld [vmem:[%s2965 + $0x150] sm:$0xff]
      %v3023 = vld [vmem:[%s2965 + $0x158] sm:$0xf]
      %v3024 = vld [vmem:[%s2965 + $0x15c] sm:$0xff]
      %v3025 = vld [vmem:[%s2965 + $0x164] sm:$0xf]
      %v3026 = vld [vmem:[%s2965 + $0x168] sm:$0xff]
      %v3027 = vld [vmem:[%s2965 + $0x170] sm:$0xf]
      %v3028 = vld [vmem:[%s2965 + $0x174] sm:$0xff]
      %v3029 = vld [vmem:[%s2965 + $0x17c] sm:$0xf]
      %s3030 = scalar_lea.vmem %s7, 3
      %v3031 = vld [vmem:[%s3030] ss:$8 sm:$0x7]
      %v3033 = vlaneseq
      %v3034 = vshrl.u32 %v3033, 7
      %v3035 = vsub.s32 0, %v3034
      %v3036 = vrot.slane %v3031, %v3035
      %v3037 = vlaneseq
      %v3038 = vshrl.u32 %v3037, 7
      %v3039 = vsub.s32 1, %v3038
      %v3040 = vrot.slane %v3031, %v3039
      %v3041 = vlaneseq
      %v3042 = vshrl.u32 %v3041, 7
      %v3043 = vsub.s32 2, %v3042
      %v3044 = vrot.slane %v3031, %v3043
      %v3112 = vunpack.c.l.b16 %v2966
      %v3113 = vunpack.c.h.b16 %v2966
      %v3114 = vunpack.c.l.b16 %v2967
      %v3115 = vunpack.c.l.b16 %v2968
      %v3116 = vunpack.c.h.b16 %v2968
      %v3117 = vunpack.c.l.b16 %v2969
      %v3118 = vunpack.c.l.b16 %v2970
      %v3119 = vunpack.c.h.b16 %v2970
      %v3120 = vunpack.c.l.b16 %v2971
      %v3121 = vunpack.c.l.b16 %v2972
      %v3122 = vunpack.c.h.b16 %v2972
      %v3123 = vunpack.c.l.b16 %v2973
      %v3124 = vunpack.c.l.b16 %v2974
      %v3125 = vunpack.c.h.b16 %v2974
      %v3126 = vunpack.c.l.b16 %v2975
      %v3127 = vunpack.c.l.b16 %v2976
      %v3128 = vunpack.c.h.b16 %v2976
      %v3129 = vunpack.c.l.b16 %v2977
      %v3130 = vunpack.c.l.b16 %v2978
      %v3131 = vunpack.c.h.b16 %v2978
      %v3132 = vunpack.c.l.b16 %v2979
      %v3133 = vunpack.c.l.b16 %v2980
      %v3134 = vunpack.c.h.b16 %v2980
      %v3135 = vunpack.c.l.b16 %v2981
      %v3136 = vunpack.c.l.b16 %v2982
      %v3137 = vunpack.c.h.b16 %v2982
      %v3138 = vunpack.c.l.b16 %v2983
      %v3139 = vunpack.c.l.b16 %v2984
      %v3140 = vunpack.c.h.b16 %v2984
      %v3141 = vunpack.c.l.b16 %v2985
      %v3142 = vunpack.c.l.b16 %v2986
      %v3143 = vunpack.c.h.b16 %v2986
      %v3144 = vunpack.c.l.b16 %v2987
      %v3145 = vunpack.c.l.b16 %v2988
      %v3146 = vunpack.c.h.b16 %v2988
      %v3147 = vunpack.c.l.b16 %v2989
      %v3148 = vunpack.c.l.b16 %v2990
      %v3149 = vunpack.c.h.b16 %v2990
      %v3150 = vunpack.c.l.b16 %v2991
      %v3151 = vunpack.c.l.b16 %v2992
      %v3152 = vunpack.c.h.b16 %v2992
      %v3153 = vunpack.c.l.b16 %v2993
      %v3154 = vunpack.c.l.b16 %v2994
      %v3155 = vunpack.c.h.b16 %v2994
      %v3156 = vunpack.c.l.b16 %v2995
      %v3157 = vunpack.c.l.b16 %v2996
      %v3158 = vunpack.c.h.b16 %v2996
      %v3159 = vunpack.c.l.b16 %v2997
      %v3160 = vunpack.c.l.b16 %v2998
      %v3161 = vunpack.c.h.b16 %v2998
      %v3162 = vunpack.c.l.b16 %v2999
      %v3163 = vunpack.c.l.b16 %v3000
      %v3164 = vunpack.c.h.b16 %v3000
      %v3165 = vunpack.c.l.b16 %v3001
      %v3166 = vunpack.c.l.b16 %v3002
      %v3167 = vunpack.c.h.b16 %v3002
      %v3168 = vunpack.c.l.b16 %v3003
      %v3169 = vunpack.c.l.b16 %v3004
      %v3170 = vunpack.c.h.b16 %v3004
      %v3171 = vunpack.c.l.b16 %v3005
      %v3172 = vunpack.c.l.b16 %v3006
      %v3173 = vunpack.c.h.b16 %v3006
      %v3174 = vunpack.c.l.b16 %v3007
      %v3175 = vunpack.c.l.b16 %v3008
      %v3176 = vunpack.c.h.b16 %v3008
      %v3177 = vunpack.c.l.b16 %v3009
      %v3178 = vunpack.c.l.b16 %v3010
      %v3179 = vunpack.c.h.b16 %v3010
      %v3180 = vunpack.c.l.b16 %v3011
      %v3181 = vunpack.c.l.b16 %v3012
      %v3182 = vunpack.c.h.b16 %v3012
      %v3183 = vunpack.c.l.b16 %v3013
      %v3184 = vunpack.c.l.b16 %v3014
      %v3185 = vunpack.c.h.b16 %v3014
      %v3186 = vunpack.c.l.b16 %v3015
      %v3187 = vunpack.c.l.b16 %v3016
      %v3188 = vunpack.c.h.b16 %v3016
      %v3189 = vunpack.c.l.b16 %v3017
      %v3190 = vunpack.c.l.b16 %v3018
      %v3191 = vunpack.c.h.b16 %v3018
      %v3192 = vunpack.c.l.b16 %v3019
      %v3193 = vunpack.c.l.b16 %v3020
      %v3194 = vunpack.c.h.b16 %v3020
      %v3195 = vunpack.c.l.b16 %v3021
      %v3196 = vunpack.c.l.b16 %v3022
      %v3197 = vunpack.c.h.b16 %v3022
      %v3198 = vunpack.c.l.b16 %v3023
      %v3199 = vunpack.c.l.b16 %v3024
      %v3200 = vunpack.c.h.b16 %v3024
      %v3201 = vunpack.c.l.b16 %v3025
      %v3202 = vunpack.c.l.b16 %v3026
      %v3203 = vunpack.c.h.b16 %v3026
      %v3204 = vunpack.c.l.b16 %v3027
      %v3205 = vunpack.c.l.b16 %v3028
      %v3206 = vunpack.c.h.b16 %v3028
      %v3207 = vunpack.c.l.b16 %v3029
      %v3208 = vpack.c.b16 %v3115, %v3112
      %v3209 = vpack.c.b16 %v3116, %v3113
      %v3210 = vpack.c.b16 %v3117, %v3114
      %v3211 = vpack.c.b16 %v3121, %v3118
      %v3212 = vpack.c.b16 %v3122, %v3119
      %v3213 = vpack.c.b16 %v3123, %v3120
      %v3214 = vpack.c.b16 %v3127, %v3124
      %v3215 = vpack.c.b16 %v3128, %v3125
      %v3216 = vpack.c.b16 %v3129, %v3126
      %v3217 = vpack.c.b16 %v3133, %v3130
      %v3218 = vpack.c.b16 %v3134, %v3131
      %v3219 = vpack.c.b16 %v3135, %v3132
      %v3220 = vpack.c.b16 %v3139, %v3136
      %v3221 = vpack.c.b16 %v3140, %v3137
      %v3222 = vpack.c.b16 %v3141, %v3138
      %v3223 = vpack.c.b16 %v3145, %v3142
      %v3224 = vpack.c.b16 %v3146, %v3143
      %v3225 = vpack.c.b16 %v3147, %v3144
      %v3226 = vpack.c.b16 %v3151, %v3148
      %v3227 = vpack.c.b16 %v3152, %v3149
      %v3228 = vpack.c.b16 %v3153, %v3150
      %v3229 = vpack.c.b16 %v3157, %v3154
      %v3230 = vpack.c.b16 %v3158, %v3155
      %v3231 = vpack.c.b16 %v3159, %v3156
      %v3232 = vpack.c.b16 %v3163, %v3160
      %v3233 = vpack.c.b16 %v3164, %v3161
      %v3234 = vpack.c.b16 %v3165, %v3162
      %v3235 = vpack.c.b16 %v3169, %v3166
      %v3236 = vpack.c.b16 %v3170, %v3167
      %v3237 = vpack.c.b16 %v3171, %v3168
      %v3238 = vpack.c.b16 %v3175, %v3172
      %v3239 = vpack.c.b16 %v3176, %v3173
      %v3240 = vpack.c.b16 %v3177, %v3174
      %v3241 = vpack.c.b16 %v3181, %v3178
      %v3242 = vpack.c.b16 %v3182, %v3179
      %v3243 = vpack.c.b16 %v3183, %v3180
      %v3244 = vpack.c.b16 %v3187, %v3184
      %v3245 = vpack.c.b16 %v3188, %v3185
      %v3246 = vpack.c.b16 %v3189, %v3186
      %v3247 = vpack.c.b16 %v3193, %v3190
      %v3248 = vpack.c.b16 %v3194, %v3191
      %v3249 = vpack.c.b16 %v3195, %v3192
      %v3250 = vpack.c.b16 %v3199, %v3196
      %v3251 = vpack.c.b16 %v3200, %v3197
      %v3252 = vpack.c.b16 %v3201, %v3198
      %v3253 = vpack.c.b16 %v3205, %v3202
      %v3254 = vpack.c.b16 %v3206, %v3203
      %v3255 = vpack.c.b16 %v3207, %v3204
      %3304 = vmatprep.subr.bf16.mxu0 %v3209
      %3305 = vmatpush1.bf16.msra.mxu0 %v3208
      %3306 = vmatprep.subr.bf16.mxu0 %v3212
      %3307 = vmatpush1.bf16.msra.mxu0 %v3211
      %3308 = vmatprep.subr.bf16.mxu0 %v3215
      %3309 = vmatpush1.bf16.msra.mxu0 %v3214
      %3310 = vmatprep.subr.bf16.mxu0 %v3218
      %3311 = vmatpush1.bf16.msra.mxu0 %v3217
      %3312 = vmatprep.subr.bf16.mxu0 %v3221
      %3313 = vmatpush1.bf16.msra.mxu0 %v3220
      %3314 = vmatprep.subr.bf16.mxu0 %v3224
      %3315 = vmatpush1.bf16.msra.mxu0 %v3223
      %3316 = vmatprep.subr.bf16.mxu0 %v3227
      %3317 = vmatpush1.bf16.msra.mxu0 %v3226
      %3318 = vmatprep.subr.bf16.mxu0 %v3230
      %3319 = vmatpush1.bf16.msra.mxu0 %v3229
      %3320 = vmatprep.subr.bf16.mxu0 %v3233
      %3321 = vmatpush1.bf16.msra.mxu0 %v3232
      %3322 = vmatprep.subr.bf16.mxu0 %v3236
      %3323 = vmatpush1.bf16.msra.mxu0 %v3235
      %3324 = vmatprep.subr.bf16.mxu0 %v3239
      %3325 = vmatpush1.bf16.msra.mxu0 %v3238
      %3326 = vmatprep.subr.bf16.mxu0 %v3242
      %3327 = vmatpush1.bf16.msra.mxu0 %v3241
      %3328 = vmatprep.subr.bf16.mxu0 %v3245
      %3329 = vmatpush1.bf16.msra.mxu0 %v3244
      %3330 = vmatprep.subr.bf16.mxu0 %v3248
      %3331 = vmatpush1.bf16.msra.mxu0 %v3247
      %3332 = vmatprep.subr.bf16.mxu0 %v3251
      %3333 = vmatpush1.bf16.msra.mxu0 %v3250
      %3334 = vmatprep.subr.bf16.mxu0 %v3254
      %3335 = vmatpush1.bf16.msra.mxu0 %v3253
      %3336 = vmatprep.mubr.bf16.mxu0 %v2964
      %3337 = vmatmul.mubr.bf16.gmra.mrb[0].mxu0 %v2963
      %v3338 = vpop.f32.mrb[0].mxu0
      %v3339 = vadd.f32 %v3036, %v3338
      %v3340 = vpop.f32.mrb[0].mxu0
      %v3341 = vadd.f32 %v3040, %v3340
      %v3342 = vpop.f32.mrb[0].mxu0
      %v3343 = vadd.f32 %v3036, %v3342
      %v3344 = vpop.f32.mrb[0].mxu0
      %v3345 = vadd.f32 %v3040, %v3344
      %3346 = vdwg.mxu0
      %3347 = vmatprep.subr.bf16.mxu0 0
      %3348 = vmatpush1.bf16.msra.mxu0 %v3210
      %3349 = vmatprep.subr.bf16.mxu0 0
      %3350 = vmatpush1.bf16.msra.mxu0 %v3213
      %3351 = vmatprep.subr.bf16.mxu0 0
      %3352 = vmatpush1.bf16.msra.mxu0 %v3216
      %3353 = vmatprep.subr.bf16.mxu0 0
      %3354 = vmatpush1.bf16.msra.mxu0 %v3219
      %3355 = vmatprep.subr.bf16.mxu0 0
      %3356 = vmatpush1.bf16.msra.mxu0 %v3222
      %3357 = vmatprep.subr.bf16.mxu0 0
      %3358 = vmatpush1.bf16.msra.mxu0 %v3225
      %3359 = vmatprep.subr.bf16.mxu0 0
      %3360 = vmatpush1.bf16.msra.mxu0 %v3228
      %3361 = vmatprep.subr.bf16.mxu0 0
      %3362 = vmatpush1.bf16.msra.mxu0 %v3231
      %3363 = vmatprep.subr.bf16.mxu0 0
      %3364 = vmatpush1.bf16.msra.mxu0 %v3234
      %3365 = vmatprep.subr.bf16.mxu0 0
      %3366 = vmatpush1.bf16.msra.mxu0 %v3237
      %3367 = vmatprep.subr.bf16.mxu0 0
      %3368 = vmatpush1.bf16.msra.mxu0 %v3240
      %3369 = vmatprep.subr.bf16.mxu0 0
      %3370 = vmatpush1.bf16.msra.mxu0 %v3243
      %3371 = vmatprep.subr.bf16.mxu0 0
      %3372 = vmatpush1.bf16.msra.mxu0 %v3246
      %3373 = vmatprep.subr.bf16.mxu0 0
      %3374 = vmatpush1.bf16.msra.mxu0 %v3249
      %3375 = vmatprep.subr.bf16.mxu0 0
      %3376 = vmatpush1.bf16.msra.mxu0 %v3252
      %3377 = vmatprep.subr.bf16.mxu0 0
      %3378 = vmatpush1.bf16.msra.mxu0 %v3255
      %3379 = vmatprep.mubr.bf16.mxu0 %v2964
      %3380 = vmatmul.mubr.bf16.gmra.mrb[0].mxu0 %v2963
      %v3381 = vpop.f32.mrb[0].mxu0
      %v3382 = vadd.f32 %v3044, %v3381
      %v3383 = vpop.f32.mrb[0].mxu0
      %v3384 = vpop.f32.mrb[0].mxu0
      %v3385 = vadd.f32 %v3044, %v3384
      %v3386 = vpop.f32.mrb[0].mxu0
      %3387 = vdwg.mxu0
      %v3388 = vxor.u32 %v3339, 2147483648
      %v3389 = vxor.u32 %v3341, 2147483648
      %v3390 = vxor.u32 %v3382, 2147483648
      %v3391 = vxor.u32 %v3343, 2147483648
      %v3392 = vxor.u32 %v3345, 2147483648
      %v3393 = vxor.u32 %v3385, 2147483648
      %v3394 = vmul.f32 %v3388, 1.442695
      %v3395 = vpow.pop %v3394
      %v3396 = vmul.f32 %v3389, 1.442695
      %v3397 = vpow.pop %v3396
      %v3398 = vmul.f32 %v3390, 1.442695
      %v3399 = vpow.pop %v3398
      %v3400 = vmul.f32 %v3391, 1.442695
      %v3401 = vpow.pop %v3400
      %v3402 = vmul.f32 %v3392, 1.442695
      %v3403 = vpow.pop %v3402
      %v3404 = vmul.f32 %v3393, 1.442695
      %v3405 = vpow.pop %v3404
      %v3406 = vadd.f32 %v3395, 1.0
      %v3407 = vadd.f32 %v3397, 1.0
      %v3408 = vadd.f32 %v3399, 1.0
      %v3409 = vadd.f32 %v3401, 1.0
      %v3410 = vadd.f32 %v3403, 1.0
      %v3411 = vadd.f32 %v3405, 1.0
      %v3412 = vrcp.pop %v3406
      %v3413 = vmul.f32 1.0, %v3412
      %v3414 = vrcp.pop %v3407
      %v3415 = vmul.f32 1.0, %v3414
      %v3416 = vrcp.pop %v3408
      %v3417 = vmul.f32 1.0, %v3416
      %v3418 = vrcp.pop %v3409
      %v3419 = vmul.f32 1.0, %v3418
      %v3420 = vrcp.pop %v3410
      %v3421 = vmul.f32 1.0, %v3420
      %v3422 = vrcp.pop %v3411
      %v3423 = vmul.f32 1.0, %v3422
      %v3424 = vadd.f32 %v401, %v410
      %v3425 = vadd.f32 %v402, %v411
      %v3426 = vadd.f32 %v403, %v412
      %v3427 = vadd.f32 %v404, %v413
      %v3428 = vadd.f32 %v405, %v414
      %v3429 = vadd.f32 %v406, %v415
      %v3430 = vadd.f32 %v407, %v416
      %v3431 = vadd.f32 %v408, %v417
      %v3432 = vadd.f32 %v409, %v418
      %v3433 = vmul.f32 %v3424, 0.5
      %v3434 = vmul.f32 %v3425, 0.5
      %v3435 = vmul.f32 %v3426, 0.5
      %v3436 = vmul.f32 %v3427, 0.5
      %v3437 = vmul.f32 %v3428, 0.5
      %v3438 = vmul.f32 %v3429, 0.5
      %v3439 = vmul.f32 %v3430, 0.5
      %v3440 = vmul.f32 %v3431, 0.5
      %v3441 = vmul.f32 %v3432, 0.5
      %v3442 = vld [vmem:[%s389] sm:$0x1]
      %v3443 = vld [vmem:[%s386] sm:$0xff]
      %v3444 = vld [vmem:[%s386 + $0x8] sm:$0xff]
      %v3445 = vld [vmem:[%s386 + $0x10] sm:$0xff]
      %v3446 = vld [vmem:[%s386 + $0x18] sm:$0xff]
      %v3447 = vmul.f32 %v3443, %v3413
      %v3448 = vmul.f32 %v3444, %v3415
      %v3449 = vmul.f32 %v3445, %v3419
      %v3450 = vmul.f32 %v3446, %v3421
      %v3451 = vadd.f32 %v3447, 1.0
      %v3452 = vadd.f32 %v3448, 1.0
      %v3453 = vadd.f32 %v3449, 1.0
      %v3454 = vadd.f32 %v3450, 1.0
      %vm3459 = vcmask 1040384
      %v3460 = vrot.slane %v3451, 7
      %v3461 = vrot.slane %v3452, 7
      %v3462 = vrot.slane %v3453, 7
      %v3463 = vsel %vm3459, %v3460, %v3462
      %v3464 = vrot.slane %v3454, 7
      %v3465 = vsel %vm3459, %v3461, %v3464
      %3466 = vrot.lane.b32.xlu0 %v3460, 16
      %v3467 = vpop.permute.xlu0 %3466
      %3468 = vrot.lane.b32.xlu0 %v3461, 16
      %v3469 = vpop.permute.xlu0 %3468
      %3470 = vrot.lane.b32.xlu0 %v3463, 16
      %v3471 = vpop.permute.xlu0 %3470
      %3472 = vrot.lane.b32.xlu0 %v3465, 16
      %v3473 = vpop.permute.xlu0 %3472
      %3474 = vrot.lane.b32.xlu0 %v3462, 16
      %v3475 = vpop.permute.xlu0 %3474
      %3476 = vrot.lane.b32.xlu0 %v3464, 16
      %v3477 = vpop.permute.xlu0 %3476
      %vm3478 = vcmask 130048
      %v3479 = vsel %vm3478, %v3467, %v3469
      %v3480 = vsel %vm3478, %v3471, %v3473
      %v3481 = vsel %vm3478, %v3475, %v3477
      %v3491 = vmul.f32 %v3433, %v3467
      %v3492 = vmul.f32 %v3434, %v3479
      %v3493 = vmul.f32 %v3435, %v3469
      %v3494 = vmul.f32 %v3436, %v3471
      %v3495 = vmul.f32 %v3437, %v3480
      %v3496 = vmul.f32 %v3438, %v3473
      %v3497 = vmul.f32 %v3439, %v3475
      %v3498 = vmul.f32 %v3440, %v3481
      %v3499 = vmul.f32 %v3441, %v3477
      %v3501 = vlaneseq
      %v3502 = vshrl.u32 %v3501, 7
      %v3503 = vsub.s32 0, %v3502
      %v3504 = vrot.slane %v3442, %v3503
      %3505 = vset.pattern.permute.xlu0 0
      %3506 = vperm.xlu0 %3505, %v3504
      %v3507 = vpop.permute.xlu0 %3506
      %v3509 = vmul.f32 %v2922, %v3507
      %v3510 = vmul.f32 %v2923, %v3507
      %v3511 = vmul.f32 %v2924, %v3507
      %v3512 = vmul.f32 %v2925, %v3507
      %3513 = vset.pattern.permute.xlu0 1
      %3514 = vperm.xlu0 %3513, %v3504
      %v3515 = vpop.permute.xlu0 %3514
      %v3517 = vmul.f32 %v2930, %v3515
      %v3518 = vmul.f32 %v2931, %v3515
      %v3519 = vmul.f32 %v2932, %v3515
      %v3520 = vmul.f32 %v2933, %v3515
      %v3521 = vadd.f32 %v3509, %v3517
      %v3522 = vadd.f32 %v3510, %v3518
      %v3523 = vadd.f32 %v3511, %v3519
      %v3524 = vadd.f32 %v3512, %v3520
      %v3525 = vmul.f32 %v3491, 0.5
      %v3526 = vmul.f32 %v3492, 0.5
      %v3527 = vmul.f32 %v3493, 0.5
      %v3528 = vmul.f32 %v3494, 0.5
      %v3529 = vmul.f32 %v3495, 0.5
      %v3530 = vmul.f32 %v3496, 0.5
      %v3531 = vmul.f32 %v3497, 0.5
      %v3532 = vmul.f32 %v3498, 0.5
      %v3533 = vmul.f32 %v3499, 0.5
      %v3534 = vmul.f32 %v3521, 0.5
      %v3535 = vmul.f32 %v3522, 0.5
      %v3536 = vmul.f32 %v3523, 0.5
      %v3537 = vmul.f32 %v3524, 0.5
      %v3542 = vrot.slane %v3534, 7
      %v3543 = vrot.slane %v3535, 7
      %v3544 = vrot.slane %v3536, 7
      %v3545 = vsel %vm3459, %v3542, %v3544
      %v3546 = vrot.slane %v3537, 7
      %v3547 = vsel %vm3459, %v3543, %v3546
      %3548 = vrot.lane.b32.xlu0 %v3542, 16
      %v3549 = vpop.permute.xlu0 %3548
      %3550 = vrot.lane.b32.xlu0 %v3543, 16
      %v3551 = vpop.permute.xlu0 %3550
      %3552 = vrot.lane.b32.xlu0 %v3545, 16
      %v3553 = vpop.permute.xlu0 %3552
      %3554 = vrot.lane.b32.xlu0 %v3547, 16
      %v3555 = vpop.permute.xlu0 %3554
      %3556 = vrot.lane.b32.xlu0 %v3544, 16
      %v3557 = vpop.permute.xlu0 %3556
      %3558 = vrot.lane.b32.xlu0 %v3546, 16
      %v3559 = vpop.permute.xlu0 %3558
      %v3560 = vsel %vm3478, %v3549, %v3551
      %v3561 = vsel %vm3478, %v3553, %v3555
      %v3562 = vsel %vm3478, %v3557, %v3559
      %v3572 = vadd.f32 %v3525, %v3549
      %v3573 = vadd.f32 %v3526, %v3560
      %v3574 = vadd.f32 %v3527, %v3551
      %v3575 = vadd.f32 %v3528, %v3553
      %v3576 = vadd.f32 %v3529, %v3561
      %v3577 = vadd.f32 %v3530, %v3555
      %v3578 = vadd.f32 %v3531, %v3557
      %v3579 = vadd.f32 %v3532, %v3562
      %v3580 = vadd.f32 %v3533, %v3559
      %v3581 = vpack.c.bf16 %v3575, %v3572
      %v3582 = vpack.c.bf16 %v3576, %v3573
      %v3583 = vpack.c.bf16 %v3577, %v3574
      %v3584 = vpack.c.bf16 %v3578, %v3578
      %v3585 = vpack.c.bf16 %v3579, %v3579
      %v3586 = vpack.c.bf16 %v3580, %v3580
      %v3587 = vld [vmem:[%s5] sm:$0xff]
      %v3588 = vld [vmem:[%s5 + $0x8] sm:$0xf]
      %v3589 = vld [vmem:[%s5 + $0xc] sm:$0xff]
      %v3590 = vld [vmem:[%s5 + $0x14] sm:$0xf]
      %v3591 = vld [vmem:[%s5 + $0x18] sm:$0xff]
      %v3592 = vld [vmem:[%s5 + $0x20] sm:$0xf]
      %v3593 = vld [vmem:[%s5 + $0x24] sm:$0xff]
      %v3594 = vld [vmem:[%s5 + $0x2c] sm:$0xf]
      %v3595 = vld [vmem:[%s5 + $0x30] sm:$0xff]
      %v3596 = vld [vmem:[%s5 + $0x38] sm:$0xf]
      %v3597 = vld [vmem:[%s5 + $0x3c] sm:$0xff]
      %v3598 = vld [vmem:[%s5 + $0x44] sm:$0xf]
      %v3599 = vld [vmem:[%s5 + $0x48] sm:$0xff]
      %v3600 = vld [vmem:[%s5 + $0x50] sm:$0xf]
      %v3601 = vld [vmem:[%s5 + $0x54] sm:$0xff]
      %v3602 = vld [vmem:[%s5 + $0x5c] sm:$0xf]
      %v3603 = vld [vmem:[%s5 + $0x60] sm:$0xff]
      %v3604 = vld [vmem:[%s5 + $0x68] sm:$0xf]
      %v3605 = vld [vmem:[%s5 + $0x6c] sm:$0xff]
      %v3606 = vld [vmem:[%s5 + $0x74] sm:$0xf]
      %v3607 = vld [vmem:[%s5 + $0x78] sm:$0xff]
      %v3608 = vld [vmem:[%s5 + $0x80] sm:$0xf]
      %v3609 = vld [vmem:[%s5 + $0x84] sm:$0xff]
      %v3610 = vld [vmem:[%s5 + $0x8c] sm:$0xf]
      %v3611 = vld [vmem:[%s5 + $0x90] sm:$0xff]
      %v3612 = vld [vmem:[%s5 + $0x98] sm:$0xf]
      %v3613 = vld [vmem:[%s5 + $0x9c] sm:$0xff]
      %v3614 = vld [vmem:[%s5 + $0xa4] sm:$0xf]
      %v3615 = vld [vmem:[%s5 + $0xa8] sm:$0xff]
      %v3616 = vld [vmem:[%s5 + $0xb0] sm:$0xf]
      %v3617 = vld [vmem:[%s5 + $0xb4] sm:$0xff]
      %v3618 = vld [vmem:[%s5 + $0xbc] sm:$0xf]
      %v3619 = vld [vmem:[%s5 + $0xc0] sm:$0xff]
      %v3620 = vld [vmem:[%s5 + $0xc8] sm:$0xf]
      %v3621 = vld [vmem:[%s5 + $0xcc] sm:$0xff]
      %v3622 = vld [vmem:[%s5 + $0xd4] sm:$0xf]
      %v3623 = vld [vmem:[%s5 + $0xd8] sm:$0xff]
      %v3624 = vld [vmem:[%s5 + $0xe0] sm:$0xf]
      %v3625 = vld [vmem:[%s5 + $0xe4] sm:$0xff]
      %v3626 = vld [vmem:[%s5 + $0xec] sm:$0xf]
      %v3627 = vld [vmem:[%s5 + $0xf0] sm:$0xff]
      %v3628 = vld [vmem:[%s5 + $0xf8] sm:$0xf]
      %v3629 = vld [vmem:[%s5 + $0xfc] sm:$0xff]
      %v3630 = vld [vmem:[%s5 + $0x104] sm:$0xf]
      %v3631 = vld [vmem:[%s5 + $0x108] sm:$0xff]
      %v3632 = vld [vmem:[%s5 + $0x110] sm:$0xf]
      %v3633 = vld [vmem:[%s5 + $0x114] sm:$0xff]
      %v3634 = vld [vmem:[%s5 + $0x11c] sm:$0xf]
      %v3635 = vld [vmem:[%s5 + $0x120] sm:$0xff]
      %v3636 = vld [vmem:[%s5 + $0x128] sm:$0xf]
      %v3637 = vld [vmem:[%s5 + $0x12c] sm:$0xff]
      %v3638 = vld [vmem:[%s5 + $0x134] sm:$0xf]
      %v3639 = vld [vmem:[%s5 + $0x138] sm:$0xff]
      %v3640 = vld [vmem:[%s5 + $0x140] sm:$0xf]
      %v3641 = vld [vmem:[%s5 + $0x144] sm:$0xff]
      %v3642 = vld [vmem:[%s5 + $0x14c] sm:$0xf]
      %v3643 = vld [vmem:[%s5 + $0x150] sm:$0xff]
      %v3644 = vld [vmem:[%s5 + $0x158] sm:$0xf]
      %v3645 = vld [vmem:[%s5 + $0x15c] sm:$0xff]
      %v3646 = vld [vmem:[%s5 + $0x164] sm:$0xf]
      %v3647 = vld [vmem:[%s5 + $0x168] sm:$0xff]
      %v3648 = vld [vmem:[%s5 + $0x170] sm:$0xf]
      %v3649 = vld [vmem:[%s5 + $0x174] sm:$0xff]
      %v3650 = vld [vmem:[%s5 + $0x17c] sm:$0xf]
      %s3651 = scalar_lea.vmem %s7, 2
      %v3652 = vld [vmem:[%s3651] ss:$8 sm:$0x7]
      %v3654 = vlaneseq
      %v3655 = vshrl.u32 %v3654, 7
      %v3656 = vsub.s32 0, %v3655
      %v3657 = vrot.slane %v3652, %v3656
      %v3658 = vlaneseq
      %v3659 = vshrl.u32 %v3658, 7
      %v3660 = vsub.s32 1, %v3659
      %v3661 = vrot.slane %v3652, %v3660
      %v3662 = vlaneseq
      %v3663 = vshrl.u32 %v3662, 7
      %v3664 = vsub.s32 2, %v3663
      %v3665 = vrot.slane %v3652, %v3664
      %v3670 = vshrl.u32 %v3581, 16
      %v3672 = vshll.u32 %v3581, 16
      %v3674 = vrot.slane %v3672, 1
      %v3675 = vor.u32 %v3670, %v3674
      %v3677 = vshll.u32 %v3584, 16
      %v3679 = vrot.slane %v3677, 1
      %v3680 = vsel %vm576, %v3675, %v3679
      %v3682 = vshrl.u32 %v3582, 16
      %v3684 = vshll.u32 %v3582, 16
      %v3686 = vrot.slane %v3684, 1
      %v3687 = vor.u32 %v3682, %v3686
      %v3689 = vshll.u32 %v3585, 16
      %v3691 = vrot.slane %v3689, 1
      %v3692 = vsel %vm576, %v3687, %v3691
      %v3694 = vshrl.u32 %v3583, 16
      %v3696 = vshll.u32 %v3583, 16
      %v3698 = vrot.slane %v3696, 1
      %v3699 = vor.u32 %v3694, %v3698
      %v3701 = vshll.u32 %v3586, 16
      %v3703 = vrot.slane %v3701, 1
      %v3704 = vsel %vm576, %v3699, %v3703
      %3705 = vrot.lane.b32.xlu0 %v3680, 112
      %v3706 = vpop.permute.xlu0 %3705
      %3707 = vrot.lane.b32.xlu0 %v3692, 112
      %v3708 = vpop.permute.xlu0 %3707
      %3709 = vrot.lane.b32.xlu0 %v3704, 112
      %v3710 = vpop.permute.xlu0 %3709
      %vm3711 = vcmask 916480
      %v3712 = vsel %vm3711, %v3706, %v3708
      %v3713 = vsel %vm3711, %v3708, %v3710
      %v3780 = vunpack.c.l.b16 %v3587
      %v3781 = vunpack.c.h.b16 %v3587
      %v3782 = vunpack.c.l.b16 %v3588
      %v3783 = vunpack.c.l.b16 %v3589
      %v3784 = vunpack.c.h.b16 %v3589
      %v3785 = vunpack.c.l.b16 %v3590
      %v3786 = vunpack.c.l.b16 %v3591
      %v3787 = vunpack.c.h.b16 %v3591
      %v3788 = vunpack.c.l.b16 %v3592
      %v3789 = vunpack.c.l.b16 %v3593
      %v3790 = vunpack.c.h.b16 %v3593
      %v3791 = vunpack.c.l.b16 %v3594
      %v3792 = vunpack.c.l.b16 %v3595
      %v3793 = vunpack.c.h.b16 %v3595
      %v3794 = vunpack.c.l.b16 %v3596
      %v3795 = vunpack.c.l.b16 %v3597
      %v3796 = vunpack.c.h.b16 %v3597
      %v3797 = vunpack.c.l.b16 %v3598
      %v3798 = vunpack.c.l.b16 %v3599
      %v3799 = vunpack.c.h.b16 %v3599
      %v3800 = vunpack.c.l.b16 %v3600
      %v3801 = vunpack.c.l.b16 %v3601
      %v3802 = vunpack.c.h.b16 %v3601
      %v3803 = vunpack.c.l.b16 %v3602
      %v3804 = vunpack.c.l.b16 %v3603
      %v3805 = vunpack.c.h.b16 %v3603
      %v3806 = vunpack.c.l.b16 %v3604
      %v3807 = vunpack.c.l.b16 %v3605
      %v3808 = vunpack.c.h.b16 %v3605
      %v3809 = vunpack.c.l.b16 %v3606
      %v3810 = vunpack.c.l.b16 %v3607
      %v3811 = vunpack.c.h.b16 %v3607
      %v3812 = vunpack.c.l.b16 %v3608
      %v3813 = vunpack.c.l.b16 %v3609
      %v3814 = vunpack.c.h.b16 %v3609
      %v3815 = vunpack.c.l.b16 %v3610
      %v3816 = vunpack.c.l.b16 %v3611
      %v3817 = vunpack.c.h.b16 %v3611
      %v3818 = vunpack.c.l.b16 %v3612
      %v3819 = vunpack.c.l.b16 %v3613
      %v3820 = vunpack.c.h.b16 %v3613
      %v3821 = vunpack.c.l.b16 %v3614
      %v3822 = vunpack.c.l.b16 %v3615
      %v3823 = vunpack.c.h.b16 %v3615
      %v3824 = vunpack.c.l.b16 %v3616
      %v3825 = vunpack.c.l.b16 %v3617
      %v3826 = vunpack.c.h.b16 %v3617
      %v3827 = vunpack.c.l.b16 %v3618
      %v3828 = vunpack.c.l.b16 %v3619
      %v3829 = vunpack.c.h.b16 %v3619
      %v3830 = vunpack.c.l.b16 %v3620
      %v3831 = vunpack.c.l.b16 %v3621
      %v3832 = vunpack.c.h.b16 %v3621
      %v3833 = vunpack.c.l.b16 %v3622
      %v3834 = vunpack.c.l.b16 %v3623
      %v3835 = vunpack.c.h.b16 %v3623
      %v3836 = vunpack.c.l.b16 %v3624
      %v3837 = vunpack.c.l.b16 %v3625
      %v3838 = vunpack.c.h.b16 %v3625
      %v3839 = vunpack.c.l.b16 %v3626
      %v3840 = vunpack.c.l.b16 %v3627
      %v3841 = vunpack.c.h.b16 %v3627
      %v3842 = vunpack.c.l.b16 %v3628
      %v3843 = vunpack.c.l.b16 %v3629
      %v3844 = vunpack.c.h.b16 %v3629
      %v3845 = vunpack.c.l.b16 %v3630
      %v3846 = vunpack.c.l.b16 %v3631
      %v3847 = vunpack.c.h.b16 %v3631
      %v3848 = vunpack.c.l.b16 %v3632
      %v3849 = vunpack.c.l.b16 %v3633
      %v3850 = vunpack.c.h.b16 %v3633
      %v3851 = vunpack.c.l.b16 %v3634
      %v3852 = vunpack.c.l.b16 %v3635
      %v3853 = vunpack.c.h.b16 %v3635
      %v3854 = vunpack.c.l.b16 %v3636
      %v3855 = vunpack.c.l.b16 %v3637
      %v3856 = vunpack.c.h.b16 %v3637
      %v3857 = vunpack.c.l.b16 %v3638
      %v3858 = vunpack.c.l.b16 %v3639
      %v3859 = vunpack.c.h.b16 %v3639
      %v3860 = vunpack.c.l.b16 %v3640
      %v3861 = vunpack.c.l.b16 %v3641
      %v3862 = vunpack.c.h.b16 %v3641
      %v3863 = vunpack.c.l.b16 %v3642
      %v3864 = vunpack.c.l.b16 %v3643
      %v3865 = vunpack.c.h.b16 %v3643
      %v3866 = vunpack.c.l.b16 %v3644
      %v3867 = vunpack.c.l.b16 %v3645
      %v3868 = vunpack.c.h.b16 %v3645
      %v3869 = vunpack.c.l.b16 %v3646
      %v3870 = vunpack.c.l.b16 %v3647
      %v3871 = vunpack.c.h.b16 %v3647
      %v3872 = vunpack.c.l.b16 %v3648
      %v3873 = vunpack.c.l.b16 %v3649
      %v3874 = vunpack.c.h.b16 %v3649
      %v3875 = vunpack.c.l.b16 %v3650
      %v3876 = vpack.c.b16 %v3783, %v3780
      %v3877 = vpack.c.b16 %v3784, %v3781
      %v3878 = vpack.c.b16 %v3785, %v3782
      %v3879 = vpack.c.b16 %v3789, %v3786
      %v3880 = vpack.c.b16 %v3790, %v3787
      %v3881 = vpack.c.b16 %v3791, %v3788
      %v3882 = vpack.c.b16 %v3795, %v3792
      %v3883 = vpack.c.b16 %v3796, %v3793
      %v3884 = vpack.c.b16 %v3797, %v3794
      %v3885 = vpack.c.b16 %v3801, %v3798
      %v3886 = vpack.c.b16 %v3802, %v3799
      %v3887 = vpack.c.b16 %v3803, %v3800
      %v3888 = vpack.c.b16 %v3807, %v3804
      %v3889 = vpack.c.b16 %v3808, %v3805
      %v3890 = vpack.c.b16 %v3809, %v3806
      %v3891 = vpack.c.b16 %v3813, %v3810
      %v3892 = vpack.c.b16 %v3814, %v3811
      %v3893 = vpack.c.b16 %v3815, %v3812
      %v3894 = vpack.c.b16 %v3819, %v3816
      %v3895 = vpack.c.b16 %v3820, %v3817
      %v3896 = vpack.c.b16 %v3821, %v3818
      %v3897 = vpack.c.b16 %v3825, %v3822
      %v3898 = vpack.c.b16 %v3826, %v3823
      %v3899 = vpack.c.b16 %v3827, %v3824
      %v3900 = vpack.c.b16 %v3831, %v3828
      %v3901 = vpack.c.b16 %v3832, %v3829
      %v3902 = vpack.c.b16 %v3833, %v3830
      %v3903 = vpack.c.b16 %v3837, %v3834
      %v3904 = vpack.c.b16 %v3838, %v3835
      %v3905 = vpack.c.b16 %v3839, %v3836
      %v3906 = vpack.c.b16 %v3843, %v3840
      %v3907 = vpack.c.b16 %v3844, %v3841
      %v3908 = vpack.c.b16 %v3845, %v3842
      %v3909 = vpack.c.b16 %v3849, %v3846
      %v3910 = vpack.c.b16 %v3850, %v3847
      %v3911 = vpack.c.b16 %v3851, %v3848
      %v3912 = vpack.c.b16 %v3855, %v3852
      %v3913 = vpack.c.b16 %v3856, %v3853
      %v3914 = vpack.c.b16 %v3857, %v3854
      %v3915 = vpack.c.b16 %v3861, %v3858
      %v3916 = vpack.c.b16 %v3862, %v3859
      %v3917 = vpack.c.b16 %v3863, %v3860
      %v3918 = vpack.c.b16 %v3867, %v3864
      %v3919 = vpack.c.b16 %v3868, %v3865
      %v3920 = vpack.c.b16 %v3869, %v3866
      %v3921 = vpack.c.b16 %v3873, %v3870
      %v3922 = vpack.c.b16 %v3874, %v3871
      %v3923 = vpack.c.b16 %v3875, %v3872
      %3972 = vmatprep.subr.bf16.mxu0 %v3877
      %3973 = vmatpush1.bf16.msra.mxu0 %v3876
      %3974 = vmatprep.subr.bf16.mxu0 %v3880
      %3975 = vmatpush1.bf16.msra.mxu0 %v3879
      %3976 = vmatprep.subr.bf16.mxu0 %v3883
      %3977 = vmatpush1.bf16.msra.mxu0 %v3882
      %3978 = vmatprep.subr.bf16.mxu0 %v3886
      %3979 = vmatpush1.bf16.msra.mxu0 %v3885
      %3980 = vmatprep.subr.bf16.mxu0 %v3889
      %3981 = vmatpush1.bf16.msra.mxu0 %v3888
      %3982 = vmatprep.subr.bf16.mxu0 %v3892
      %3983 = vmatpush1.bf16.msra.mxu0 %v3891
      %3984 = vmatprep.subr.bf16.mxu0 %v3895
      %3985 = vmatpush1.bf16.msra.mxu0 %v3894
      %3986 = vmatprep.subr.bf16.mxu0 %v3898
      %3987 = vmatpush1.bf16.msra.mxu0 %v3897
      %3988 = vmatprep.subr.bf16.mxu0 %v3901
      %3989 = vmatpush1.bf16.msra.mxu0 %v3900
      %3990 = vmatprep.subr.bf16.mxu0 %v3904
      %3991 = vmatpush1.bf16.msra.mxu0 %v3903
      %3992 = vmatprep.subr.bf16.mxu0 %v3907
      %3993 = vmatpush1.bf16.msra.mxu0 %v3906
      %3994 = vmatprep.subr.bf16.mxu0 %v3910
      %3995 = vmatpush1.bf16.msra.mxu0 %v3909
      %3996 = vmatprep.subr.bf16.mxu0 %v3913
      %3997 = vmatpush1.bf16.msra.mxu0 %v3912
      %3998 = vmatprep.subr.bf16.mxu0 %v3916
      %3999 = vmatpush1.bf16.msra.mxu0 %v3915
      %4000 = vmatprep.subr.bf16.mxu0 %v3919
      %4001 = vmatpush1.bf16.msra.mxu0 %v3918
      %4002 = vmatprep.subr.bf16.mxu0 %v3922
      %4003 = vmatpush1.bf16.msra.mxu0 %v3921
      %4004 = vmatprep.mubr.bf16.mxu0 %v3713
      %4005 = vmatmul.mubr.bf16.gmra.mrb[0].mxu0 %v3712
      %v4006 = vpop.f32.mrb[0].mxu0
      %v4007 = vadd.f32 %v3657, %v4006
      %v4008 = vpop.f32.mrb[0].mxu0
      %v4009 = vadd.f32 %v3661, %v4008
      %v4010 = vpop.f32.mrb[0].mxu0
      %v4011 = vadd.f32 %v3657, %v4010
      %v4012 = vpop.f32.mrb[0].mxu0
      %v4013 = vadd.f32 %v3661, %v4012
      %4014 = vdwg.mxu0
      %4015 = vmatprep.subr.bf16.mxu0 0
      %4016 = vmatpush1.bf16.msra.mxu0 %v3878
      %4017 = vmatprep.subr.bf16.mxu0 0
      %4018 = vmatpush1.bf16.msra.mxu0 %v3881
      %4019 = vmatprep.subr.bf16.mxu0 0
      %4020 = vmatpush1.bf16.msra.mxu0 %v3884
      %4021 = vmatprep.subr.bf16.mxu0 0
      %4022 = vmatpush1.bf16.msra.mxu0 %v3887
      %4023 = vmatprep.subr.bf16.mxu0 0
      %4024 = vmatpush1.bf16.msra.mxu0 %v3890
      %4025 = vmatprep.subr.bf16.mxu0 0
      %4026 = vmatpush1.bf16.msra.mxu0 %v3893
      %4027 = vmatprep.subr.bf16.mxu0 0
      %4028 = vmatpush1.bf16.msra.mxu0 %v3896
      %4029 = vmatprep.subr.bf16.mxu0 0
      %4030 = vmatpush1.bf16.msra.mxu0 %v3899
      %4031 = vmatprep.subr.bf16.mxu0 0
      %4032 = vmatpush1.bf16.msra.mxu0 %v3902
      %4033 = vmatprep.subr.bf16.mxu0 0
      %4034 = vmatpush1.bf16.msra.mxu0 %v3905
      %4035 = vmatprep.subr.bf16.mxu0 0
      %4036 = vmatpush1.bf16.msra.mxu0 %v3908
      %4037 = vmatprep.subr.bf16.mxu0 0
      %4038 = vmatpush1.bf16.msra.mxu0 %v3911
      %4039 = vmatprep.subr.bf16.mxu0 0
      %4040 = vmatpush1.bf16.msra.mxu0 %v3914
      %4041 = vmatprep.subr.bf16.mxu0 0
      %4042 = vmatpush1.bf16.msra.mxu0 %v3917
      %4043 = vmatprep.subr.bf16.mxu0 0
      %4044 = vmatpush1.bf16.msra.mxu0 %v3920
      %4045 = vmatprep.subr.bf16.mxu0 0
      %4046 = vmatpush1.bf16.msra.mxu0 %v3923
      %4047 = vmatprep.mubr.bf16.mxu0 %v3713
      %4048 = vmatmul.mubr.bf16.gmra.mrb[0].mxu0 %v3712
      %v4049 = vpop.f32.mrb[0].mxu0
      %v4050 = vadd.f32 %v3665, %v4049
      %v4051 = vpop.f32.mrb[0].mxu0
      %v4052 = vpop.f32.mrb[0].mxu0
      %v4053 = vadd.f32 %v3665, %v4052
      %v4054 = vpop.f32.mrb[0].mxu0
      %4055 = vdwg.mxu0
      %4056 = vst [vmem:[%s394] sm:$0xff] %v4007
      %4057 = vst [vmem:[%s394 + $0x8] sm:$0xff] %v4009
      %4058 = vst [vmem:[%s394 + $0x10] sm:$0xff] %v4011
      %4059 = vst [vmem:[%s394 + $0x18] sm:$0xff] %v4013
      %v4060 = vmax.f32 %v4050, 0.0
      %v4061 = vmax.f32 %v4053, 0.0
      %v4062 = vpack.c.bf16 %v4061, %v4060
      %v4063 = vld [vmem:[%s6] sm:$0xf]
      %v4064 = vld [vmem:[%s6 + $0x4] sm:$0xf]
      %v4065 = vld [vmem:[%s6 + $0x8] sm:$0xf]
      %v4066 = vld [vmem:[%s6 + $0xc] sm:$0xf]
      %v4067 = vld [vmem:[%s6 + $0x10] sm:$0xf]
      %v4068 = vld [vmem:[%s6 + $0x14] sm:$0xf]
      %v4069 = vld [vmem:[%s6 + $0x18] sm:$0xf]
      %v4070 = vld [vmem:[%s6 + $0x1c] sm:$0xf]
      %v4071 = vld [vmem:[%s7 + $0x4] ss:$0 sm:$0xff]
      %v4080 = vunpack.c.l.b16 %v4063
      %v4081 = vunpack.c.l.b16 %v4064
      %v4082 = vunpack.c.l.b16 %v4065
      %v4083 = vunpack.c.l.b16 %v4066
      %v4084 = vunpack.c.l.b16 %v4067
      %v4085 = vunpack.c.l.b16 %v4068
      %v4086 = vunpack.c.l.b16 %v4069
      %v4087 = vunpack.c.l.b16 %v4070
      %v4088 = vpack.c.b16 %v4081, %v4080
      %v4089 = vpack.c.b16 %v4083, %v4082
      %v4090 = vpack.c.b16 %v4085, %v4084
      %v4091 = vpack.c.b16 %v4087, %v4086
      %4092 = vrot.lane.b32.xlu0 %v4088, 112
      %v4093 = vpop.permute.xlu0 %4092
      %4094 = vrot.lane.b32.xlu0 %v4089, 112
      %v4095 = vpop.permute.xlu0 %4094
      %4096 = vrot.lane.b32.xlu0 %v4090, 112
      %v4097 = vpop.permute.xlu0 %4096
      %4098 = vrot.lane.b32.xlu0 %v4091, 112
      %v4099 = vpop.permute.xlu0 %4098
      %vm4104 = vcmask 523264
      %v4106 = vsel %vm4104, %v4062, 0
      %4108 = vmatprep.subr.bf16.mxu0 0
      %4109 = vmatpush1.bf16.msra.mxu0 %v4093
      %4110 = vmatprep.subr.bf16.mxu0 0
      %4111 = vmatpush1.bf16.msra.mxu0 %v4095
      %4112 = vmatprep.subr.bf16.mxu0 0
      %4113 = vmatpush1.bf16.msra.mxu0 %v4097
      %4114 = vmatprep.subr.bf16.mxu0 0
      %4115 = vmatpush1.bf16.msra.mxu0 %v4099
      %4116 = vmatprep.subr.bf16.mxu0 0
      %4117 = vmatpush1.bf16.msra.mxu0 0
      %4118 = vmatprep.subr.bf16.mxu0 0
      %4119 = vmatpush1.bf16.msra.mxu0 0
      %4120 = vmatprep.subr.bf16.mxu0 0
      %4121 = vmatpush1.bf16.msra.mxu0 0
      %4122 = vmatprep.subr.bf16.mxu0 0
      %4123 = vmatpush1.bf16.msra.mxu0 0
      %4124 = vmatprep.subr.bf16.mxu0 0
      %4125 = vmatpush1.bf16.msra.mxu0 0
      %4126 = vmatprep.subr.bf16.mxu0 0
      %4127 = vmatpush1.bf16.msra.mxu0 0
      %4128 = vmatprep.subr.bf16.mxu0 0
      %4129 = vmatpush1.bf16.msra.mxu0 0
      %4130 = vmatprep.subr.bf16.mxu0 0
      %4131 = vmatpush1.bf16.msra.mxu0 0
      %4132 = vmatprep.subr.bf16.mxu0 0
      %4133 = vmatpush1.bf16.msra.mxu0 0
      %4134 = vmatprep.subr.bf16.mxu0 0
      %4135 = vmatpush1.bf16.msra.mxu0 0
      %4136 = vmatprep.subr.bf16.mxu0 0
      %4137 = vmatpush1.bf16.msra.mxu0 0
      %4138 = vmatprep.subr.bf16.mxu0 0
      %4139 = vmatpush1.bf16.msra.mxu0 0
      %4140 = vmatprep.mubr.bf16.mxu0 0
      %4141 = vmatmul.mubr.bf16.gmra.mrb[0].mxu0 %v4106
      %v4142 = vpop.f32.mrb[0].mxu0
      %v4143 = vadd.f32 %v4071, %v4142
      %v4144 = vpop.f32.mrb[0].mxu0
      %v4145 = vpop.f32.mrb[0].mxu0
      %v4146 = vadd.f32 %v4071, %v4145
      %v4147 = vpop.f32.mrb[0].mxu0
      %4148 = vdwg.mxu0
      %v4149 = vxor.u32 %v4143, 2147483648
      %v4150 = vxor.u32 %v4146, 2147483648
      %v4151 = vmul.f32 %v4149, 1.442695
      %v4152 = vpow.pop %v4151
      %v4153 = vmul.f32 %v4150, 1.442695
      %v4154 = vpow.pop %v4153
      %v4155 = vadd.f32 %v4152, 1.0
      %v4156 = vadd.f32 %v4154, 1.0
      %v4157 = vrcp.pop %v4155
      %v4158 = vmul.f32 1.0, %v4157
      %v4159 = vrcp.pop %v4156
      %v4160 = vmul.f32 1.0, %v4159
      %v4161 = vsub.f32 %v401, %v410
      %v4162 = vsub.f32 %v402, %v411
      %v4163 = vsub.f32 %v403, %v412
      %v4164 = vsub.f32 %v404, %v413
      %v4165 = vsub.f32 %v405, %v414
      %v4166 = vsub.f32 %v406, %v415
      %v4167 = vsub.f32 %v407, %v416
      %v4168 = vsub.f32 %v408, %v417
      %v4169 = vsub.f32 %v409, %v418
      %v4170 = vand.u32 2147483647, %v4161
      %v4171 = vand.u32 2147483647, %v4162
      %v4172 = vand.u32 2147483647, %v4163
      %v4173 = vand.u32 2147483647, %v4164
      %v4174 = vand.u32 2147483647, %v4165
      %v4175 = vand.u32 2147483647, %v4166
      %v4176 = vand.u32 2147483647, %v4167
      %v4177 = vand.u32 2147483647, %v4168
      %v4178 = vand.u32 2147483647, %v4169
      %v4179 = vpack.c.bf16 %v4173, %v4170
      %v4180 = vpack.c.bf16 %v4174, %v4171
      %v4181 = vpack.c.bf16 %v4175, %v4172
      %v4182 = vpack.c.bf16 %v4176, %v4176
      %v4183 = vpack.c.bf16 %v4177, %v4177
      %v4184 = vpack.c.bf16 %v4178, %v4178
      %v4185 = vld [vmem:[%s6] sm:$0xf]
      %v4186 = vld [vmem:[%s6 + $0x4] sm:$0xf]
      %v4187 = vld [vmem:[%s6 + $0x8] sm:$0xf]
      %v4188 = vld [vmem:[%s6 + $0xc] sm:$0xf]
      %v4189 = vld [vmem:[%s6 + $0x10] sm:$0xf]
      %v4190 = vld [vmem:[%s6 + $0x14] sm:$0xf]
      %v4191 = vld [vmem:[%s6 + $0x18] sm:$0xf]
      %v4192 = vld [vmem:[%s6 + $0x1c] sm:$0xf]
      %v4193 = vld [vmem:[%s6 + $0x20] sm:$0xf]
      %v4194 = vld [vmem:[%s6 + $0x24] sm:$0xf]
      %v4195 = vld [vmem:[%s6 + $0x28] sm:$0xf]
      %v4196 = vld [vmem:[%s6 + $0x2c] sm:$0xf]
      %v4197 = vld [vmem:[%s6 + $0x30] sm:$0xf]
      %v4198 = vld [vmem:[%s6 + $0x34] sm:$0xf]
      %v4199 = vld [vmem:[%s6 + $0x38] sm:$0xf]
      %v4200 = vld [vmem:[%s6 + $0x3c] sm:$0xf]
      %v4201 = vld [vmem:[%s6 + $0x40] sm:$0xf]
      %v4202 = vld [vmem:[%s6 + $0x44] sm:$0xf]
      %v4203 = vld [vmem:[%s6 + $0x48] sm:$0xf]
      %v4204 = vld [vmem:[%s6 + $0x4c] sm:$0xf]
      %v4205 = vld [vmem:[%s6 + $0x50] sm:$0xf]
      %v4206 = vld [vmem:[%s6 + $0x54] sm:$0xf]
      %v4207 = vld [vmem:[%s6 + $0x58] sm:$0xf]
      %v4208 = vld [vmem:[%s6 + $0x5c] sm:$0xf]
      %v4209 = vld [vmem:[%s6 + $0x60] sm:$0xf]
      %v4210 = vld [vmem:[%s6 + $0x64] sm:$0xf]
      %v4211 = vld [vmem:[%s6 + $0x68] sm:$0xf]
      %v4212 = vld [vmem:[%s6 + $0x6c] sm:$0xf]
      %v4213 = vld [vmem:[%s6 + $0x70] sm:$0xf]
      %v4214 = vld [vmem:[%s6 + $0x74] sm:$0xf]
      %v4215 = vld [vmem:[%s6 + $0x78] sm:$0xf]
      %v4216 = vld [vmem:[%s6 + $0x7c] sm:$0xf]
      %v4218 = vshrl.u32 %v4179, 16
      %v4220 = vshll.u32 %v4179, 16
      %v4222 = vrot.slane %v4220, 1
      %v4223 = vor.u32 %v4218, %v4222
      %v4225 = vshll.u32 %v4182, 16
      %v4227 = vrot.slane %v4225, 1
      %v4228 = vsel %vm576, %v4223, %v4227
      %v4230 = vshrl.u32 %v4180, 16
      %v4232 = vshll.u32 %v4180, 16
      %v4234 = vrot.slane %v4232, 1
      %v4235 = vor.u32 %v4230, %v4234
      %v4237 = vshll.u32 %v4183, 16
      %v4239 = vrot.slane %v4237, 1
      %v4240 = vsel %vm576, %v4235, %v4239
      %v4242 = vshrl.u32 %v4181, 16
      %v4244 = vshll.u32 %v4181, 16
      %v4246 = vrot.slane %v4244, 1
      %v4247 = vor.u32 %v4242, %v4246
      %v4249 = vshll.u32 %v4184, 16
      %v4251 = vrot.slane %v4249, 1
      %v4252 = vsel %vm576, %v4247, %v4251
      %4253 = vrot.lane.b32.xlu0 %v4228, 112
      %v4254 = vpop.permute.xlu0 %4253
      %4255 = vrot.lane.b32.xlu0 %v4240, 112
      %v4256 = vpop.permute.xlu0 %4255
      %4257 = vrot.lane.b32.xlu0 %v4252, 112
      %v4258 = vpop.permute.xlu0 %4257
      %v4259 = vsel %vm3711, %v4254, %v4256
      %v4260 = vsel %vm3711, %v4256, %v4258
      %v4295 = vunpack.c.l.b16 %v4185
      %v4296 = vunpack.c.l.b16 %v4186
      %v4297 = vunpack.c.l.b16 %v4187
      %v4298 = vunpack.c.l.b16 %v4188
      %v4299 = vunpack.c.l.b16 %v4189
      %v4300 = vunpack.c.l.b16 %v4190
      %v4301 = vunpack.c.l.b16 %v4191
      %v4302 = vunpack.c.l.b16 %v4192
      %v4303 = vunpack.c.l.b16 %v4193
      %v4304 = vunpack.c.l.b16 %v4194
      %v4305 = vunpack.c.l.b16 %v4195
      %v4306 = vunpack.c.l.b16 %v4196
      %v4307 = vunpack.c.l.b16 %v4197
      %v4308 = vunpack.c.l.b16 %v4198
      %v4309 = vunpack.c.l.b16 %v4199
      %v4310 = vunpack.c.l.b16 %v4200
      %v4311 = vunpack.c.l.b16 %v4201
      %v4312 = vunpack.c.l.b16 %v4202
      %v4313 = vunpack.c.l.b16 %v4203
      %v4314 = vunpack.c.l.b16 %v4204
      %v4315 = vunpack.c.l.b16 %v4205
      %v4316 = vunpack.c.l.b16 %v4206
      %v4317 = vunpack.c.l.b16 %v4207
      %v4318 = vunpack.c.l.b16 %v4208
      %v4319 = vunpack.c.l.b16 %v4209
      %v4320 = vunpack.c.l.b16 %v4210
      %v4321 = vunpack.c.l.b16 %v4211
      %v4322 = vunpack.c.l.b16 %v4212
      %v4323 = vunpack.c.l.b16 %v4213
      %v4324 = vunpack.c.l.b16 %v4214
      %v4325 = vunpack.c.l.b16 %v4215
      %v4326 = vunpack.c.l.b16 %v4216
      %v4327 = vpack.c.b16 %v4296, %v4295
      %v4328 = vpack.c.b16 %v4298, %v4297
      %v4329 = vpack.c.b16 %v4300, %v4299
      %v4330 = vpack.c.b16 %v4302, %v4301
      %v4331 = vpack.c.b16 %v4304, %v4303
      %v4332 = vpack.c.b16 %v4306, %v4305
      %v4333 = vpack.c.b16 %v4308, %v4307
      %v4334 = vpack.c.b16 %v4310, %v4309
      %v4335 = vpack.c.b16 %v4312, %v4311
      %v4336 = vpack.c.b16 %v4314, %v4313
      %v4337 = vpack.c.b16 %v4316, %v4315
      %v4338 = vpack.c.b16 %v4318, %v4317
      %v4339 = vpack.c.b16 %v4320, %v4319
      %v4340 = vpack.c.b16 %v4322, %v4321
      %v4341 = vpack.c.b16 %v4324, %v4323
      %v4342 = vpack.c.b16 %v4326, %v4325
      %4359 = vmatprep.subr.bf16.mxu0 0
      %4360 = vmatpush1.bf16.msra.mxu0 %v4327
      %4361 = vmatprep.subr.bf16.mxu0 0
      %4362 = vmatpush1.bf16.msra.mxu0 %v4328
      %4363 = vmatprep.subr.bf16.mxu0 0
      %4364 = vmatpush1.bf16.msra.mxu0 %v4329
      %4365 = vmatprep.subr.bf16.mxu0 0
      %4366 = vmatpush1.bf16.msra.mxu0 %v4330
      %4367 = vmatprep.subr.bf16.mxu0 0
      %4368 = vmatpush1.bf16.msra.mxu0 %v4331
      %4369 = vmatprep.subr.bf16.mxu0 0
      %4370 = vmatpush1.bf16.msra.mxu0 %v4332
      %4371 = vmatprep.subr.bf16.mxu0 0
      %4372 = vmatpush1.bf16.msra.mxu0 %v4333
      %4373 = vmatprep.subr.bf16.mxu0 0
      %4374 = vmatpush1.bf16.msra.mxu0 %v4334
      %4375 = vmatprep.subr.bf16.mxu0 0
      %4376 = vmatpush1.bf16.msra.mxu0 %v4335
      %4377 = vmatprep.subr.bf16.mxu0 0
      %4378 = vmatpush1.bf16.msra.mxu0 %v4336
      %4379 = vmatprep.subr.bf16.mxu0 0
      %4380 = vmatpush1.bf16.msra.mxu0 %v4337
      %4381 = vmatprep.subr.bf16.mxu0 0
      %4382 = vmatpush1.bf16.msra.mxu0 %v4338
      %4383 = vmatprep.subr.bf16.mxu0 0
      %4384 = vmatpush1.bf16.msra.mxu0 %v4339
      %4385 = vmatprep.subr.bf16.mxu0 0
      %4386 = vmatpush1.bf16.msra.mxu0 %v4340
      %4387 = vmatprep.subr.bf16.mxu0 0
      %4388 = vmatpush1.bf16.msra.mxu0 %v4341
      %4389 = vmatprep.subr.bf16.mxu0 0
      %4390 = vmatpush1.bf16.msra.mxu0 %v4342
      %4391 = vmatprep.mubr.bf16.mxu0 %v4260
      %4392 = vmatmul.mubr.bf16.gmra.mrb[0].mxu0 %v4259
      %v4393 = vpop.f32.mrb[0].mxu0
      %v4394 = vadd.f32 0.0, %v4393
      %v4395 = vpop.f32.mrb[0].mxu0
      %v4396 = vpop.f32.mrb[0].mxu0
      %v4397 = vadd.f32 0.0, %v4396
      %v4398 = vpop.f32.mrb[0].mxu0
      %4399 = vdwg.mxu0
      %v4400 = vsub.f32 1.0, %v4394
      %v4401 = vsub.f32 1.0, %v4397
      %v4402 = vxor.u32 %v4400, 2147483648
      %v4403 = vxor.u32 %v4401, 2147483648
      %v4404 = vmul.f32 %v4402, 1.442695
      %v4405 = vpow.pop %v4404
      %v4406 = vmul.f32 %v4403, 1.442695
      %v4407 = vpow.pop %v4406
      %v4408 = vadd.f32 %v4405, 1.0
      %v4409 = vadd.f32 %v4407, 1.0
      %v4410 = vrcp.pop %v4408
      %v4411 = vmul.f32 1.0, %v4410
      %v4412 = vrcp.pop %v4409
      %v4413 = vmul.f32 1.0, %v4412
      %4416 = vrot.lane.b32.xlu0 %v4411, 16
      %v4417 = vpop.permute.xlu0 %4416
      %4418 = vrot.lane.b32.xlu0 %v4413, 16
      %v4419 = vpop.permute.xlu0 %4418
      %4424 = vrot.lane.b32.xlu0 %v4158, 32
      %v4425 = vpop.permute.xlu0 %4424
      %4426 = vrot.lane.b32.xlu0 %v4160, 32
      %v4427 = vpop.permute.xlu0 %4426
      %v4430 = vsel %vm3478, %v3417, %v4417
      %v4431 = vsel %vm3478, %v3423, %v4419
      %v4432 = vsel %vm975, %v4430, %v4425
      %v4433 = vsel %vm975, %v4431, %v4427
      %vm4434 = vcmask 392192
      %4435 = vst.msk [vmem:[%s399] sm:$0xff] %vm4434, %v4432
      %4436 = vst.msk [vmem:[%s399 + $0x8] sm:$0xff] %vm4434, %v4433
      %p4437 = scmp.lt.s32.totalorder %s21, 1
      %s4438 = scalar_select %p4437, %s21, 1
      %s4439 = smul.addr %s4438, 4
      %s4440 = smul.addr %s4439, 8
      %s4441 = scalar_lea.vmem %s8, %s4440
      %p4442 = scmp.lt.s32.totalorder %s21, 1
      %s4443 = scalar_select %p4442, %s21, 1
      %s4444 = smul.addr %s4443, 2
      %s4445 = smul.addr %s4444, 8
      %s4446 = scalar_lea.vmem %s9, %s4445
      // Predicated region
      $region53: #{abam_forward.3} parent=51 // pred_check
        %p4447 = pneg %p227
      $region54: #{abam_forward.3} parent=51 // pred_check_branch
        %4449 = sbr.rel (%p4447) target = $region56
      $region55: #{abam_forward.3} parent=51 // pred_region
        _
      $region56: #{abam_forward.3} parent=51 // pred_fallthru
        _
      // Predicated region
      $region57: #{abam_forward.3} parent=51 // pred_check
        %p4450 = pneg %p253
      $region58: #{abam_forward.3} parent=51 // pred_check_branch
        %4452 = sbr.rel (%p4450) target = $region60
      $region59: #{abam_forward.3} parent=51 // pred_region
        _
      $region60: #{abam_forward.3} parent=51 // pred_fallthru
        _
    $region52: #{abam_forward.3} parent=5 // pred_fallthru
      _
    %p4453 = scmp.le.s32.totalorder 2, %s16
    // Predicated region
    $region61: #{abam_forward.3} parent=5 // pred_check
      %p4454 = pneg %p4453
    $region62: #{abam_forward.3} parent=5 // pred_check_branch
      %4456 = sbr.rel (%p4454) target = $region64
    $region63: #{abam_forward.3} parent=5 // pred_region
      %s4457 = ssub.s32 %s16, 2
      // Predicated region
      $region65: #{abam_forward.3} parent=63 // pred_check
        %p4458 = pneg %p233
      $region66: #{abam_forward.3} parent=63 // pred_check_branch
        %4460 = sbr.rel (%p4458) target = $region68
      $region67: #{abam_forward.3} parent=63 // pred_region
        %p4461 = scmp.lt.s32.totalorder %s22, 1
        %s4462 = scalar_select %p4461, %s22, 1
        %s4463 = smul.addr %s4462, 4
        %s4464 = smul.addr %s4463, 8
        %s4465 = scalar_lea.vmem %s8, %s4464
      $region68: #{abam_forward.3} parent=63 // pred_fallthru
        _
      // Predicated region
      $region69: #{abam_forward.3} parent=63 // pred_check
        %p4466 = pneg %p259
      $region70: #{abam_forward.3} parent=63 // pred_check_branch
        %4468 = sbr.rel (%p4466) target = $region72
      $region71: #{abam_forward.3} parent=63 // pred_region
        %p4469 = scmp.lt.s32.totalorder %s22, 1
        %s4470 = scalar_select %p4469, %s22, 1
        %s4471 = smul.addr %s4470, 2
        %s4472 = smul.addr %s4471, 8
        %s4473 = scalar_lea.vmem %s9, %s4472
      $region72: #{abam_forward.3} parent=63 // pred_fallthru
        _
    $region64: #{abam_forward.3} parent=5 // pred_fallthru
      _
  $region6: #{abam_forward.3} parent=0 // loop_footer
    %s20 = sadd.s32 1, %s16
  $region7: #{abam_forward.3} parent=0 // loop_footer_branch
    %15 = sbr.rel target = $region3
  $region8: #{abam_forward.3} parent=0 // loop_exit
    _

</llo_original>
